<compile_context>
chip_gen: v7x
topology: tpu7x:2x2x1
jax: 0.10.0
libtpu: 0.0.40
codegen_flags: <defaults>
</compile_context>

<pallas_src>
import functools

import jax
import jax.numpy as jnp
from jax.experimental import pallas as pl
from jax.experimental.pallas import tpu as pltpu


def _encoder_kernel(L, T, B, E, H, *refs):
    """refs = (emb_flat,
               [wi, wh, bgx, bhn] * (2 directions) * L,
               wfc, bfc,
               out, s, seq_scratch)."""
    emb_ref = refs[0]                     # [T*B, E]   time-major rows
    cell_refs = refs[1:1 + 8 * L]         # per (layer, dir): wi, wh, bgx, bhn
    wfc_ref = refs[1 + 8 * L]             # [2, H, 2H] (fwd half, bwd half of fc.T)
    bfc_ref = refs[2 + 8 * L]             # [1, 2H]
    out_ref = refs[3 + 8 * L]             # [T*B, 2H]  last-layer outputs (fwd|bwd)
    s_ref = refs[4 + 8 * L]               # [L, B, 2H] tanh(fc(cat(h_f, h_b)))
    seq_ref = refs[5 + 8 * L]             # [T*B, 2H]  VMEM scratch: layer output seq

    H2 = 2 * H
    H3 = 3 * H

    def dot(a, b):
        return jnp.dot(a, b, preferred_element_type=jnp.float32)

    wfc_f = wfc_ref[0]                    # [H, 2H]
    wfc_b = wfc_ref[1]                    # [H, 2H]
    bfc = bfc_ref[...]                    # [1, 2H]

    for l in range(L):
        base = 8 * l
        wi_f = cell_refs[base + 0][...]   # [in_l, 3H]  (r|z|n along lanes)
        wh_f = cell_refs[base + 1][...]   # [H, 3H]
        bgx_f = cell_refs[base + 2][...]  # [1, 3H]  (b_ir+b_hr | b_iz+b_hz | b_in)
        bhn_f = cell_refs[base + 3][...]  # [1, H]   (b_hn, stays inside r*(.))
        wi_b = cell_refs[base + 4][...]
        wh_b = cell_refs[base + 5][...]
        bgx_b = cell_refs[base + 6][...]
        bhn_b = cell_refs[base + 7][...]

        # Layer input: embedding for layer 0, previous layer's [T*B, 2H] slab
        # (fwd half | bwd half) for layers > 0.  Read happens before this
        # layer's writes into seq_ref, so re-using the scratch is safe.
        x = emb_ref[...] if l == 0 else seq_ref[...]

        # One big MXU dot per direction over the whole sequence; input-side
        # biases folded in once here (not per step).
        gx_f = dot(x, wi_f) + bgx_f       # [T*B, 3H]
        gx_b = dot(x, wi_b) + bgx_b       # [T*B, 3H]

        # Last layer writes straight into the output slab; others into scratch.
        dst = out_ref if l == L - 1 else seq_ref

        h_f = jnp.zeros((B, H), jnp.float32)      # PyTorch default h0 = 0
        h_b = jnp.zeros((B, H), jnp.float32)

        # Interleaved fwd/bwd recurrence: two independent chains per iteration.
        for t in range(T):
            tb = T - 1 - t
            gh_f = dot(h_f, wh_f)                 # [B, 3H] fused r|z|n
            gh_b = dot(h_b, wh_b)                 # [B, 3H]
            gxf = gx_f[t * B:(t + 1) * B]         # [B, 3H]
            gxb = gx_b[tb * B:(tb + 1) * B]       # [B, 3H]

            r_f = jax.nn.sigmoid(gxf[:, 0:H] + gh_f[:, 0:H])
            z_f = jax.nn.sigmoid(gxf[:, H:H2] + gh_f[:, H:H2])
            n_f = jnp.tanh(gxf[:, H2:H3] + r_f * (gh_f[:, H2:H3] + bhn_f))
            h_f = n_f + z_f * (h_f - n_f)

            r_b = jax.nn.sigmoid(gxb[:, 0:H] + gh_b[:, 0:H])
            z_b = jax.nn.sigmoid(gxb[:, H:H2] + gh_b[:, H:H2])
            n_b = jnp.tanh(gxb[:, H2:H3] + r_b * (gh_b[:, H2:H3] + bhn_b))
            h_b = n_b + z_b * (h_b - n_b)

            # In-place sequence writes (no Python list / concat, bounded live
            # ranges): fwd half at row block t, bwd half at row block T-1-t.
            dst[t * B:(t + 1) * B, 0:H] = h_f
            dst[tb * B:(tb + 1) * B, H:H2] = h_b

        # s[l] = tanh(fc(cat(h_f, h_b))): fc split row-wise -> two dots summed
        # (no lane concat); runs once per layer, off the serial path.
        s_ref[l] = jnp.tanh(dot(h_f, wfc_f) + dot(h_b, wfc_b) + bfc)


def prepare_encoder_params(raw, n_layers, hid_dim):
    """One-time re-layout of the PyTorch-style parameters for the kernel."""
    H = hid_dim
    prep = {
        "n_layers": n_layers,
        "hid_dim": H,
        "embedding": raw["embedding"].astype(jnp.float32),
    }
    for l in range(n_layers):
        for d, suf in enumerate(["", "_reverse"]):
            Wih = raw[f"weight_ih_l{l}{suf}"].astype(jnp.float32)   # [3H, in]
            Whh = raw[f"weight_hh_l{l}{suf}"].astype(jnp.float32)   # [3H, H]
            bih = raw[f"bias_ih_l{l}{suf}"].astype(jnp.float32)     # [3H]
            bhh = raw[f"bias_hh_l{l}{suf}"].astype(jnp.float32)     # [3H]
            # PyTorch stacks gates (r, z, n) along the rows of W*; transposing
            # puts them along lanes in the same order -> fused [in, 3H]/[H, 3H].
            prep[f"wi_{l}_{d}"] = Wih.T                             # [in_l, 3H]
            prep[f"wh_{l}_{d}"] = Whh.T                             # [H, 3H]
            prep[f"bgx_{l}_{d}"] = jnp.concatenate([
                bih[0:H] + bhh[0:H],          # r: b_ir + b_hr
                bih[H:2 * H] + bhh[H:2 * H],  # z: b_iz + b_hz
                bih[2 * H:3 * H],             # n: b_in
            ], axis=0)[None, :]                                     # [1, 3H]
            prep[f"bhn_{l}_{d}"] = bhh[2 * H:3 * H][None, :]        # [1, H]
    fc_w = raw["fc_w"].astype(jnp.float32)                          # [2H, 2H]
    prep["wfc"] = jnp.stack([fc_w[:, :H].T, fc_w[:, H:].T], 0)      # [2, H, 2H]
    prep["bfc"] = raw["fc_b"].astype(jnp.float32)[None, :]          # [1, 2H]
    return prep


def encoder_forward(prep, input_ids):
    """input_ids: [B, T] int32.  Returns (outputs [B,T,2H], s [L,B,2H])."""
    L = prep["n_layers"]
    H = prep["hid_dim"]
    emb_table = prep["embedding"]
    E = emb_table.shape[1]
    B, T = input_ids.shape

    # Embedding gather (glue) + time-major flatten for the batched gate matmuls.
    emb = emb_table[input_ids]                              # [B, T, E]
    emb_flat = emb.transpose(1, 0, 2).reshape(T * B, E)     # row t*B+b

    args = [emb_flat]
    for l in range(L):
        for d in range(2):
            args += [prep[f"wi_{l}_{d}"], prep[f"wh_{l}_{d}"],
                     prep[f"bgx_{l}_{d}"], prep[f"bhn_{l}_{d}"]]
    args += [prep["wfc"], prep["bfc"]]

    kernel = functools.partial(_encoder_kernel, L, T, B, E, H)
    vmem = pl.BlockSpec(memory_space=pltpu.MemorySpace.VMEM)

    out_flat, s = pl.pallas_call(
        kernel,
        out_shape=(
            jax.ShapeDtypeStruct((T * B, 2 * H), jnp.float32),   # lane-dense slab
            jax.ShapeDtypeStruct((L, B, 2 * H), jnp.float32),
        ),
        in_specs=[vmem] * len(args),
        out_specs=(vmem, vmem),
        scratch_shapes=[pltpu.VMEM((T * B, 2 * H), jnp.float32)],
    )(*args)

    # outputs[b, t] = cat(fwd_t, bwd_t) — cheap glue reshape/transpose outside
    # the kernel.
    outputs = out_flat.reshape(T, B, 2 * H).transpose(1, 0, 2)
    return outputs, s


def _reference_forward(raw, input_ids, n_layers, hid_dim):
    """Pure-JAX reference mirroring torch.nn.GRU(bidirectional=True) + fc."""
    H = hid_dim
    emb = raw["embedding"][input_ids]            # [B, T, E]
    B, T, _ = emb.shape
    x = emb
    finals = []
    for l in range(n_layers):
        outs_dirs, finals_l = [], []
        for d, suf in enumerate(["", "_reverse"]):
            Wih = raw[f"weight_ih_l{l}{suf}"]
            Whh = raw[f"weight_hh_l{l}{suf}"]
            bih = raw[f"bias_ih_l{l}{suf}"]
            bhh = raw[f"bias_hh_l{l}{suf}"]
            h = jnp.zeros((B, H), jnp.float32)
            order = range(T) if d == 0 else range(T - 1, -1, -1)
            outs = [None] * T
            for t in order:
                xt = x[:, t, :]
                gx = xt @ Wih.T + bih
                gh = h @ Whh.T + bhh
                r = jax.nn.sigmoid(gx[:, :H] + gh[:, :H])
                z = jax.nn.sigmoid(gx[:, H:2 * H] + gh[:, H:2 * H])
                n = jnp.tanh(gx[:, 2 * H:] + r * gh[:, 2 * H:])
                h = (1.0 - z) * n + z * h
                outs[t] = h
            outs_dirs.append(jnp.stack(outs, axis=1))    # [B, T, H]
            finals_l.append(h)
        x = jnp.concatenate(outs_dirs, axis=-1)          # [B, T, 2H]
        finals.append(jnp.concatenate(finals_l, axis=-1))
    outputs = x
    s_cat = jnp.stack(finals, axis=0)                    # [L, B, 2H]
    s = jnp.tanh(s_cat @ raw["fc_w"].T + raw["fc_b"])
    return outputs, s


def make_params(key, vocab, emb_dim, hid_dim, n_layers):
    H = hid_dim
    keys = iter(jax.random.split(key, 1 + 8 * n_layers + 2))
    raw = {"embedding": 0.1 * jax.random.normal(next(keys), (vocab, emb_dim),
                                                jnp.float32)}
    for l in range(n_layers):
        in_dim = emb_dim if l == 0 else 2 * H
        for suf in ["", "_reverse"]:
            raw[f"weight_ih_l{l}{suf}"] = 0.2 * jax.random.normal(
                next(keys), (3 * H, in_dim), jnp.float32)
            raw[f"weight_hh_l{l}{suf}"] = 0.2 * jax.random.normal(
                next(keys), (3 * H, H), jnp.float32)
            raw[f"bias_ih_l{l}{suf}"] = 0.05 * jax.random.normal(
                next(keys), (3 * H,), jnp.float32)
            raw[f"bias_hh_l{l}{suf}"] = 0.05 * jax.random.normal(
                next(keys), (3 * H,), jnp.float32)
    raw["fc_w"] = 0.2 * jax.random.normal(next(keys), (2 * H, 2 * H), jnp.float32)
    raw["fc_b"] = 0.05 * jax.random.normal(next(keys), (2 * H,), jnp.float32)
    return raw


if __name__ == "__main__":
    # Small shapes consistent with the Encoder forward.
    B, T = 2, 8            # batch, source sequence length
    vocab = 64             # en_vocab_size
    emb_dim = 32
    hid_dim = 16           # GRU hidden per direction; outputs have 2*hid_dim
    n_layers = 2

    key = jax.random.PRNGKey(0)
    kp, ki = jax.random.split(key)
    raw = make_params(kp, vocab, emb_dim, hid_dim, n_layers)
    input_ids = jax.random.randint(ki, (B, T), 0, vocab, dtype=jnp.int32)

    prep = prepare_encoder_params(raw, n_layers, hid_dim)   # one-time re-layout
    outputs, s = encoder_forward(prep, input_ids)
    jax.block_until_ready((outputs, s))

    ref_outputs, ref_s = _reference_forward(raw, input_ids, n_layers, hid_dim)
    assert outputs.shape == (B, T, 2 * hid_dim)
    assert s.shape == (n_layers, B, 2 * hid_dim)
    assert jnp.allclose(outputs, ref_outputs, atol=5e-3, rtol=5e-3)
    assert jnp.allclose(s, ref_s, atol=5e-3, rtol=5e-3)

    print("KERNEL_OK")
</pallas_src>

<mosaic_0001>
module attributes {stable_mosaic.version = 11 : i64} {
  func.func @_encoder_kernel(%arg0: memref<16x32xf32, #tpu.memory_space<vmem>>, %arg1: memref<32x48xf32, #tpu.memory_space<vmem>>, %arg2: memref<16x48xf32, #tpu.memory_space<vmem>>, %arg3: memref<1x48xf32, #tpu.memory_space<vmem>>, %arg4: memref<1x16xf32, #tpu.memory_space<vmem>>, %arg5: memref<32x48xf32, #tpu.memory_space<vmem>>, %arg6: memref<16x48xf32, #tpu.memory_space<vmem>>, %arg7: memref<1x48xf32, #tpu.memory_space<vmem>>, %arg8: memref<1x16xf32, #tpu.memory_space<vmem>>, %arg9: memref<32x48xf32, #tpu.memory_space<vmem>>, %arg10: memref<16x48xf32, #tpu.memory_space<vmem>>, %arg11: memref<1x48xf32, #tpu.memory_space<vmem>>, %arg12: memref<1x16xf32, #tpu.memory_space<vmem>>, %arg13: memref<32x48xf32, #tpu.memory_space<vmem>>, %arg14: memref<16x48xf32, #tpu.memory_space<vmem>>, %arg15: memref<1x48xf32, #tpu.memory_space<vmem>>, %arg16: memref<1x16xf32, #tpu.memory_space<vmem>>, %arg17: memref<2x16x32xf32, #tpu.memory_space<vmem>>, %arg18: memref<1x32xf32, #tpu.memory_space<vmem>>, %arg19: memref<16x32xf32, #tpu.memory_space<vmem>>, %arg20: memref<2x2x32xf32, #tpu.memory_space<vmem>>, %arg21: memref<16x32xf32, #tpu.memory_space<vmem>>) attributes {dimension_semantics = [], scalar_prefetch = 0 : i64, scratch_operands = 1 : i64, tpu.core_type = #tpu.core_type<tc>} {
    %c0 = arith.constant 0 : index
    %c0_0 = arith.constant 0 : index
    %c0_1 = arith.constant 0 : index
    %0 = vector.load %arg17[%c0, %c0_0, %c0_1] : memref<2x16x32xf32, #tpu.memory_space<vmem>>, vector<1x16x32xf32>
    %1 = vector.shape_cast %0 : vector<1x16x32xf32> to vector<16x32xf32>
    %c1 = arith.constant 1 : index
    %c0_2 = arith.constant 0 : index
    %c0_3 = arith.constant 0 : index
    %2 = vector.load %arg17[%c1, %c0_2, %c0_3] : memref<2x16x32xf32, #tpu.memory_space<vmem>>, vector<1x16x32xf32>
    %3 = vector.shape_cast %2 : vector<1x16x32xf32> to vector<16x32xf32>
    %c0_4 = arith.constant 0 : index
    %c0_5 = arith.constant 0 : index
    %4 = vector.load %arg18[%c0_4, %c0_5] : memref<1x32xf32, #tpu.memory_space<vmem>>, vector<1x32xf32>
    %c0_6 = arith.constant 0 : index
    %c0_7 = arith.constant 0 : index
    %5 = vector.load %arg1[%c0_6, %c0_7] : memref<32x48xf32, #tpu.memory_space<vmem>>, vector<32x48xf32>
    %c0_8 = arith.constant 0 : index
    %c0_9 = arith.constant 0 : index
    %6 = vector.load %arg2[%c0_8, %c0_9] : memref<16x48xf32, #tpu.memory_space<vmem>>, vector<16x48xf32>
    %c0_10 = arith.constant 0 : index
    %c0_11 = arith.constant 0 : index
    %7 = vector.load %arg3[%c0_10, %c0_11] : memref<1x48xf32, #tpu.memory_space<vmem>>, vector<1x48xf32>
    %c0_12 = arith.constant 0 : index
    %c0_13 = arith.constant 0 : index
    %8 = vector.load %arg4[%c0_12, %c0_13] : memref<1x16xf32, #tpu.memory_space<vmem>>, vector<1x16xf32>
    %c0_14 = arith.constant 0 : index
    %c0_15 = arith.constant 0 : index
    %9 = vector.load %arg5[%c0_14, %c0_15] : memref<32x48xf32, #tpu.memory_space<vmem>>, vector<32x48xf32>
    %c0_16 = arith.constant 0 : index
    %c0_17 = arith.constant 0 : index
    %10 = vector.load %arg6[%c0_16, %c0_17] : memref<16x48xf32, #tpu.memory_space<vmem>>, vector<16x48xf32>
    %c0_18 = arith.constant 0 : index
    %c0_19 = arith.constant 0 : index
    %11 = vector.load %arg7[%c0_18, %c0_19] : memref<1x48xf32, #tpu.memory_space<vmem>>, vector<1x48xf32>
    %c0_20 = arith.constant 0 : index
    %c0_21 = arith.constant 0 : index
    %12 = vector.load %arg8[%c0_20, %c0_21] : memref<1x16xf32, #tpu.memory_space<vmem>>, vector<1x16xf32>
    %c0_22 = arith.constant 0 : index
    %c0_23 = arith.constant 0 : index
    %13 = vector.load %arg0[%c0_22, %c0_23] : memref<16x32xf32, #tpu.memory_space<vmem>>, vector<16x32xf32>
    %cst = arith.constant dense<0.000000e+00> : vector<16x48xf32>
    %14 = tpu.matmul %13, %5, %cst {dimension_numbers = #tpu.dot_dimension_numbers<[1], [0], [0], [1], [0, 0, 1, 1], [], []>} : vector<16x32xf32>, vector<32x48xf32>, vector<16x48xf32> -> vector<16x48xf32>
    %15 = vector.broadcast %7 : vector<1x48xf32> to vector<16x48xf32>
    %16 = arith.addf %14, %15 : vector<16x48xf32>
    %cst_24 = arith.constant dense<0.000000e+00> : vector<16x48xf32>
    %17 = tpu.matmul %13, %9, %cst_24 {dimension_numbers = #tpu.dot_dimension_numbers<[1], [0], [0], [1], [0, 0, 1, 1], [], []>} : vector<16x32xf32>, vector<32x48xf32>, vector<16x48xf32> -> vector<16x48xf32>
    %18 = vector.broadcast %11 : vector<1x48xf32> to vector<16x48xf32>
    %19 = arith.addf %17, %18 : vector<16x48xf32>
    %cst_25 = arith.constant 0.000000e+00 : f32
    %20 = vector.broadcast %cst_25 : f32 to vector<2x16xf32>
    %cst_26 = arith.constant 0.000000e+00 : f32
    %21 = vector.broadcast %cst_26 : f32 to vector<2x16xf32>
    %cst_27 = arith.constant dense<0.000000e+00> : vector<2x48xf32>
    %22 = tpu.matmul %20, %6, %cst_27 {dimension_numbers = #tpu.dot_dimension_numbers<[1], [0], [0], [1], [0, 0, 1, 1], [], []>} : vector<2x16xf32>, vector<16x48xf32>, vector<2x48xf32> -> vector<2x48xf32>
    %cst_28 = arith.constant dense<0.000000e+00> : vector<2x48xf32>
    %23 = tpu.matmul %21, %10, %cst_28 {dimension_numbers = #tpu.dot_dimension_numbers<[1], [0], [0], [1], [0, 0, 1, 1], [], []>} : vector<2x16xf32>, vector<16x48xf32>, vector<2x48xf32> -> vector<2x48xf32>
    %24 = vector.extract_strided_slice %16 {offsets = [0, 0], sizes = [2, 48], strides = [1, 1]} : vector<16x48xf32> to vector<2x48xf32>
    %25 = vector.extract_strided_slice %19 {offsets = [14, 0], sizes = [2, 48], strides = [1, 1]} : vector<16x48xf32> to vector<2x48xf32>
    %26 = vector.extract_strided_slice %24 {offsets = [0, 0], sizes = [2, 16], strides = [1, 1]} : vector<2x48xf32> to vector<2x16xf32>
    %27 = vector.extract_strided_slice %22 {offsets = [0, 0], sizes = [2, 16], strides = [1, 1]} : vector<2x48xf32> to vector<2x16xf32>
    %28 = arith.addf %26, %27 : vector<2x16xf32>
    %29 = arith.negf %28 : vector<2x16xf32>
    %30 = math.exp %29 : vector<2x16xf32>
    %cst_29 = arith.constant 1.000000e+00 : f32
    %31 = vector.broadcast %cst_29 : f32 to vector<2x16xf32>
    %32 = arith.addf %31, %30 : vector<2x16xf32>
    %33 = arith.divf %31, %32 : vector<2x16xf32>
    %34 = vector.extract_strided_slice %24 {offsets = [0, 16], sizes = [2, 16], strides = [1, 1]} : vector<2x48xf32> to vector<2x16xf32>
    %35 = vector.extract_strided_slice %22 {offsets = [0, 16], sizes = [2, 16], strides = [1, 1]} : vector<2x48xf32> to vector<2x16xf32>
    %36 = arith.addf %34, %35 : vector<2x16xf32>
    %37 = arith.negf %36 : vector<2x16xf32>
    %38 = math.exp %37 : vector<2x16xf32>
    %cst_30 = arith.constant 1.000000e+00 : f32
    %39 = vector.broadcast %cst_30 : f32 to vector<2x16xf32>
    %40 = arith.addf %39, %38 : vector<2x16xf32>
    %41 = arith.divf %39, %40 : vector<2x16xf32>
    %42 = vector.extract_strided_slice %24 {offsets = [0, 32], sizes = [2, 16], strides = [1, 1]} : vector<2x48xf32> to vector<2x16xf32>
    %43 = vector.extract_strided_slice %22 {offsets = [0, 32], sizes = [2, 16], strides = [1, 1]} : vector<2x48xf32> to vector<2x16xf32>
    %44 = vector.broadcast %8 : vector<1x16xf32> to vector<2x16xf32>
    %45 = arith.addf %43, %44 : vector<2x16xf32>
    %46 = arith.mulf %33, %45 : vector<2x16xf32>
    %47 = arith.addf %42, %46 : vector<2x16xf32>
    %48 = math.tanh %47 : vector<2x16xf32>
    %49 = arith.subf %20, %48 : vector<2x16xf32>
    %50 = arith.mulf %41, %49 : vector<2x16xf32>
    %51 = arith.addf %48, %50 : vector<2x16xf32>
    %52 = vector.extract_strided_slice %25 {offsets = [0, 0], sizes = [2, 16], strides = [1, 1]} : vector<2x48xf32> to vector<2x16xf32>
    %53 = vector.extract_strided_slice %23 {offsets = [0, 0], sizes = [2, 16], strides = [1, 1]} : vector<2x48xf32> to vector<2x16xf32>
    %54 = arith.addf %52, %53 : vector<2x16xf32>
    %55 = arith.negf %54 : vector<2x16xf32>
    %56 = math.exp %55 : vector<2x16xf32>
    %cst_31 = arith.constant 1.000000e+00 : f32
    %57 = vector.broadcast %cst_31 : f32 to vector<2x16xf32>
    %58 = arith.addf %57, %56 : vector<2x16xf32>
    %59 = arith.divf %57, %58 : vector<2x16xf32>
    %60 = vector.extract_strided_slice %25 {offsets = [0, 16], sizes = [2, 16], strides = [1, 1]} : vector<2x48xf32> to vector<2x16xf32>
    %61 = vector.extract_strided_slice %23 {offsets = [0, 16], sizes = [2, 16], strides = [1, 1]} : vector<2x48xf32> to vector<2x16xf32>
    %62 = arith.addf %60, %61 : vector<2x16xf32>
    %63 = arith.negf %62 : vector<2x16xf32>
    %64 = math.exp %63 : vector<2x16xf32>
    %cst_32 = arith.constant 1.000000e+00 : f32
    %65 = vector.broadcast %cst_32 : f32 to vector<2x16xf32>
    %66 = arith.addf %65, %64 : vector<2x16xf32>
    %67 = arith.divf %65, %66 : vector<2x16xf32>
    %68 = vector.extract_strided_slice %25 {offsets = [0, 32], sizes = [2, 16], strides = [1, 1]} : vector<2x48xf32> to vector<2x16xf32>
    %69 = vector.extract_strided_slice %23 {offsets = [0, 32], sizes = [2, 16], strides = [1, 1]} : vector<2x48xf32> to vector<2x16xf32>
    %70 = vector.broadcast %12 : vector<1x16xf32> to vector<2x16xf32>
    %71 = arith.addf %69, %70 : vector<2x16xf32>
    %72 = arith.mulf %59, %71 : vector<2x16xf32>
    %73 = arith.addf %68, %72 : vector<2x16xf32>
    %74 = math.tanh %73 : vector<2x16xf32>
    %75 = arith.subf %21, %74 : vector<2x16xf32>
    %76 = arith.mulf %67, %75 : vector<2x16xf32>
    %77 = arith.addf %74, %76 : vector<2x16xf32>
    %c0_33 = arith.constant 0 : index
    %c0_34 = arith.constant 0 : index
    %78 = vector.load %arg21[%c0_33, %c0_34] : memref<16x32xf32, #tpu.memory_space<vmem>>, vector<2x16xf32>
    tpu.vector_store %arg21[%c0_33, %c0_34], %51 {strides = array<i32>} : memref<16x32xf32, #tpu.memory_space<vmem>>, vector<2x16xf32>,
    %c14 = arith.constant 14 : index
    %c16 = arith.constant 16 : index
    %79 = vector.load %arg21[%c14, %c16] : memref<16x32xf32, #tpu.memory_space<vmem>>, vector<2x16xf32>
    tpu.vector_store %arg21[%c14, %c16], %77 {strides = array<i32>} : memref<16x32xf32, #tpu.memory_space<vmem>>, vector<2x16xf32>,
    %cst_35 = arith.constant dense<0.000000e+00> : vector<2x48xf32>
    %80 = tpu.matmul %51, %6, %cst_35 {dimension_numbers = #tpu.dot_dimension_numbers<[1], [0], [0], [1], [0, 0, 1, 1], [], []>} : vector<2x16xf32>, vector<16x48xf32>, vector<2x48xf32> -> vector<2x48xf32>
    %cst_36 = arith.constant dense<0.000000e+00> : vector<2x48xf32>
    %81 = tpu.matmul %77, %10, %cst_36 {dimension_numbers = #tpu.dot_dimension_numbers<[1], [0], [0], [1], [0, 0, 1, 1], [], []>} : vector<2x16xf32>, vector<16x48xf32>, vector<2x48xf32> -> vector<2x48xf32>
    %82 = vector.extract_strided_slice %16 {offsets = [2, 0], sizes = [2, 48], strides = [1, 1]} : vector<16x48xf32> to vector<2x48xf32>
    %83 = vector.extract_strided_slice %19 {offsets = [12, 0], sizes = [2, 48], strides = [1, 1]} : vector<16x48xf32> to vector<2x48xf32>
    %84 = vector.extract_strided_slice %82 {offsets = [0, 0], sizes = [2, 16], strides = [1, 1]} : vector<2x48xf32> to vector<2x16xf32>
    %85 = vector.extract_strided_slice %80 {offsets = [0, 0], sizes = [2, 16], strides = [1, 1]} : vector<2x48xf32> to vector<2x16xf32>
    %86 = arith.addf %84, %85 : vector<2x16xf32>
    %87 = arith.negf %86 : vector<2x16xf32>
    %88 = math.exp %87 : vector<2x16xf32>
    %cst_37 = arith.constant 1.000000e+00 : f32
    %89 = vector.broadcast %cst_37 : f32 to vector<2x16xf32>
    %90 = arith.addf %89, %88 : vector<2x16xf32>
    %91 = arith.divf %89, %90 : vector<2x16xf32>
    %92 = vector.extract_strided_slice %82 {offsets = [0, 16], sizes = [2, 16], strides = [1, 1]} : vector<2x48xf32> to vector<2x16xf32>
    %93 = vector.extract_strided_slice %80 {offsets = [0, 16], sizes = [2, 16], strides = [1, 1]} : vector<2x48xf32> to vector<2x16xf32>
    %94 = arith.addf %92, %93 : vector<2x16xf32>
    %95 = arith.negf %94 : vector<2x16xf32>
    %96 = math.exp %95 : vector<2x16xf32>
    %cst_38 = arith.constant 1.000000e+00 : f32
    %97 = vector.broadcast %cst_38 : f32 to vector<2x16xf32>
    %98 = arith.addf %97, %96 : vector<2x16xf32>
    %99 = arith.divf %97, %98 : vector<2x16xf32>
    %100 = vector.extract_strided_slice %82 {offsets = [0, 32], sizes = [2, 16], strides = [1, 1]} : vector<2x48xf32> to vector<2x16xf32>
    %101 = vector.extract_strided_slice %80 {offsets = [0, 32], sizes = [2, 16], strides = [1, 1]} : vector<2x48xf32> to vector<2x16xf32>
    %102 = vector.broadcast %8 : vector<1x16xf32> to vector<2x16xf32>
    %103 = arith.addf %101, %102 : vector<2x16xf32>
    %104 = arith.mulf %91, %103 : vector<2x16xf32>
    %105 = arith.addf %100, %104 : vector<2x16xf32>
    %106 = math.tanh %105 : vector<2x16xf32>
    %107 = arith.subf %51, %106 : vector<2x16xf32>
    %108 = arith.mulf %99, %107 : vector<2x16xf32>
    %109 = arith.addf %106, %108 : vector<2x16xf32>
    %110 = vector.extract_strided_slice %83 {offsets = [0, 0], sizes = [2, 16], strides = [1, 1]} : vector<2x48xf32> to vector<2x16xf32>
    %111 = vector.extract_strided_slice %81 {offsets = [0, 0], sizes = [2, 16], strides = [1, 1]} : vector<2x48xf32> to vector<2x16xf32>
    %112 = arith.addf %110, %111 : vector<2x16xf32>
    %113 = arith.negf %112 : vector<2x16xf32>
    %114 = math.exp %113 : vector<2x16xf32>
    %cst_39 = arith.constant 1.000000e+00 : f32
    %115 = vector.broadcast %cst_39 : f32 to vector<2x16xf32>
    %116 = arith.addf %115, %114 : vector<2x16xf32>
    %117 = arith.divf %115, %116 : vector<2x16xf32>
    %118 = vector.extract_strided_slice %83 {offsets = [0, 16], sizes = [2, 16], strides = [1, 1]} : vector<2x48xf32> to vector<2x16xf32>
    %119 = vector.extract_strided_slice %81 {offsets = [0, 16], sizes = [2, 16], strides = [1, 1]} : vector<2x48xf32> to vector<2x16xf32>
    %120 = arith.addf %118, %119 : vector<2x16xf32>
    %121 = arith.negf %120 : vector<2x16xf32>
    %122 = math.exp %121 : vector<2x16xf32>
    %cst_40 = arith.constant 1.000000e+00 : f32
    %123 = vector.broadcast %cst_40 : f32 to vector<2x16xf32>
    %124 = arith.addf %123, %122 : vector<2x16xf32>
    %125 = arith.divf %123, %124 : vector<2x16xf32>
    %126 = vector.extract_strided_slice %83 {offsets = [0, 32], sizes = [2, 16], strides = [1, 1]} : vector<2x48xf32> to vector<2x16xf32>
    %127 = vector.extract_strided_slice %81 {offsets = [0, 32], sizes = [2, 16], strides = [1, 1]} : vector<2x48xf32> to vector<2x16xf32>
    %128 = vector.broadcast %12 : vector<1x16xf32> to vector<2x16xf32>
    %129 = arith.addf %127, %128 : vector<2x16xf32>
    %130 = arith.mulf %117, %129 : vector<2x16xf32>
    %131 = arith.addf %126, %130 : vector<2x16xf32>
    %132 = math.tanh %131 : vector<2x16xf32>
    %133 = arith.subf %77, %132 : vector<2x16xf32>
    %134 = arith.mulf %125, %133 : vector<2x16xf32>
    %135 = arith.addf %132, %134 : vector<2x16xf32>
    %c2 = arith.constant 2 : index
    %c0_41 = arith.constant 0 : index
    %136 = vector.load %arg21[%c2, %c0_41] : memref<16x32xf32, #tpu.memory_space<vmem>>, vector<2x16xf32>
    tpu.vector_store %arg21[%c2, %c0_41], %109 {strides = array<i32>} : memref<16x32xf32, #tpu.memory_space<vmem>>, vector<2x16xf32>,
    %c12 = arith.constant 12 : index
    %c16_42 = arith.constant 16 : index
    %137 = vector.load %arg21[%c12, %c16_42] : memref<16x32xf32, #tpu.memory_space<vmem>>, vector<2x16xf32>
    tpu.vector_store %arg21[%c12, %c16_42], %135 {strides = array<i32>} : memref<16x32xf32, #tpu.memory_space<vmem>>, vector<2x16xf32>,
    %cst_43 = arith.constant dense<0.000000e+00> : vector<2x48xf32>
    %138 = tpu.matmul %109, %6, %cst_43 {dimension_numbers = #tpu.dot_dimension_numbers<[1], [0], [0], [1], [0, 0, 1, 1], [], []>} : vector<2x16xf32>, vector<16x48xf32>, vector<2x48xf32> -> vector<2x48xf32>
    %cst_44 = arith.constant dense<0.000000e+00> : vector<2x48xf32>
    %139 = tpu.matmul %135, %10, %cst_44 {dimension_numbers = #tpu.dot_dimension_numbers<[1], [0], [0], [1], [0, 0, 1, 1], [], []>} : vector<2x16xf32>, vector<16x48xf32>, vector<2x48xf32> -> vector<2x48xf32>
    %140 = vector.extract_strided_slice %16 {offsets = [4, 0], sizes = [2, 48], strides = [1, 1]} : vector<16x48xf32> to vector<2x48xf32>
    %141 = vector.extract_strided_slice %19 {offsets = [10, 0], sizes = [2, 48], strides = [1, 1]} : vector<16x48xf32> to vector<2x48xf32>
    %142 = vector.extract_strided_slice %140 {offsets = [0, 0], sizes = [2, 16], strides = [1, 1]} : vector<2x48xf32> to vector<2x16xf32>
    %143 = vector.extract_strided_slice %138 {offsets = [0, 0], sizes = [2, 16], strides = [1, 1]} : vector<2x48xf32> to vector<2x16xf32>
    %144 = arith.addf %142, %143 : vector<2x16xf32>
    %145 = arith.negf %144 : vector<2x16xf32>
    %146 = math.exp %145 : vector<2x16xf32>
    %cst_45 = arith.constant 1.000000e+00 : f32
    %147 = vector.broadcast %cst_45 : f32 to vector<2x16xf32>
    %148 = arith.addf %147, %146 : vector<2x16xf32>
    %149 = arith.divf %147, %148 : vector<2x16xf32>
    %150 = vector.extract_strided_slice %140 {offsets = [0, 16], sizes = [2, 16], strides = [1, 1]} : vector<2x48xf32> to vector<2x16xf32>
    %151 = vector.extract_strided_slice %138 {offsets = [0, 16], sizes = [2, 16], strides = [1, 1]} : vector<2x48xf32> to vector<2x16xf32>
    %152 = arith.addf %150, %151 : vector<2x16xf32>
    %153 = arith.negf %152 : vector<2x16xf32>
    %154 = math.exp %153 : vector<2x16xf32>
    %cst_46 = arith.constant 1.000000e+00 : f32
    %155 = vector.broadcast %cst_46 : f32 to vector<2x16xf32>
    %156 = arith.addf %155, %154 : vector<2x16xf32>
    %157 = arith.divf %155, %156 : vector<2x16xf32>
    %158 = vector.extract_strided_slice %140 {offsets = [0, 32], sizes = [2, 16], strides = [1, 1]} : vector<2x48xf32> to vector<2x16xf32>
    %159 = vector.extract_strided_slice %138 {offsets = [0, 32], sizes = [2, 16], strides = [1, 1]} : vector<2x48xf32> to vector<2x16xf32>
    %160 = vector.broadcast %8 : vector<1x16xf32> to vector<2x16xf32>
    %161 = arith.addf %159, %160 : vector<2x16xf32>
    %162 = arith.mulf %149, %161 : vector<2x16xf32>
    %163 = arith.addf %158, %162 : vector<2x16xf32>
    %164 = math.tanh %163 : vector<2x16xf32>
    %165 = arith.subf %109, %164 : vector<2x16xf32>
    %166 = arith.mulf %157, %165 : vector<2x16xf32>
    %167 = arith.addf %164, %166 : vector<2x16xf32>
    %168 = vector.extract_strided_slice %141 {offsets = [0, 0], sizes = [2, 16], strides = [1, 1]} : vector<2x48xf32> to vector<2x16xf32>
    %169 = vector.extract_strided_slice %139 {offsets = [0, 0], sizes = [2, 16], strides = [1, 1]} : vector<2x48xf32> to vector<2x16xf32>
    %170 = arith.addf %168, %169 : vector<2x16xf32>
    %171 = arith.negf %170 : vector<2x16xf32>
    %172 = math.exp %171 : vector<2x16xf32>
    %cst_47 = arith.constant 1.000000e+00 : f32
    %173 = vector.broadcast %cst_47 : f32 to vector<2x16xf32>
    %174 = arith.addf %173, %172 : vector<2x16xf32>
    %175 = arith.divf %173, %174 : vector<2x16xf32>
    %176 = vector.extract_strided_slice %141 {offsets = [0, 16], sizes = [2, 16], strides = [1, 1]} : vector<2x48xf32> to vector<2x16xf32>
    %177 = vector.extract_strided_slice %139 {offsets = [0, 16], sizes = [2, 16], strides = [1, 1]} : vector<2x48xf32> to vector<2x16xf32>
    %178 = arith.addf %176, %177 : vector<2x16xf32>
    %179 = arith.negf %178 : vector<2x16xf32>
    %180 = math.exp %179 : vector<2x16xf32>
    %cst_48 = arith.constant 1.000000e+00 : f32
    %181 = vector.broadcast %cst_48 : f32 to vector<2x16xf32>
    %182 = arith.addf %181, %180 : vector<2x16xf32>
    %183 = arith.divf %181, %182 : vector<2x16xf32>
    %184 = vector.extract_strided_slice %141 {offsets = [0, 32], sizes = [2, 16], strides = [1, 1]} : vector<2x48xf32> to vector<2x16xf32>
    %185 = vector.extract_strided_slice %139 {offsets = [0, 32], sizes = [2, 16], strides = [1, 1]} : vector<2x48xf32> to vector<2x16xf32>
    %186 = vector.broadcast %12 : vector<1x16xf32> to vector<2x16xf32>
    %187 = arith.addf %185, %186 : vector<2x16xf32>
    %188 = arith.mulf %175, %187 : vector<2x16xf32>
    %189 = arith.addf %184, %188 : vector<2x16xf32>
    %190 = math.tanh %189 : vector<2x16xf32>
    %191 = arith.subf %135, %190 : vector<2x16xf32>
    %192 = arith.mulf %183, %191 : vector<2x16xf32>
    %193 = arith.addf %190, %192 : vector<2x16xf32>
    %c4 = arith.constant 4 : index
    %c0_49 = arith.constant 0 : index
    %194 = vector.load %arg21[%c4, %c0_49] : memref<16x32xf32, #tpu.memory_space<vmem>>, vector<2x16xf32>
    tpu.vector_store %arg21[%c4, %c0_49], %167 {strides = array<i32>} : memref<16x32xf32, #tpu.memory_space<vmem>>, vector<2x16xf32>,
    %c10 = arith.constant 10 : index
    %c16_50 = arith.constant 16 : index
    %195 = vector.load %arg21[%c10, %c16_50] : memref<16x32xf32, #tpu.memory_space<vmem>>, vector<2x16xf32>
    tpu.vector_store %arg21[%c10, %c16_50], %193 {strides = array<i32>} : memref<16x32xf32, #tpu.memory_space<vmem>>, vector<2x16xf32>,
    %cst_51 = arith.constant dense<0.000000e+00> : vector<2x48xf32>
    %196 = tpu.matmul %167, %6, %cst_51 {dimension_numbers = #tpu.dot_dimension_numbers<[1], [0], [0], [1], [0, 0, 1, 1], [], []>} : vector<2x16xf32>, vector<16x48xf32>, vector<2x48xf32> -> vector<2x48xf32>
    %cst_52 = arith.constant dense<0.000000e+00> : vector<2x48xf32>
    %197 = tpu.matmul %193, %10, %cst_52 {dimension_numbers = #tpu.dot_dimension_numbers<[1], [0], [0], [1], [0, 0, 1, 1], [], []>} : vector<2x16xf32>, vector<16x48xf32>, vector<2x48xf32> -> vector<2x48xf32>
    %198 = vector.extract_strided_slice %16 {offsets = [6, 0], sizes = [2, 48], strides = [1, 1]} : vector<16x48xf32> to vector<2x48xf32>
    %199 = vector.extract_strided_slice %19 {offsets = [8, 0], sizes = [2, 48], strides = [1, 1]} : vector<16x48xf32> to vector<2x48xf32>
    %200 = vector.extract_strided_slice %198 {offsets = [0, 0], sizes = [2, 16], strides = [1, 1]} : vector<2x48xf32> to vector<2x16xf32>
    %201 = vector.extract_strided_slice %196 {offsets = [0, 0], sizes = [2, 16], strides = [1, 1]} : vector<2x48xf32> to vector<2x16xf32>
    %202 = arith.addf %200, %201 : vector<2x16xf32>
    %203 = arith.negf %202 : vector<2x16xf32>
    %204 = math.exp %203 : vector<2x16xf32>
    %cst_53 = arith.constant 1.000000e+00 : f32
    %205 = vector.broadcast %cst_53 : f32 to vector<2x16xf32>
    %206 = arith.addf %205, %204 : vector<2x16xf32>
    %207 = arith.divf %205, %206 : vector<2x16xf32>
    %208 = vector.extract_strided_slice %198 {offsets = [0, 16], sizes = [2, 16], strides = [1, 1]} : vector<2x48xf32> to vector<2x16xf32>
    %209 = vector.extract_strided_slice %196 {offsets = [0, 16], sizes = [2, 16], strides = [1, 1]} : vector<2x48xf32> to vector<2x16xf32>
    %210 = arith.addf %208, %209 : vector<2x16xf32>
    %211 = arith.negf %210 : vector<2x16xf32>
    %212 = math.exp %211 : vector<2x16xf32>
    %cst_54 = arith.constant 1.000000e+00 : f32
    %213 = vector.broadcast %cst_54 : f32 to vector<2x16xf32>
    %214 = arith.addf %213, %212 : vector<2x16xf32>
    %215 = arith.divf %213, %214 : vector<2x16xf32>
    %216 = vector.extract_strided_slice %198 {offsets = [0, 32], sizes = [2, 16], strides = [1, 1]} : vector<2x48xf32> to vector<2x16xf32>
    %217 = vector.extract_strided_slice %196 {offsets = [0, 32], sizes = [2, 16], strides = [1, 1]} : vector<2x48xf32> to vector<2x16xf32>
    %218 = vector.broadcast %8 : vector<1x16xf32> to vector<2x16xf32>
    %219 = arith.addf %217, %218 : vector<2x16xf32>
    %220 = arith.mulf %207, %219 : vector<2x16xf32>
    %221 = arith.addf %216, %220 : vector<2x16xf32>
    %222 = math.tanh %221 : vector<2x16xf32>
    %223 = arith.subf %167, %222 : vector<2x16xf32>
    %224 = arith.mulf %215, %223 : vector<2x16xf32>
    %225 = arith.addf %222, %224 : vector<2x16xf32>
    %226 = vector.extract_strided_slice %199 {offsets = [0, 0], sizes = [2, 16], strides = [1, 1]} : vector<2x48xf32> to vector<2x16xf32>
    %227 = vector.extract_strided_slice %197 {offsets = [0, 0], sizes = [2, 16], strides = [1, 1]} : vector<2x48xf32> to vector<2x16xf32>
    %228 = arith.addf %226, %227 : vector<2x16xf32>
    %229 = arith.negf %228 : vector<2x16xf32>
    %230 = math.exp %229 : vector<2x16xf32>
    %cst_55 = arith.constant 1.000000e+00 : f32
    %231 = vector.broadcast %cst_55 : f32 to vector<2x16xf32>
    %232 = arith.addf %231, %230 : vector<2x16xf32>
    %233 = arith.divf %231, %232 : vector<2x16xf32>
    %234 = vector.extract_strided_slice %199 {offsets = [0, 16], sizes = [2, 16], strides = [1, 1]} : vector<2x48xf32> to vector<2x16xf32>
    %235 = vector.extract_strided_slice %197 {offsets = [0, 16], sizes = [2, 16], strides = [1, 1]} : vector<2x48xf32> to vector<2x16xf32>
    %236 = arith.addf %234, %235 : vector<2x16xf32>
    %237 = arith.negf %236 : vector<2x16xf32>
    %238 = math.exp %237 : vector<2x16xf32>
    %cst_56 = arith.constant 1.000000e+00 : f32
    %239 = vector.broadcast %cst_56 : f32 to vector<2x16xf32>
    %240 = arith.addf %239, %238 : vector<2x16xf32>
    %241 = arith.divf %239, %240 : vector<2x16xf32>
    %242 = vector.extract_strided_slice %199 {offsets = [0, 32], sizes = [2, 16], strides = [1, 1]} : vector<2x48xf32> to vector<2x16xf32>
    %243 = vector.extract_strided_slice %197 {offsets = [0, 32], sizes = [2, 16], strides = [1, 1]} : vector<2x48xf32> to vector<2x16xf32>
    %244 = vector.broadcast %12 : vector<1x16xf32> to vector<2x16xf32>
    %245 = arith.addf %243, %244 : vector<2x16xf32>
    %246 = arith.mulf %233, %245 : vector<2x16xf32>
    %247 = arith.addf %242, %246 : vector<2x16xf32>
    %248 = math.tanh %247 : vector<2x16xf32>
    %249 = arith.subf %193, %248 : vector<2x16xf32>
    %250 = arith.mulf %241, %249 : vector<2x16xf32>
    %251 = arith.addf %248, %250 : vector<2x16xf32>
    %c6 = arith.constant 6 : index
    %c0_57 = arith.constant 0 : index
    %252 = vector.load %arg21[%c6, %c0_57] : memref<16x32xf32, #tpu.memory_space<vmem>>, vector<2x16xf32>
    tpu.vector_store %arg21[%c6, %c0_57], %225 {strides = array<i32>} : memref<16x32xf32, #tpu.memory_space<vmem>>, vector<2x16xf32>,
    %c8 = arith.constant 8 : index
    %c16_58 = arith.constant 16 : index
    %253 = vector.load %arg21[%c8, %c16_58] : memref<16x32xf32, #tpu.memory_space<vmem>>, vector<2x16xf32>
    tpu.vector_store %arg21[%c8, %c16_58], %251 {strides = array<i32>} : memref<16x32xf32, #tpu.memory_space<vmem>>, vector<2x16xf32>,
    %cst_59 = arith.constant dense<0.000000e+00> : vector<2x48xf32>
    %254 = tpu.matmul %225, %6, %cst_59 {dimension_numbers = #tpu.dot_dimension_numbers<[1], [0], [0], [1], [0, 0, 1, 1], [], []>} : vector<2x16xf32>, vector<16x48xf32>, vector<2x48xf32> -> vector<2x48xf32>
    %cst_60 = arith.constant dense<0.000000e+00> : vector<2x48xf32>
    %255 = tpu.matmul %251, %10, %cst_60 {dimension_numbers = #tpu.dot_dimension_numbers<[1], [0], [0], [1], [0, 0, 1, 1], [], []>} : vector<2x16xf32>, vector<16x48xf32>, vector<2x48xf32> -> vector<2x48xf32>
    %256 = vector.extract_strided_slice %16 {offsets = [8, 0], sizes = [2, 48], strides = [1, 1]} : vector<16x48xf32> to vector<2x48xf32>
    %257 = vector.extract_strided_slice %19 {offsets = [6, 0], sizes = [2, 48], strides = [1, 1]} : vector<16x48xf32> to vector<2x48xf32>
    %258 = vector.extract_strided_slice %256 {offsets = [0, 0], sizes = [2, 16], strides = [1, 1]} : vector<2x48xf32> to vector<2x16xf32>
    %259 = vector.extract_strided_slice %254 {offsets = [0, 0], sizes = [2, 16], strides = [1, 1]} : vector<2x48xf32> to vector<2x16xf32>
    %260 = arith.addf %258, %259 : vector<2x16xf32>
    %261 = arith.negf %260 : vector<2x16xf32>
    %262 = math.exp %261 : vector<2x16xf32>
    %cst_61 = arith.constant 1.000000e+00 : f32
    %263 = vector.broadcast %cst_61 : f32 to vector<2x16xf32>
    %264 = arith.addf %263, %262 : vector<2x16xf32>
    %265 = arith.divf %263, %264 : vector<2x16xf32>
    %266 = vector.extract_strided_slice %256 {offsets = [0, 16], sizes = [2, 16], strides = [1, 1]} : vector<2x48xf32> to vector<2x16xf32>
    %267 = vector.extract_strided_slice %254 {offsets = [0, 16], sizes = [2, 16], strides = [1, 1]} : vector<2x48xf32> to vector<2x16xf32>
    %268 = arith.addf %266, %267 : vector<2x16xf32>
    %269 = arith.negf %268 : vector<2x16xf32>
    %270 = math.exp %269 : vector<2x16xf32>
    %cst_62 = arith.constant 1.000000e+00 : f32
    %271 = vector.broadcast %cst_62 : f32 to vector<2x16xf32>
    %272 = arith.addf %271, %270 : vector<2x16xf32>
    %273 = arith.divf %271, %272 : vector<2x16xf32>
    %274 = vector.extract_strided_slice %256 {offsets = [0, 32], sizes = [2, 16], strides = [1, 1]} : vector<2x48xf32> to vector<2x16xf32>
    %275 = vector.extract_strided_slice %254 {offsets = [0, 32], sizes = [2, 16], strides = [1, 1]} : vector<2x48xf32> to vector<2x16xf32>
    %276 = vector.broadcast %8 : vector<1x16xf32> to vector<2x16xf32>
    %277 = arith.addf %275, %276 : vector<2x16xf32>
    %278 = arith.mulf %265, %277 : vector<2x16xf32>
    %279 = arith.addf %274, %278 : vector<2x16xf32>
    %280 = math.tanh %279 : vector<2x16xf32>
    %281 = arith.subf %225, %280 : vector<2x16xf32>
    %282 = arith.mulf %273, %281 : vector<2x16xf32>
    %283 = arith.addf %280, %282 : vector<2x16xf32>
    %284 = vector.extract_strided_slice %257 {offsets = [0, 0], sizes = [2, 16], strides = [1, 1]} : vector<2x48xf32> to vector<2x16xf32>
    %285 = vector.extract_strided_slice %255 {offsets = [0, 0], sizes = [2, 16], strides = [1, 1]} : vector<2x48xf32> to vector<2x16xf32>
    %286 = arith.addf %284, %285 : vector<2x16xf32>
    %287 = arith.negf %286 : vector<2x16xf32>
    %288 = math.exp %287 : vector<2x16xf32>
    %cst_63 = arith.constant 1.000000e+00 : f32
    %289 = vector.broadcast %cst_63 : f32 to vector<2x16xf32>
    %290 = arith.addf %289, %288 : vector<2x16xf32>
    %291 = arith.divf %289, %290 : vector<2x16xf32>
    %292 = vector.extract_strided_slice %257 {offsets = [0, 16], sizes = [2, 16], strides = [1, 1]} : vector<2x48xf32> to vector<2x16xf32>
    %293 = vector.extract_strided_slice %255 {offsets = [0, 16], sizes = [2, 16], strides = [1, 1]} : vector<2x48xf32> to vector<2x16xf32>
    %294 = arith.addf %292, %293 : vector<2x16xf32>
    %295 = arith.negf %294 : vector<2x16xf32>
    %296 = math.exp %295 : vector<2x16xf32>
    %cst_64 = arith.constant 1.000000e+00 : f32
    %297 = vector.broadcast %cst_64 : f32 to vector<2x16xf32>
    %298 = arith.addf %297, %296 : vector<2x16xf32>
    %299 = arith.divf %297, %298 : vector<2x16xf32>
    %300 = vector.extract_strided_slice %257 {offsets = [0, 32], sizes = [2, 16], strides = [1, 1]} : vector<2x48xf32> to vector<2x16xf32>
    %301 = vector.extract_strided_slice %255 {offsets = [0, 32], sizes = [2, 16], strides = [1, 1]} : vector<2x48xf32> to vector<2x16xf32>
    %302 = vector.broadcast %12 : vector<1x16xf32> to vector<2x16xf32>
    %303 = arith.addf %301, %302 : vector<2x16xf32>
    %304 = arith.mulf %291, %303 : vector<2x16xf32>
    %305 = arith.addf %300, %304 : vector<2x16xf32>
    %306 = math.tanh %305 : vector<2x16xf32>
    %307 = arith.subf %251, %306 : vector<2x16xf32>
    %308 = arith.mulf %299, %307 : vector<2x16xf32>
    %309 = arith.addf %306, %308 : vector<2x16xf32>
    %c8_65 = arith.constant 8 : index
    %c0_66 = arith.constant 0 : index
    %310 = vector.load %arg21[%c8_65, %c0_66] : memref<16x32xf32, #tpu.memory_space<vmem>>, vector<2x16xf32>
    tpu.vector_store %arg21[%c8_65, %c0_66], %283 {strides = array<i32>} : memref<16x32xf32, #tpu.memory_space<vmem>>, vector<2x16xf32>,
    %c6_67 = arith.constant 6 : index
    %c16_68 = arith.constant 16 : index
    %311 = vector.load %arg21[%c6_67, %c16_68] : memref<16x32xf32, #tpu.memory_space<vmem>>, vector<2x16xf32>
    tpu.vector_store %arg21[%c6_67, %c16_68], %309 {strides = array<i32>} : memref<16x32xf32, #tpu.memory_space<vmem>>, vector<2x16xf32>,
    %cst_69 = arith.constant dense<0.000000e+00> : vector<2x48xf32>
    %312 = tpu.matmul %283, %6, %cst_69 {dimension_numbers = #tpu.dot_dimension_numbers<[1], [0], [0], [1], [0, 0, 1, 1], [], []>} : vector<2x16xf32>, vector<16x48xf32>, vector<2x48xf32> -> vector<2x48xf32>
    %cst_70 = arith.constant dense<0.000000e+00> : vector<2x48xf32>
    %313 = tpu.matmul %309, %10, %cst_70 {dimension_numbers = #tpu.dot_dimension_numbers<[1], [0], [0], [1], [0, 0, 1, 1], [], []>} : vector<2x16xf32>, vector<16x48xf32>, vector<2x48xf32> -> vector<2x48xf32>
    %314 = vector.extract_strided_slice %16 {offsets = [10, 0], sizes = [2, 48], strides = [1, 1]} : vector<16x48xf32> to vector<2x48xf32>
    %315 = vector.extract_strided_slice %19 {offsets = [4, 0], sizes = [2, 48], strides = [1, 1]} : vector<16x48xf32> to vector<2x48xf32>
    %316 = vector.extract_strided_slice %314 {offsets = [0, 0], sizes = [2, 16], strides = [1, 1]} : vector<2x48xf32> to vector<2x16xf32>
    %317 = vector.extract_strided_slice %312 {offsets = [0, 0], sizes = [2, 16], strides = [1, 1]} : vector<2x48xf32> to vector<2x16xf32>
    %318 = arith.addf %316, %317 : vector<2x16xf32>
    %319 = arith.negf %318 : vector<2x16xf32>
    %320 = math.exp %319 : vector<2x16xf32>
    %cst_71 = arith.constant 1.000000e+00 : f32
    %321 = vector.broadcast %cst_71 : f32 to vector<2x16xf32>
    %322 = arith.addf %321, %320 : vector<2x16xf32>
    %323 = arith.divf %321, %322 : vector<2x16xf32>
    %324 = vector.extract_strided_slice %314 {offsets = [0, 16], sizes = [2, 16], strides = [1, 1]} : vector<2x48xf32> to vector<2x16xf32>
    %325 = vector.extract_strided_slice %312 {offsets = [0, 16], sizes = [2, 16], strides = [1, 1]} : vector<2x48xf32> to vector<2x16xf32>
    %326 = arith.addf %324, %325 : vector<2x16xf32>
    %327 = arith.negf %326 : vector<2x16xf32>
    %328 = math.exp %327 : vector<2x16xf32>
    %cst_72 = arith.constant 1.000000e+00 : f32
    %329 = vector.broadcast %cst_72 : f32 to vector<2x16xf32>
    %330 = arith.addf %329, %328 : vector<2x16xf32>
    %331 = arith.divf %329, %330 : vector<2x16xf32>
    %332 = vector.extract_strided_slice %314 {offsets = [0, 32], sizes = [2, 16], strides = [1, 1]} : vector<2x48xf32> to vector<2x16xf32>
    %333 = vector.extract_strided_slice %312 {offsets = [0, 32], sizes = [2, 16], strides = [1, 1]} : vector<2x48xf32> to vector<2x16xf32>
    %334 = vector.broadcast %8 : vector<1x16xf32> to vector<2x16xf32>
    %335 = arith.addf %333, %334 : vector<2x16xf32>
    %336 = arith.mulf %323, %335 : vector<2x16xf32>
    %337 = arith.addf %332, %336 : vector<2x16xf32>
    %338 = math.tanh %337 : vector<2x16xf32>
    %339 = arith.subf %283, %338 : vector<2x16xf32>
    %340 = arith.mulf %331, %339 : vector<2x16xf32>
    %341 = arith.addf %338, %340 : vector<2x16xf32>
    %342 = vector.extract_strided_slice %315 {offsets = [0, 0], sizes = [2, 16], strides = [1, 1]} : vector<2x48xf32> to vector<2x16xf32>
    %343 = vector.extract_strided_slice %313 {offsets = [0, 0], sizes = [2, 16], strides = [1, 1]} : vector<2x48xf32> to vector<2x16xf32>
    %344 = arith.addf %342, %343 : vector<2x16xf32>
    %345 = arith.negf %344 : vector<2x16xf32>
    %346 = math.exp %345 : vector<2x16xf32>
    %cst_73 = arith.constant 1.000000e+00 : f32
    %347 = vector.broadcast %cst_73 : f32 to vector<2x16xf32>
    %348 = arith.addf %347, %346 : vector<2x16xf32>
    %349 = arith.divf %347, %348 : vector<2x16xf32>
    %350 = vector.extract_strided_slice %315 {offsets = [0, 16], sizes = [2, 16], strides = [1, 1]} : vector<2x48xf32> to vector<2x16xf32>
    %351 = vector.extract_strided_slice %313 {offsets = [0, 16], sizes = [2, 16], strides = [1, 1]} : vector<2x48xf32> to vector<2x16xf32>
    %352 = arith.addf %350, %351 : vector<2x16xf32>
    %353 = arith.negf %352 : vector<2x16xf32>
    %354 = math.exp %353 : vector<2x16xf32>
    %cst_74 = arith.constant 1.000000e+00 : f32
    %355 = vector.broadcast %cst_74 : f32 to vector<2x16xf32>
    %356 = arith.addf %355, %354 : vector<2x16xf32>
    %357 = arith.divf %355, %356 : vector<2x16xf32>
    %358 = vector.extract_strided_slice %315 {offsets = [0, 32], sizes = [2, 16], strides = [1, 1]} : vector<2x48xf32> to vector<2x16xf32>
    %359 = vector.extract_strided_slice %313 {offsets = [0, 32], sizes = [2, 16], strides = [1, 1]} : vector<2x48xf32> to vector<2x16xf32>
    %360 = vector.broadcast %12 : vector<1x16xf32> to vector<2x16xf32>
    %361 = arith.addf %359, %360 : vector<2x16xf32>
    %362 = arith.mulf %349, %361 : vector<2x16xf32>
    %363 = arith.addf %358, %362 : vector<2x16xf32>
    %364 = math.tanh %363 : vector<2x16xf32>
    %365 = arith.subf %309, %364 : vector<2x16xf32>
    %366 = arith.mulf %357, %365 : vector<2x16xf32>
    %367 = arith.addf %364, %366 : vector<2x16xf32>
    %c10_75 = arith.constant 10 : index
    %c0_76 = arith.constant 0 : index
    %368 = vector.load %arg21[%c10_75, %c0_76] : memref<16x32xf32, #tpu.memory_space<vmem>>, vector<2x16xf32>
    tpu.vector_store %arg21[%c10_75, %c0_76], %341 {strides = array<i32>} : memref<16x32xf32, #tpu.memory_space<vmem>>, vector<2x16xf32>,
    %c4_77 = arith.constant 4 : index
    %c16_78 = arith.constant 16 : index
    %369 = vector.load %arg21[%c4_77, %c16_78] : memref<16x32xf32, #tpu.memory_space<vmem>>, vector<2x16xf32>
    tpu.vector_store %arg21[%c4_77, %c16_78], %367 {strides = array<i32>} : memref<16x32xf32, #tpu.memory_space<vmem>>, vector<2x16xf32>,
    %cst_79 = arith.constant dense<0.000000e+00> : vector<2x48xf32>
    %370 = tpu.matmul %341, %6, %cst_79 {dimension_numbers = #tpu.dot_dimension_numbers<[1], [0], [0], [1], [0, 0, 1, 1], [], []>} : vector<2x16xf32>, vector<16x48xf32>, vector<2x48xf32> -> vector<2x48xf32>
    %cst_80 = arith.constant dense<0.000000e+00> : vector<2x48xf32>
    %371 = tpu.matmul %367, %10, %cst_80 {dimension_numbers = #tpu.dot_dimension_numbers<[1], [0], [0], [1], [0, 0, 1, 1], [], []>} : vector<2x16xf32>, vector<16x48xf32>, vector<2x48xf32> -> vector<2x48xf32>
    %372 = vector.extract_strided_slice %16 {offsets = [12, 0], sizes = [2, 48], strides = [1, 1]} : vector<16x48xf32> to vector<2x48xf32>
    %373 = vector.extract_strided_slice %19 {offsets = [2, 0], sizes = [2, 48], strides = [1, 1]} : vector<16x48xf32> to vector<2x48xf32>
    %374 = vector.extract_strided_slice %372 {offsets = [0, 0], sizes = [2, 16], strides = [1, 1]} : vector<2x48xf32> to vector<2x16xf32>
    %375 = vector.extract_strided_slice %370 {offsets = [0, 0], sizes = [2, 16], strides = [1, 1]} : vector<2x48xf32> to vector<2x16xf32>
    %376 = arith.addf %374, %375 : vector<2x16xf32>
    %377 = arith.negf %376 : vector<2x16xf32>
    %378 = math.exp %377 : vector<2x16xf32>
    %cst_81 = arith.constant 1.000000e+00 : f32
    %379 = vector.broadcast %cst_81 : f32 to vector<2x16xf32>
    %380 = arith.addf %379, %378 : vector<2x16xf32>
    %381 = arith.divf %379, %380 : vector<2x16xf32>
    %382 = vector.extract_strided_slice %372 {offsets = [0, 16], sizes = [2, 16], strides = [1, 1]} : vector<2x48xf32> to vector<2x16xf32>
    %383 = vector.extract_strided_slice %370 {offsets = [0, 16], sizes = [2, 16], strides = [1, 1]} : vector<2x48xf32> to vector<2x16xf32>
    %384 = arith.addf %382, %383 : vector<2x16xf32>
    %385 = arith.negf %384 : vector<2x16xf32>
    %386 = math.exp %385 : vector<2x16xf32>
    %cst_82 = arith.constant 1.000000e+00 : f32
    %387 = vector.broadcast %cst_82 : f32 to vector<2x16xf32>
    %388 = arith.addf %387, %386 : vector<2x16xf32>
    %389 = arith.divf %387, %388 : vector<2x16xf32>
    %390 = vector.extract_strided_slice %372 {offsets = [0, 32], sizes = [2, 16], strides = [1, 1]} : vector<2x48xf32> to vector<2x16xf32>
    %391 = vector.extract_strided_slice %370 {offsets = [0, 32], sizes = [2, 16], strides = [1, 1]} : vector<2x48xf32> to vector<2x16xf32>
    %392 = vector.broadcast %8 : vector<1x16xf32> to vector<2x16xf32>
    %393 = arith.addf %391, %392 : vector<2x16xf32>
    %394 = arith.mulf %381, %393 : vector<2x16xf32>
    %395 = arith.addf %390, %394 : vector<2x16xf32>
    %396 = math.tanh %395 : vector<2x16xf32>
    %397 = arith.subf %341, %396 : vector<2x16xf32>
    %398 = arith.mulf %389, %397 : vector<2x16xf32>
    %399 = arith.addf %396, %398 : vector<2x16xf32>
    %400 = vector.extract_strided_slice %373 {offsets = [0, 0], sizes = [2, 16], strides = [1, 1]} : vector<2x48xf32> to vector<2x16xf32>
    %401 = vector.extract_strided_slice %371 {offsets = [0, 0], sizes = [2, 16], strides = [1, 1]} : vector<2x48xf32> to vector<2x16xf32>
    %402 = arith.addf %400, %401 : vector<2x16xf32>
    %403 = arith.negf %402 : vector<2x16xf32>
    %404 = math.exp %403 : vector<2x16xf32>
    %cst_83 = arith.constant 1.000000e+00 : f32
    %405 = vector.broadcast %cst_83 : f32 to vector<2x16xf32>
    %406 = arith.addf %405, %404 : vector<2x16xf32>
    %407 = arith.divf %405, %406 : vector<2x16xf32>
    %408 = vector.extract_strided_slice %373 {offsets = [0, 16], sizes = [2, 16], strides = [1, 1]} : vector<2x48xf32> to vector<2x16xf32>
    %409 = vector.extract_strided_slice %371 {offsets = [0, 16], sizes = [2, 16], strides = [1, 1]} : vector<2x48xf32> to vector<2x16xf32>
    %410 = arith.addf %408, %409 : vector<2x16xf32>
    %411 = arith.negf %410 : vector<2x16xf32>
    %412 = math.exp %411 : vector<2x16xf32>
    %cst_84 = arith.constant 1.000000e+00 : f32
    %413 = vector.broadcast %cst_84 : f32 to vector<2x16xf32>
    %414 = arith.addf %413, %412 : vector<2x16xf32>
    %415 = arith.divf %413, %414 : vector<2x16xf32>
    %416 = vector.extract_strided_slice %373 {offsets = [0, 32], sizes = [2, 16], strides = [1, 1]} : vector<2x48xf32> to vector<2x16xf32>
    %417 = vector.extract_strided_slice %371 {offsets = [0, 32], sizes = [2, 16], strides = [1, 1]} : vector<2x48xf32> to vector<2x16xf32>
    %418 = vector.broadcast %12 : vector<1x16xf32> to vector<2x16xf32>
    %419 = arith.addf %417, %418 : vector<2x16xf32>
    %420 = arith.mulf %407, %419 : vector<2x16xf32>
    %421 = arith.addf %416, %420 : vector<2x16xf32>
    %422 = math.tanh %421 : vector<2x16xf32>
    %423 = arith.subf %367, %422 : vector<2x16xf32>
    %424 = arith.mulf %415, %423 : vector<2x16xf32>
    %425 = arith.addf %422, %424 : vector<2x16xf32>
    %c12_85 = arith.constant 12 : index
    %c0_86 = arith.constant 0 : index
    %426 = vector.load %arg21[%c12_85, %c0_86] : memref<16x32xf32, #tpu.memory_space<vmem>>, vector<2x16xf32>
    tpu.vector_store %arg21[%c12_85, %c0_86], %399 {strides = array<i32>} : memref<16x32xf32, #tpu.memory_space<vmem>>, vector<2x16xf32>,
    %c2_87 = arith.constant 2 : index
    %c16_88 = arith.constant 16 : index
    %427 = vector.load %arg21[%c2_87, %c16_88] : memref<16x32xf32, #tpu.memory_space<vmem>>, vector<2x16xf32>
    tpu.vector_store %arg21[%c2_87, %c16_88], %425 {strides = array<i32>} : memref<16x32xf32, #tpu.memory_space<vmem>>, vector<2x16xf32>,
    %cst_89 = arith.constant dense<0.000000e+00> : vector<2x48xf32>
    %428 = tpu.matmul %399, %6, %cst_89 {dimension_numbers = #tpu.dot_dimension_numbers<[1], [0], [0], [1], [0, 0, 1, 1], [], []>} : vector<2x16xf32>, vector<16x48xf32>, vector<2x48xf32> -> vector<2x48xf32>
    %cst_90 = arith.constant dense<0.000000e+00> : vector<2x48xf32>
    %429 = tpu.matmul %425, %10, %cst_90 {dimension_numbers = #tpu.dot_dimension_numbers<[1], [0], [0], [1], [0, 0, 1, 1], [], []>} : vector<2x16xf32>, vector<16x48xf32>, vector<2x48xf32> -> vector<2x48xf32>
    %430 = vector.extract_strided_slice %16 {offsets = [14, 0], sizes = [2, 48], strides = [1, 1]} : vector<16x48xf32> to vector<2x48xf32>
    %431 = vector.extract_strided_slice %19 {offsets = [0, 0], sizes = [2, 48], strides = [1, 1]} : vector<16x48xf32> to vector<2x48xf32>
    %432 = vector.extract_strided_slice %430 {offsets = [0, 0], sizes = [2, 16], strides = [1, 1]} : vector<2x48xf32> to vector<2x16xf32>
    %433 = vector.extract_strided_slice %428 {offsets = [0, 0], sizes = [2, 16], strides = [1, 1]} : vector<2x48xf32> to vector<2x16xf32>
    %434 = arith.addf %432, %433 : vector<2x16xf32>
    %435 = arith.negf %434 : vector<2x16xf32>
    %436 = math.exp %435 : vector<2x16xf32>
    %cst_91 = arith.constant 1.000000e+00 : f32
    %437 = vector.broadcast %cst_91 : f32 to vector<2x16xf32>
    %438 = arith.addf %437, %436 : vector<2x16xf32>
    %439 = arith.divf %437, %438 : vector<2x16xf32>
    %440 = vector.extract_strided_slice %430 {offsets = [0, 16], sizes = [2, 16], strides = [1, 1]} : vector<2x48xf32> to vector<2x16xf32>
    %441 = vector.extract_strided_slice %428 {offsets = [0, 16], sizes = [2, 16], strides = [1, 1]} : vector<2x48xf32> to vector<2x16xf32>
    %442 = arith.addf %440, %441 : vector<2x16xf32>
    %443 = arith.negf %442 : vector<2x16xf32>
    %444 = math.exp %443 : vector<2x16xf32>
    %cst_92 = arith.constant 1.000000e+00 : f32
    %445 = vector.broadcast %cst_92 : f32 to vector<2x16xf32>
    %446 = arith.addf %445, %444 : vector<2x16xf32>
    %447 = arith.divf %445, %446 : vector<2x16xf32>
    %448 = vector.extract_strided_slice %430 {offsets = [0, 32], sizes = [2, 16], strides = [1, 1]} : vector<2x48xf32> to vector<2x16xf32>
    %449 = vector.extract_strided_slice %428 {offsets = [0, 32], sizes = [2, 16], strides = [1, 1]} : vector<2x48xf32> to vector<2x16xf32>
    %450 = vector.broadcast %8 : vector<1x16xf32> to vector<2x16xf32>
    %451 = arith.addf %449, %450 : vector<2x16xf32>
    %452 = arith.mulf %439, %451 : vector<2x16xf32>
    %453 = arith.addf %448, %452 : vector<2x16xf32>
    %454 = math.tanh %453 : vector<2x16xf32>
    %455 = arith.subf %399, %454 : vector<2x16xf32>
    %456 = arith.mulf %447, %455 : vector<2x16xf32>
    %457 = arith.addf %454, %456 : vector<2x16xf32>
    %458 = vector.extract_strided_slice %431 {offsets = [0, 0], sizes = [2, 16], strides = [1, 1]} : vector<2x48xf32> to vector<2x16xf32>
    %459 = vector.extract_strided_slice %429 {offsets = [0, 0], sizes = [2, 16], strides = [1, 1]} : vector<2x48xf32> to vector<2x16xf32>
    %460 = arith.addf %458, %459 : vector<2x16xf32>
    %461 = arith.negf %460 : vector<2x16xf32>
    %462 = math.exp %461 : vector<2x16xf32>
    %cst_93 = arith.constant 1.000000e+00 : f32
    %463 = vector.broadcast %cst_93 : f32 to vector<2x16xf32>
    %464 = arith.addf %463, %462 : vector<2x16xf32>
    %465 = arith.divf %463, %464 : vector<2x16xf32>
    %466 = vector.extract_strided_slice %431 {offsets = [0, 16], sizes = [2, 16], strides = [1, 1]} : vector<2x48xf32> to vector<2x16xf32>
    %467 = vector.extract_strided_slice %429 {offsets = [0, 16], sizes = [2, 16], strides = [1, 1]} : vector<2x48xf32> to vector<2x16xf32>
    %468 = arith.addf %466, %467 : vector<2x16xf32>
    %469 = arith.negf %468 : vector<2x16xf32>
    %470 = math.exp %469 : vector<2x16xf32>
    %cst_94 = arith.constant 1.000000e+00 : f32
    %471 = vector.broadcast %cst_94 : f32 to vector<2x16xf32>
    %472 = arith.addf %471, %470 : vector<2x16xf32>
    %473 = arith.divf %471, %472 : vector<2x16xf32>
    %474 = vector.extract_strided_slice %431 {offsets = [0, 32], sizes = [2, 16], strides = [1, 1]} : vector<2x48xf32> to vector<2x16xf32>
    %475 = vector.extract_strided_slice %429 {offsets = [0, 32], sizes = [2, 16], strides = [1, 1]} : vector<2x48xf32> to vector<2x16xf32>
    %476 = vector.broadcast %12 : vector<1x16xf32> to vector<2x16xf32>
    %477 = arith.addf %475, %476 : vector<2x16xf32>
    %478 = arith.mulf %465, %477 : vector<2x16xf32>
    %479 = arith.addf %474, %478 : vector<2x16xf32>
    %480 = math.tanh %479 : vector<2x16xf32>
    %481 = arith.subf %425, %480 : vector<2x16xf32>
    %482 = arith.mulf %473, %481 : vector<2x16xf32>
    %483 = arith.addf %480, %482 : vector<2x16xf32>
    %c14_95 = arith.constant 14 : index
    %c0_96 = arith.constant 0 : index
    %484 = vector.load %arg21[%c14_95, %c0_96] : memref<16x32xf32, #tpu.memory_space<vmem>>, vector<2x16xf32>
    tpu.vector_store %arg21[%c14_95, %c0_96], %457 {strides = array<i32>} : memref<16x32xf32, #tpu.memory_space<vmem>>, vector<2x16xf32>,
    %c0_97 = arith.constant 0 : index
    %c16_98 = arith.constant 16 : index
    %485 = vector.load %arg21[%c0_97, %c16_98] : memref<16x32xf32, #tpu.memory_space<vmem>>, vector<2x16xf32>
    tpu.vector_store %arg21[%c0_97, %c16_98], %483 {strides = array<i32>} : memref<16x32xf32, #tpu.memory_space<vmem>>, vector<2x16xf32>,
    %cst_99 = arith.constant dense<0.000000e+00> : vector<2x32xf32>
    %486 = tpu.matmul %457, %1, %cst_99 {dimension_numbers = #tpu.dot_dimension_numbers<[1], [0], [0], [1], [0, 0, 1, 1], [], []>} : vector<2x16xf32>, vector<16x32xf32>, vector<2x32xf32> -> vector<2x32xf32>
    %cst_100 = arith.constant dense<0.000000e+00> : vector<2x32xf32>
    %487 = tpu.matmul %483, %3, %cst_100 {dimension_numbers = #tpu.dot_dimension_numbers<[1], [0], [0], [1], [0, 0, 1, 1], [], []>} : vector<2x16xf32>, vector<16x32xf32>, vector<2x32xf32> -> vector<2x32xf32>
    %488 = arith.addf %486, %487 : vector<2x32xf32>
    %489 = vector.broadcast %4 : vector<1x32xf32> to vector<2x32xf32>
    %490 = arith.addf %488, %489 : vector<2x32xf32>
    %491 = math.tanh %490 : vector<2x32xf32>
    %c0_101 = arith.constant 0 : index
    %c0_102 = arith.constant 0 : index
    %c0_103 = arith.constant 0 : index
    %492 = vector.load %arg20[%c0_101, %c0_102, %c0_103] : memref<2x2x32xf32, #tpu.memory_space<vmem>>, vector<1x2x32xf32>
    %493 = vector.shape_cast %492 : vector<1x2x32xf32> to vector<2x32xf32>
    %494 = vector.shape_cast %491 : vector<2x32xf32> to vector<1x2x32xf32>
    tpu.vector_store %arg20[%c0_101, %c0_102, %c0_103], %494 {strides = array<i32>} : memref<2x2x32xf32, #tpu.memory_space<vmem>>, vector<1x2x32xf32>,
    %c0_104 = arith.constant 0 : index
    %c0_105 = arith.constant 0 : index
    %495 = vector.load %arg9[%c0_104, %c0_105] : memref<32x48xf32, #tpu.memory_space<vmem>>, vector<32x48xf32>
    %c0_106 = arith.constant 0 : index
    %c0_107 = arith.constant 0 : index
    %496 = vector.load %arg10[%c0_106, %c0_107] : memref<16x48xf32, #tpu.memory_space<vmem>>, vector<16x48xf32>
    %c0_108 = arith.constant 0 : index
    %c0_109 = arith.constant 0 : index
    %497 = vector.load %arg11[%c0_108, %c0_109] : memref<1x48xf32, #tpu.memory_space<vmem>>, vector<1x48xf32>
    %c0_110 = arith.constant 0 : index
    %c0_111 = arith.constant 0 : index
    %498 = vector.load %arg12[%c0_110, %c0_111] : memref<1x16xf32, #tpu.memory_space<vmem>>, vector<1x16xf32>
    %c0_112 = arith.constant 0 : index
    %c0_113 = arith.constant 0 : index
    %499 = vector.load %arg13[%c0_112, %c0_113] : memref<32x48xf32, #tpu.memory_space<vmem>>, vector<32x48xf32>
    %c0_114 = arith.constant 0 : index
    %c0_115 = arith.constant 0 : index
    %500 = vector.load %arg14[%c0_114, %c0_115] : memref<16x48xf32, #tpu.memory_space<vmem>>, vector<16x48xf32>
    %c0_116 = arith.constant 0 : index
    %c0_117 = arith.constant 0 : index
    %501 = vector.load %arg15[%c0_116, %c0_117] : memref<1x48xf32, #tpu.memory_space<vmem>>, vector<1x48xf32>
    %c0_118 = arith.constant 0 : index
    %c0_119 = arith.constant 0 : index
    %502 = vector.load %arg16[%c0_118, %c0_119] : memref<1x16xf32, #tpu.memory_space<vmem>>, vector<1x16xf32>
    %c0_120 = arith.constant 0 : index
    %c0_121 = arith.constant 0 : index
    %503 = vector.load %arg21[%c0_120, %c0_121] : memref<16x32xf32, #tpu.memory_space<vmem>>, vector<16x32xf32>
    %cst_122 = arith.constant dense<0.000000e+00> : vector<16x48xf32>
    %504 = tpu.matmul %503, %495, %cst_122 {dimension_numbers = #tpu.dot_dimension_numbers<[1], [0], [0], [1], [0, 0, 1, 1], [], []>} : vector<16x32xf32>, vector<32x48xf32>, vector<16x48xf32> -> vector<16x48xf32>
    %505 = vector.broadcast %497 : vector<1x48xf32> to vector<16x48xf32>
    %506 = arith.addf %504, %505 : vector<16x48xf32>
    %cst_123 = arith.constant dense<0.000000e+00> : vector<16x48xf32>
    %507 = tpu.matmul %503, %499, %cst_123 {dimension_numbers = #tpu.dot_dimension_numbers<[1], [0], [0], [1], [0, 0, 1, 1], [], []>} : vector<16x32xf32>, vector<32x48xf32>, vector<16x48xf32> -> vector<16x48xf32>
    %508 = vector.broadcast %501 : vector<1x48xf32> to vector<16x48xf32>
    %509 = arith.addf %507, %508 : vector<16x48xf32>
    %cst_124 = arith.constant 0.000000e+00 : f32
    %510 = vector.broadcast %cst_124 : f32 to vector<2x16xf32>
    %cst_125 = arith.constant 0.000000e+00 : f32
    %511 = vector.broadcast %cst_125 : f32 to vector<2x16xf32>
    %cst_126 = arith.constant dense<0.000000e+00> : vector<2x48xf32>
    %512 = tpu.matmul %510, %496, %cst_126 {dimension_numbers = #tpu.dot_dimension_numbers<[1], [0], [0], [1], [0, 0, 1, 1], [], []>} : vector<2x16xf32>, vector<16x48xf32>, vector<2x48xf32> -> vector<2x48xf32>
    %cst_127 = arith.constant dense<0.000000e+00> : vector<2x48xf32>
    %513 = tpu.matmul %511, %500, %cst_127 {dimension_numbers = #tpu.dot_dimension_numbers<[1], [0], [0], [1], [0, 0, 1, 1], [], []>} : vector<2x16xf32>, vector<16x48xf32>, vector<2x48xf32> -> vector<2x48xf32>
    %514 = vector.extract_strided_slice %506 {offsets = [0, 0], sizes = [2, 48], strides = [1, 1]} : vector<16x48xf32> to vector<2x48xf32>
    %515 = vector.extract_strided_slice %509 {offsets = [14, 0], sizes = [2, 48], strides = [1, 1]} : vector<16x48xf32> to vector<2x48xf32>
    %516 = vector.extract_strided_slice %514 {offsets = [0, 0], sizes = [2, 16], strides = [1, 1]} : vector<2x48xf32> to vector<2x16xf32>
    %517 = vector.extract_strided_slice %512 {offsets = [0, 0], sizes = [2, 16], strides = [1, 1]} : vector<2x48xf32> to vector<2x16xf32>
    %518 = arith.addf %516, %517 : vector<2x16xf32>
    %519 = arith.negf %518 : vector<2x16xf32>
    %520 = math.exp %519 : vector<2x16xf32>
    %cst_128 = arith.constant 1.000000e+00 : f32
    %521 = vector.broadcast %cst_128 : f32 to vector<2x16xf32>
    %522 = arith.addf %521, %520 : vector<2x16xf32>
    %523 = arith.divf %521, %522 : vector<2x16xf32>
    %524 = vector.extract_strided_slice %514 {offsets = [0, 16], sizes = [2, 16], strides = [1, 1]} : vector<2x48xf32> to vector<2x16xf32>
    %525 = vector.extract_strided_slice %512 {offsets = [0, 16], sizes = [2, 16], strides = [1, 1]} : vector<2x48xf32> to vector<2x16xf32>
    %526 = arith.addf %524, %525 : vector<2x16xf32>
    %527 = arith.negf %526 : vector<2x16xf32>
    %528 = math.exp %527 : vector<2x16xf32>
    %cst_129 = arith.constant 1.000000e+00 : f32
    %529 = vector.broadcast %cst_129 : f32 to vector<2x16xf32>
    %530 = arith.addf %529, %528 : vector<2x16xf32>
    %531 = arith.divf %529, %530 : vector<2x16xf32>
    %532 = vector.extract_strided_slice %514 {offsets = [0, 32], sizes = [2, 16], strides = [1, 1]} : vector<2x48xf32> to vector<2x16xf32>
    %533 = vector.extract_strided_slice %512 {offsets = [0, 32], sizes = [2, 16], strides = [1, 1]} : vector<2x48xf32> to vector<2x16xf32>
    %534 = vector.broadcast %498 : vector<1x16xf32> to vector<2x16xf32>
    %535 = arith.addf %533, %534 : vector<2x16xf32>
    %536 = arith.mulf %523, %535 : vector<2x16xf32>
    %537 = arith.addf %532, %536 : vector<2x16xf32>
    %538 = math.tanh %537 : vector<2x16xf32>
    %539 = arith.subf %510, %538 : vector<2x16xf32>
    %540 = arith.mulf %531, %539 : vector<2x16xf32>
    %541 = arith.addf %538, %540 : vector<2x16xf32>
    %542 = vector.extract_strided_slice %515 {offsets = [0, 0], sizes = [2, 16], strides = [1, 1]} : vector<2x48xf32> to vector<2x16xf32>
    %543 = vector.extract_strided_slice %513 {offsets = [0, 0], sizes = [2, 16], strides = [1, 1]} : vector<2x48xf32> to vector<2x16xf32>
    %544 = arith.addf %542, %543 : vector<2x16xf32>
    %545 = arith.negf %544 : vector<2x16xf32>
    %546 = math.exp %545 : vector<2x16xf32>
    %cst_130 = arith.constant 1.000000e+00 : f32
    %547 = vector.broadcast %cst_130 : f32 to vector<2x16xf32>
    %548 = arith.addf %547, %546 : vector<2x16xf32>
    %549 = arith.divf %547, %548 : vector<2x16xf32>
    %550 = vector.extract_strided_slice %515 {offsets = [0, 16], sizes = [2, 16], strides = [1, 1]} : vector<2x48xf32> to vector<2x16xf32>
    %551 = vector.extract_strided_slice %513 {offsets = [0, 16], sizes = [2, 16], strides = [1, 1]} : vector<2x48xf32> to vector<2x16xf32>
    %552 = arith.addf %550, %551 : vector<2x16xf32>
    %553 = arith.negf %552 : vector<2x16xf32>
    %554 = math.exp %553 : vector<2x16xf32>
    %cst_131 = arith.constant 1.000000e+00 : f32
    %555 = vector.broadcast %cst_131 : f32 to vector<2x16xf32>
    %556 = arith.addf %555, %554 : vector<2x16xf32>
    %557 = arith.divf %555, %556 : vector<2x16xf32>
    %558 = vector.extract_strided_slice %515 {offsets = [0, 32], sizes = [2, 16], strides = [1, 1]} : vector<2x48xf32> to vector<2x16xf32>
    %559 = vector.extract_strided_slice %513 {offsets = [0, 32], sizes = [2, 16], strides = [1, 1]} : vector<2x48xf32> to vector<2x16xf32>
    %560 = vector.broadcast %502 : vector<1x16xf32> to vector<2x16xf32>
    %561 = arith.addf %559, %560 : vector<2x16xf32>
    %562 = arith.mulf %549, %561 : vector<2x16xf32>
    %563 = arith.addf %558, %562 : vector<2x16xf32>
    %564 = math.tanh %563 : vector<2x16xf32>
    %565 = arith.subf %511, %564 : vector<2x16xf32>
    %566 = arith.mulf %557, %565 : vector<2x16xf32>
    %567 = arith.addf %564, %566 : vector<2x16xf32>
    %c0_132 = arith.constant 0 : index
    %c0_133 = arith.constant 0 : index
    %568 = vector.load %arg19[%c0_132, %c0_133] : memref<16x32xf32, #tpu.memory_space<vmem>>, vector<2x16xf32>
    tpu.vector_store %arg19[%c0_132, %c0_133], %541 {strides = array<i32>} : memref<16x32xf32, #tpu.memory_space<vmem>>, vector<2x16xf32>,
    %c14_134 = arith.constant 14 : index
    %c16_135 = arith.constant 16 : index
    %569 = vector.load %arg19[%c14_134, %c16_135] : memref<16x32xf32, #tpu.memory_space<vmem>>, vector<2x16xf32>
    tpu.vector_store %arg19[%c14_134, %c16_135], %567 {strides = array<i32>} : memref<16x32xf32, #tpu.memory_space<vmem>>, vector<2x16xf32>,
    %cst_136 = arith.constant dense<0.000000e+00> : vector<2x48xf32>
    %570 = tpu.matmul %541, %496, %cst_136 {dimension_numbers = #tpu.dot_dimension_numbers<[1], [0], [0], [1], [0, 0, 1, 1], [], []>} : vector<2x16xf32>, vector<16x48xf32>, vector<2x48xf32> -> vector<2x48xf32>
    %cst_137 = arith.constant dense<0.000000e+00> : vector<2x48xf32>
    %571 = tpu.matmul %567, %500, %cst_137 {dimension_numbers = #tpu.dot_dimension_numbers<[1], [0], [0], [1], [0, 0, 1, 1], [], []>} : vector<2x16xf32>, vector<16x48xf32>, vector<2x48xf32> -> vector<2x48xf32>
    %572 = vector.extract_strided_slice %506 {offsets = [2, 0], sizes = [2, 48], strides = [1, 1]} : vector<16x48xf32> to vector<2x48xf32>
    %573 = vector.extract_strided_slice %509 {offsets = [12, 0], sizes = [2, 48], strides = [1, 1]} : vector<16x48xf32> to vector<2x48xf32>
    %574 = vector.extract_strided_slice %572 {offsets = [0, 0], sizes = [2, 16], strides = [1, 1]} : vector<2x48xf32> to vector<2x16xf32>
    %575 = vector.extract_strided_slice %570 {offsets = [0, 0], sizes = [2, 16], strides = [1, 1]} : vector<2x48xf32> to vector<2x16xf32>
    %576 = arith.addf %574, %575 : vector<2x16xf32>
    %577 = arith.negf %576 : vector<2x16xf32>
    %578 = math.exp %577 : vector<2x16xf32>
    %cst_138 = arith.constant 1.000000e+00 : f32
    %579 = vector.broadcast %cst_138 : f32 to vector<2x16xf32>
    %580 = arith.addf %579, %578 : vector<2x16xf32>
    %581 = arith.divf %579, %580 : vector<2x16xf32>
    %582 = vector.extract_strided_slice %572 {offsets = [0, 16], sizes = [2, 16], strides = [1, 1]} : vector<2x48xf32> to vector<2x16xf32>
    %583 = vector.extract_strided_slice %570 {offsets = [0, 16], sizes = [2, 16], strides = [1, 1]} : vector<2x48xf32> to vector<2x16xf32>
    %584 = arith.addf %582, %583 : vector<2x16xf32>
    %585 = arith.negf %584 : vector<2x16xf32>
    %586 = math.exp %585 : vector<2x16xf32>
    %cst_139 = arith.constant 1.000000e+00 : f32
    %587 = vector.broadcast %cst_139 : f32 to vector<2x16xf32>
    %588 = arith.addf %587, %586 : vector<2x16xf32>
    %589 = arith.divf %587, %588 : vector<2x16xf32>
    %590 = vector.extract_strided_slice %572 {offsets = [0, 32], sizes = [2, 16], strides = [1, 1]} : vector<2x48xf32> to vector<2x16xf32>
    %591 = vector.extract_strided_slice %570 {offsets = [0, 32], sizes = [2, 16], strides = [1, 1]} : vector<2x48xf32> to vector<2x16xf32>
    %592 = vector.broadcast %498 : vector<1x16xf32> to vector<2x16xf32>
    %593 = arith.addf %591, %592 : vector<2x16xf32>
    %594 = arith.mulf %581, %593 : vector<2x16xf32>
    %595 = arith.addf %590, %594 : vector<2x16xf32>
    %596 = math.tanh %595 : vector<2x16xf32>
    %597 = arith.subf %541, %596 : vector<2x16xf32>
    %598 = arith.mulf %589, %597 : vector<2x16xf32>
    %599 = arith.addf %596, %598 : vector<2x16xf32>
    %600 = vector.extract_strided_slice %573 {offsets = [0, 0], sizes = [2, 16], strides = [1, 1]} : vector<2x48xf32> to vector<2x16xf32>
    %601 = vector.extract_strided_slice %571 {offsets = [0, 0], sizes = [2, 16], strides = [1, 1]} : vector<2x48xf32> to vector<2x16xf32>
    %602 = arith.addf %600, %601 : vector<2x16xf32>
    %603 = arith.negf %602 : vector<2x16xf32>
    %604 = math.exp %603 : vector<2x16xf32>
    %cst_140 = arith.constant 1.000000e+00 : f32
    %605 = vector.broadcast %cst_140 : f32 to vector<2x16xf32>
    %606 = arith.addf %605, %604 : vector<2x16xf32>
    %607 = arith.divf %605, %606 : vector<2x16xf32>
    %608 = vector.extract_strided_slice %573 {offsets = [0, 16], sizes = [2, 16], strides = [1, 1]} : vector<2x48xf32> to vector<2x16xf32>
    %609 = vector.extract_strided_slice %571 {offsets = [0, 16], sizes = [2, 16], strides = [1, 1]} : vector<2x48xf32> to vector<2x16xf32>
    %610 = arith.addf %608, %609 : vector<2x16xf32>
    %611 = arith.negf %610 : vector<2x16xf32>
    %612 = math.exp %611 : vector<2x16xf32>
    %cst_141 = arith.constant 1.000000e+00 : f32
    %613 = vector.broadcast %cst_141 : f32 to vector<2x16xf32>
    %614 = arith.addf %613, %612 : vector<2x16xf32>
    %615 = arith.divf %613, %614 : vector<2x16xf32>
    %616 = vector.extract_strided_slice %573 {offsets = [0, 32], sizes = [2, 16], strides = [1, 1]} : vector<2x48xf32> to vector<2x16xf32>
    %617 = vector.extract_strided_slice %571 {offsets = [0, 32], sizes = [2, 16], strides = [1, 1]} : vector<2x48xf32> to vector<2x16xf32>
    %618 = vector.broadcast %502 : vector<1x16xf32> to vector<2x16xf32>
    %619 = arith.addf %617, %618 : vector<2x16xf32>
    %620 = arith.mulf %607, %619 : vector<2x16xf32>
    %621 = arith.addf %616, %620 : vector<2x16xf32>
    %622 = math.tanh %621 : vector<2x16xf32>
    %623 = arith.subf %567, %622 : vector<2x16xf32>
    %624 = arith.mulf %615, %623 : vector<2x16xf32>
    %625 = arith.addf %622, %624 : vector<2x16xf32>
    %c2_142 = arith.constant 2 : index
    %c0_143 = arith.constant 0 : index
    %626 = vector.load %arg19[%c2_142, %c0_143] : memref<16x32xf32, #tpu.memory_space<vmem>>, vector<2x16xf32>
    tpu.vector_store %arg19[%c2_142, %c0_143], %599 {strides = array<i32>} : memref<16x32xf32, #tpu.memory_space<vmem>>, vector<2x16xf32>,
    %c12_144 = arith.constant 12 : index
    %c16_145 = arith.constant 16 : index
    %627 = vector.load %arg19[%c12_144, %c16_145] : memref<16x32xf32, #tpu.memory_space<vmem>>, vector<2x16xf32>
    tpu.vector_store %arg19[%c12_144, %c16_145], %625 {strides = array<i32>} : memref<16x32xf32, #tpu.memory_space<vmem>>, vector<2x16xf32>,
    %cst_146 = arith.constant dense<0.000000e+00> : vector<2x48xf32>
    %628 = tpu.matmul %599, %496, %cst_146 {dimension_numbers = #tpu.dot_dimension_numbers<[1], [0], [0], [1], [0, 0, 1, 1], [], []>} : vector<2x16xf32>, vector<16x48xf32>, vector<2x48xf32> -> vector<2x48xf32>
    %cst_147 = arith.constant dense<0.000000e+00> : vector<2x48xf32>
    %629 = tpu.matmul %625, %500, %cst_147 {dimension_numbers = #tpu.dot_dimension_numbers<[1], [0], [0], [1], [0, 0, 1, 1], [], []>} : vector<2x16xf32>, vector<16x48xf32>, vector<2x48xf32> -> vector<2x48xf32>
    %630 = vector.extract_strided_slice %506 {offsets = [4, 0], sizes = [2, 48], strides = [1, 1]} : vector<16x48xf32> to vector<2x48xf32>
    %631 = vector.extract_strided_slice %509 {offsets = [10, 0], sizes = [2, 48], strides = [1, 1]} : vector<16x48xf32> to vector<2x48xf32>
    %632 = vector.extract_strided_slice %630 {offsets = [0, 0], sizes = [2, 16], strides = [1, 1]} : vector<2x48xf32> to vector<2x16xf32>
    %633 = vector.extract_strided_slice %628 {offsets = [0, 0], sizes = [2, 16], strides = [1, 1]} : vector<2x48xf32> to vector<2x16xf32>
    %634 = arith.addf %632, %633 : vector<2x16xf32>
    %635 = arith.negf %634 : vector<2x16xf32>
    %636 = math.exp %635 : vector<2x16xf32>
    %cst_148 = arith.constant 1.000000e+00 : f32
    %637 = vector.broadcast %cst_148 : f32 to vector<2x16xf32>
    %638 = arith.addf %637, %636 : vector<2x16xf32>
    %639 = arith.divf %637, %638 : vector<2x16xf32>
    %640 = vector.extract_strided_slice %630 {offsets = [0, 16], sizes = [2, 16], strides = [1, 1]} : vector<2x48xf32> to vector<2x16xf32>
    %641 = vector.extract_strided_slice %628 {offsets = [0, 16], sizes = [2, 16], strides = [1, 1]} : vector<2x48xf32> to vector<2x16xf32>
    %642 = arith.addf %640, %641 : vector<2x16xf32>
    %643 = arith.negf %642 : vector<2x16xf32>
    %644 = math.exp %643 : vector<2x16xf32>
    %cst_149 = arith.constant 1.000000e+00 : f32
    %645 = vector.broadcast %cst_149 : f32 to vector<2x16xf32>
    %646 = arith.addf %645, %644 : vector<2x16xf32>
    %647 = arith.divf %645, %646 : vector<2x16xf32>
    %648 = vector.extract_strided_slice %630 {offsets = [0, 32], sizes = [2, 16], strides = [1, 1]} : vector<2x48xf32> to vector<2x16xf32>
    %649 = vector.extract_strided_slice %628 {offsets = [0, 32], sizes = [2, 16], strides = [1, 1]} : vector<2x48xf32> to vector<2x16xf32>
    %650 = vector.broadcast %498 : vector<1x16xf32> to vector<2x16xf32>
    %651 = arith.addf %649, %650 : vector<2x16xf32>
    %652 = arith.mulf %639, %651 : vector<2x16xf32>
    %653 = arith.addf %648, %652 : vector<2x16xf32>
    %654 = math.tanh %653 : vector<2x16xf32>
    %655 = arith.subf %599, %654 : vector<2x16xf32>
    %656 = arith.mulf %647, %655 : vector<2x16xf32>
    %657 = arith.addf %654, %656 : vector<2x16xf32>
    %658 = vector.extract_strided_slice %631 {offsets = [0, 0], sizes = [2, 16], strides = [1, 1]} : vector<2x48xf32> to vector<2x16xf32>
    %659 = vector.extract_strided_slice %629 {offsets = [0, 0], sizes = [2, 16], strides = [1, 1]} : vector<2x48xf32> to vector<2x16xf32>
    %660 = arith.addf %658, %659 : vector<2x16xf32>
    %661 = arith.negf %660 : vector<2x16xf32>
    %662 = math.exp %661 : vector<2x16xf32>
    %cst_150 = arith.constant 1.000000e+00 : f32
    %663 = vector.broadcast %cst_150 : f32 to vector<2x16xf32>
    %664 = arith.addf %663, %662 : vector<2x16xf32>
    %665 = arith.divf %663, %664 : vector<2x16xf32>
    %666 = vector.extract_strided_slice %631 {offsets = [0, 16], sizes = [2, 16], strides = [1, 1]} : vector<2x48xf32> to vector<2x16xf32>
    %667 = vector.extract_strided_slice %629 {offsets = [0, 16], sizes = [2, 16], strides = [1, 1]} : vector<2x48xf32> to vector<2x16xf32>
    %668 = arith.addf %666, %667 : vector<2x16xf32>
    %669 = arith.negf %668 : vector<2x16xf32>
    %670 = math.exp %669 : vector<2x16xf32>
    %cst_151 = arith.constant 1.000000e+00 : f32
    %671 = vector.broadcast %cst_151 : f32 to vector<2x16xf32>
    %672 = arith.addf %671, %670 : vector<2x16xf32>
    %673 = arith.divf %671, %672 : vector<2x16xf32>
    %674 = vector.extract_strided_slice %631 {offsets = [0, 32], sizes = [2, 16], strides = [1, 1]} : vector<2x48xf32> to vector<2x16xf32>
    %675 = vector.extract_strided_slice %629 {offsets = [0, 32], sizes = [2, 16], strides = [1, 1]} : vector<2x48xf32> to vector<2x16xf32>
    %676 = vector.broadcast %502 : vector<1x16xf32> to vector<2x16xf32>
    %677 = arith.addf %675, %676 : vector<2x16xf32>
    %678 = arith.mulf %665, %677 : vector<2x16xf32>
    %679 = arith.addf %674, %678 : vector<2x16xf32>
    %680 = math.tanh %679 : vector<2x16xf32>
    %681 = arith.subf %625, %680 : vector<2x16xf32>
    %682 = arith.mulf %673, %681 : vector<2x16xf32>
    %683 = arith.addf %680, %682 : vector<2x16xf32>
    %c4_152 = arith.constant 4 : index
    %c0_153 = arith.constant 0 : index
    %684 = vector.load %arg19[%c4_152, %c0_153] : memref<16x32xf32, #tpu.memory_space<vmem>>, vector<2x16xf32>
    tpu.vector_store %arg19[%c4_152, %c0_153], %657 {strides = array<i32>} : memref<16x32xf32, #tpu.memory_space<vmem>>, vector<2x16xf32>,
    %c10_154 = arith.constant 10 : index
    %c16_155 = arith.constant 16 : index
    %685 = vector.load %arg19[%c10_154, %c16_155] : memref<16x32xf32, #tpu.memory_space<vmem>>, vector<2x16xf32>
    tpu.vector_store %arg19[%c10_154, %c16_155], %683 {strides = array<i32>} : memref<16x32xf32, #tpu.memory_space<vmem>>, vector<2x16xf32>,
    %cst_156 = arith.constant dense<0.000000e+00> : vector<2x48xf32>
    %686 = tpu.matmul %657, %496, %cst_156 {dimension_numbers = #tpu.dot_dimension_numbers<[1], [0], [0], [1], [0, 0, 1, 1], [], []>} : vector<2x16xf32>, vector<16x48xf32>, vector<2x48xf32> -> vector<2x48xf32>
    %cst_157 = arith.constant dense<0.000000e+00> : vector<2x48xf32>
    %687 = tpu.matmul %683, %500, %cst_157 {dimension_numbers = #tpu.dot_dimension_numbers<[1], [0], [0], [1], [0, 0, 1, 1], [], []>} : vector<2x16xf32>, vector<16x48xf32>, vector<2x48xf32> -> vector<2x48xf32>
    %688 = vector.extract_strided_slice %506 {offsets = [6, 0], sizes = [2, 48], strides = [1, 1]} : vector<16x48xf32> to vector<2x48xf32>
    %689 = vector.extract_strided_slice %509 {offsets = [8, 0], sizes = [2, 48], strides = [1, 1]} : vector<16x48xf32> to vector<2x48xf32>
    %690 = vector.extract_strided_slice %688 {offsets = [0, 0], sizes = [2, 16], strides = [1, 1]} : vector<2x48xf32> to vector<2x16xf32>
    %691 = vector.extract_strided_slice %686 {offsets = [0, 0], sizes = [2, 16], strides = [1, 1]} : vector<2x48xf32> to vector<2x16xf32>
    %692 = arith.addf %690, %691 : vector<2x16xf32>
    %693 = arith.negf %692 : vector<2x16xf32>
    %694 = math.exp %693 : vector<2x16xf32>
    %cst_158 = arith.constant 1.000000e+00 : f32
    %695 = vector.broadcast %cst_158 : f32 to vector<2x16xf32>
    %696 = arith.addf %695, %694 : vector<2x16xf32>
    %697 = arith.divf %695, %696 : vector<2x16xf32>
    %698 = vector.extract_strided_slice %688 {offsets = [0, 16], sizes = [2, 16], strides = [1, 1]} : vector<2x48xf32> to vector<2x16xf32>
    %699 = vector.extract_strided_slice %686 {offsets = [0, 16], sizes = [2, 16], strides = [1, 1]} : vector<2x48xf32> to vector<2x16xf32>
    %700 = arith.addf %698, %699 : vector<2x16xf32>
    %701 = arith.negf %700 : vector<2x16xf32>
    %702 = math.exp %701 : vector<2x16xf32>
    %cst_159 = arith.constant 1.000000e+00 : f32
    %703 = vector.broadcast %cst_159 : f32 to vector<2x16xf32>
    %704 = arith.addf %703, %702 : vector<2x16xf32>
    %705 = arith.divf %703, %704 : vector<2x16xf32>
    %706 = vector.extract_strided_slice %688 {offsets = [0, 32], sizes = [2, 16], strides = [1, 1]} : vector<2x48xf32> to vector<2x16xf32>
    %707 = vector.extract_strided_slice %686 {offsets = [0, 32], sizes = [2, 16], strides = [1, 1]} : vector<2x48xf32> to vector<2x16xf32>
    %708 = vector.broadcast %498 : vector<1x16xf32> to vector<2x16xf32>
    %709 = arith.addf %707, %708 : vector<2x16xf32>
    %710 = arith.mulf %697, %709 : vector<2x16xf32>
    %711 = arith.addf %706, %710 : vector<2x16xf32>
    %712 = math.tanh %711 : vector<2x16xf32>
    %713 = arith.subf %657, %712 : vector<2x16xf32>
    %714 = arith.mulf %705, %713 : vector<2x16xf32>
    %715 = arith.addf %712, %714 : vector<2x16xf32>
    %716 = vector.extract_strided_slice %689 {offsets = [0, 0], sizes = [2, 16], strides = [1, 1]} : vector<2x48xf32> to vector<2x16xf32>
    %717 = vector.extract_strided_slice %687 {offsets = [0, 0], sizes = [2, 16], strides = [1, 1]} : vector<2x48xf32> to vector<2x16xf32>
    %718 = arith.addf %716, %717 : vector<2x16xf32>
    %719 = arith.negf %718 : vector<2x16xf32>
    %720 = math.exp %719 : vector<2x16xf32>
    %cst_160 = arith.constant 1.000000e+00 : f32
    %721 = vector.broadcast %cst_160 : f32 to vector<2x16xf32>
    %722 = arith.addf %721, %720 : vector<2x16xf32>
    %723 = arith.divf %721, %722 : vector<2x16xf32>
    %724 = vector.extract_strided_slice %689 {offsets = [0, 16], sizes = [2, 16], strides = [1, 1]} : vector<2x48xf32> to vector<2x16xf32>
    %725 = vector.extract_strided_slice %687 {offsets = [0, 16], sizes = [2, 16], strides = [1, 1]} : vector<2x48xf32> to vector<2x16xf32>
    %726 = arith.addf %724, %725 : vector<2x16xf32>
    %727 = arith.negf %726 : vector<2x16xf32>
    %728 = math.exp %727 : vector<2x16xf32>
    %cst_161 = arith.constant 1.000000e+00 : f32
    %729 = vector.broadcast %cst_161 : f32 to vector<2x16xf32>
    %730 = arith.addf %729, %728 : vector<2x16xf32>
    %731 = arith.divf %729, %730 : vector<2x16xf32>
    %732 = vector.extract_strided_slice %689 {offsets = [0, 32], sizes = [2, 16], strides = [1, 1]} : vector<2x48xf32> to vector<2x16xf32>
    %733 = vector.extract_strided_slice %687 {offsets = [0, 32], sizes = [2, 16], strides = [1, 1]} : vector<2x48xf32> to vector<2x16xf32>
    %734 = vector.broadcast %502 : vector<1x16xf32> to vector<2x16xf32>
    %735 = arith.addf %733, %734 : vector<2x16xf32>
    %736 = arith.mulf %723, %735 : vector<2x16xf32>
    %737 = arith.addf %732, %736 : vector<2x16xf32>
    %738 = math.tanh %737 : vector<2x16xf32>
    %739 = arith.subf %683, %738 : vector<2x16xf32>
    %740 = arith.mulf %731, %739 : vector<2x16xf32>
    %741 = arith.addf %738, %740 : vector<2x16xf32>
    %c6_162 = arith.constant 6 : index
    %c0_163 = arith.constant 0 : index
    %742 = vector.load %arg19[%c6_162, %c0_163] : memref<16x32xf32, #tpu.memory_space<vmem>>, vector<2x16xf32>
    tpu.vector_store %arg19[%c6_162, %c0_163], %715 {strides = array<i32>} : memref<16x32xf32, #tpu.memory_space<vmem>>, vector<2x16xf32>,
    %c8_164 = arith.constant 8 : index
    %c16_165 = arith.constant 16 : index
    %743 = vector.load %arg19[%c8_164, %c16_165] : memref<16x32xf32, #tpu.memory_space<vmem>>, vector<2x16xf32>
    tpu.vector_store %arg19[%c8_164, %c16_165], %741 {strides = array<i32>} : memref<16x32xf32, #tpu.memory_space<vmem>>, vector<2x16xf32>,
    %cst_166 = arith.constant dense<0.000000e+00> : vector<2x48xf32>
    %744 = tpu.matmul %715, %496, %cst_166 {dimension_numbers = #tpu.dot_dimension_numbers<[1], [0], [0], [1], [0, 0, 1, 1], [], []>} : vector<2x16xf32>, vector<16x48xf32>, vector<2x48xf32> -> vector<2x48xf32>
    %cst_167 = arith.constant dense<0.000000e+00> : vector<2x48xf32>
    %745 = tpu.matmul %741, %500, %cst_167 {dimension_numbers = #tpu.dot_dimension_numbers<[1], [0], [0], [1], [0, 0, 1, 1], [], []>} : vector<2x16xf32>, vector<16x48xf32>, vector<2x48xf32> -> vector<2x48xf32>
    %746 = vector.extract_strided_slice %506 {offsets = [8, 0], sizes = [2, 48], strides = [1, 1]} : vector<16x48xf32> to vector<2x48xf32>
    %747 = vector.extract_strided_slice %509 {offsets = [6, 0], sizes = [2, 48], strides = [1, 1]} : vector<16x48xf32> to vector<2x48xf32>
    %748 = vector.extract_strided_slice %746 {offsets = [0, 0], sizes = [2, 16], strides = [1, 1]} : vector<2x48xf32> to vector<2x16xf32>
    %749 = vector.extract_strided_slice %744 {offsets = [0, 0], sizes = [2, 16], strides = [1, 1]} : vector<2x48xf32> to vector<2x16xf32>
    %750 = arith.addf %748, %749 : vector<2x16xf32>
    %751 = arith.negf %750 : vector<2x16xf32>
    %752 = math.exp %751 : vector<2x16xf32>
    %cst_168 = arith.constant 1.000000e+00 : f32
    %753 = vector.broadcast %cst_168 : f32 to vector<2x16xf32>
    %754 = arith.addf %753, %752 : vector<2x16xf32>
    %755 = arith.divf %753, %754 : vector<2x16xf32>
    %756 = vector.extract_strided_slice %746 {offsets = [0, 16], sizes = [2, 16], strides = [1, 1]} : vector<2x48xf32> to vector<2x16xf32>
    %757 = vector.extract_strided_slice %744 {offsets = [0, 16], sizes = [2, 16], strides = [1, 1]} : vector<2x48xf32> to vector<2x16xf32>
    %758 = arith.addf %756, %757 : vector<2x16xf32>
    %759 = arith.negf %758 : vector<2x16xf32>
    %760 = math.exp %759 : vector<2x16xf32>
    %cst_169 = arith.constant 1.000000e+00 : f32
    %761 = vector.broadcast %cst_169 : f32 to vector<2x16xf32>
    %762 = arith.addf %761, %760 : vector<2x16xf32>
    %763 = arith.divf %761, %762 : vector<2x16xf32>
    %764 = vector.extract_strided_slice %746 {offsets = [0, 32], sizes = [2, 16], strides = [1, 1]} : vector<2x48xf32> to vector<2x16xf32>
    %765 = vector.extract_strided_slice %744 {offsets = [0, 32], sizes = [2, 16], strides = [1, 1]} : vector<2x48xf32> to vector<2x16xf32>
    %766 = vector.broadcast %498 : vector<1x16xf32> to vector<2x16xf32>
    %767 = arith.addf %765, %766 : vector<2x16xf32>
    %768 = arith.mulf %755, %767 : vector<2x16xf32>
    %769 = arith.addf %764, %768 : vector<2x16xf32>
    %770 = math.tanh %769 : vector<2x16xf32>
    %771 = arith.subf %715, %770 : vector<2x16xf32>
    %772 = arith.mulf %763, %771 : vector<2x16xf32>
    %773 = arith.addf %770, %772 : vector<2x16xf32>
    %774 = vector.extract_strided_slice %747 {offsets = [0, 0], sizes = [2, 16], strides = [1, 1]} : vector<2x48xf32> to vector<2x16xf32>
    %775 = vector.extract_strided_slice %745 {offsets = [0, 0], sizes = [2, 16], strides = [1, 1]} : vector<2x48xf32> to vector<2x16xf32>
    %776 = arith.addf %774, %775 : vector<2x16xf32>
    %777 = arith.negf %776 : vector<2x16xf32>
    %778 = math.exp %777 : vector<2x16xf32>
    %cst_170 = arith.constant 1.000000e+00 : f32
    %779 = vector.broadcast %cst_170 : f32 to vector<2x16xf32>
    %780 = arith.addf %779, %778 : vector<2x16xf32>
    %781 = arith.divf %779, %780 : vector<2x16xf32>
    %782 = vector.extract_strided_slice %747 {offsets = [0, 16], sizes = [2, 16], strides = [1, 1]} : vector<2x48xf32> to vector<2x16xf32>
    %783 = vector.extract_strided_slice %745 {offsets = [0, 16], sizes = [2, 16], strides = [1, 1]} : vector<2x48xf32> to vector<2x16xf32>
    %784 = arith.addf %782, %783 : vector<2x16xf32>
    %785 = arith.negf %784 : vector<2x16xf32>
    %786 = math.exp %785 : vector<2x16xf32>
    %cst_171 = arith.constant 1.000000e+00 : f32
    %787 = vector.broadcast %cst_171 : f32 to vector<2x16xf32>
    %788 = arith.addf %787, %786 : vector<2x16xf32>
    %789 = arith.divf %787, %788 : vector<2x16xf32>
    %790 = vector.extract_strided_slice %747 {offsets = [0, 32], sizes = [2, 16], strides = [1, 1]} : vector<2x48xf32> to vector<2x16xf32>
    %791 = vector.extract_strided_slice %745 {offsets = [0, 32], sizes = [2, 16], strides = [1, 1]} : vector<2x48xf32> to vector<2x16xf32>
    %792 = vector.broadcast %502 : vector<1x16xf32> to vector<2x16xf32>
    %793 = arith.addf %791, %792 : vector<2x16xf32>
    %794 = arith.mulf %781, %793 : vector<2x16xf32>
    %795 = arith.addf %790, %794 : vector<2x16xf32>
    %796 = math.tanh %795 : vector<2x16xf32>
    %797 = arith.subf %741, %796 : vector<2x16xf32>
    %798 = arith.mulf %789, %797 : vector<2x16xf32>
    %799 = arith.addf %796, %798 : vector<2x16xf32>
    %c8_172 = arith.constant 8 : index
    %c0_173 = arith.constant 0 : index
    %800 = vector.load %arg19[%c8_172, %c0_173] : memref<16x32xf32, #tpu.memory_space<vmem>>, vector<2x16xf32>
    tpu.vector_store %arg19[%c8_172, %c0_173], %773 {strides = array<i32>} : memref<16x32xf32, #tpu.memory_space<vmem>>, vector<2x16xf32>,
    %c6_174 = arith.constant 6 : index
    %c16_175 = arith.constant 16 : index
    %801 = vector.load %arg19[%c6_174, %c16_175] : memref<16x32xf32, #tpu.memory_space<vmem>>, vector<2x16xf32>
    tpu.vector_store %arg19[%c6_174, %c16_175], %799 {strides = array<i32>} : memref<16x32xf32, #tpu.memory_space<vmem>>, vector<2x16xf32>,
    %cst_176 = arith.constant dense<0.000000e+00> : vector<2x48xf32>
    %802 = tpu.matmul %773, %496, %cst_176 {dimension_numbers = #tpu.dot_dimension_numbers<[1], [0], [0], [1], [0, 0, 1, 1], [], []>} : vector<2x16xf32>, vector<16x48xf32>, vector<2x48xf32> -> vector<2x48xf32>
    %cst_177 = arith.constant dense<0.000000e+00> : vector<2x48xf32>
    %803 = tpu.matmul %799, %500, %cst_177 {dimension_numbers = #tpu.dot_dimension_numbers<[1], [0], [0], [1], [0, 0, 1, 1], [], []>} : vector<2x16xf32>, vector<16x48xf32>, vector<2x48xf32> -> vector<2x48xf32>
    %804 = vector.extract_strided_slice %506 {offsets = [10, 0], sizes = [2, 48], strides = [1, 1]} : vector<16x48xf32> to vector<2x48xf32>
    %805 = vector.extract_strided_slice %509 {offsets = [4, 0], sizes = [2, 48], strides = [1, 1]} : vector<16x48xf32> to vector<2x48xf32>
    %806 = vector.extract_strided_slice %804 {offsets = [0, 0], sizes = [2, 16], strides = [1, 1]} : vector<2x48xf32> to vector<2x16xf32>
    %807 = vector.extract_strided_slice %802 {offsets = [0, 0], sizes = [2, 16], strides = [1, 1]} : vector<2x48xf32> to vector<2x16xf32>
    %808 = arith.addf %806, %807 : vector<2x16xf32>
    %809 = arith.negf %808 : vector<2x16xf32>
    %810 = math.exp %809 : vector<2x16xf32>
    %cst_178 = arith.constant 1.000000e+00 : f32
    %811 = vector.broadcast %cst_178 : f32 to vector<2x16xf32>
    %812 = arith.addf %811, %810 : vector<2x16xf32>
    %813 = arith.divf %811, %812 : vector<2x16xf32>
    %814 = vector.extract_strided_slice %804 {offsets = [0, 16], sizes = [2, 16], strides = [1, 1]} : vector<2x48xf32> to vector<2x16xf32>
    %815 = vector.extract_strided_slice %802 {offsets = [0, 16], sizes = [2, 16], strides = [1, 1]} : vector<2x48xf32> to vector<2x16xf32>
    %816 = arith.addf %814, %815 : vector<2x16xf32>
    %817 = arith.negf %816 : vector<2x16xf32>
    %818 = math.exp %817 : vector<2x16xf32>
    %cst_179 = arith.constant 1.000000e+00 : f32
    %819 = vector.broadcast %cst_179 : f32 to vector<2x16xf32>
    %820 = arith.addf %819, %818 : vector<2x16xf32>
    %821 = arith.divf %819, %820 : vector<2x16xf32>
    %822 = vector.extract_strided_slice %804 {offsets = [0, 32], sizes = [2, 16], strides = [1, 1]} : vector<2x48xf32> to vector<2x16xf32>
    %823 = vector.extract_strided_slice %802 {offsets = [0, 32], sizes = [2, 16], strides = [1, 1]} : vector<2x48xf32> to vector<2x16xf32>
    %824 = vector.broadcast %498 : vector<1x16xf32> to vector<2x16xf32>
    %825 = arith.addf %823, %824 : vector<2x16xf32>
    %826 = arith.mulf %813, %825 : vector<2x16xf32>
    %827 = arith.addf %822, %826 : vector<2x16xf32>
    %828 = math.tanh %827 : vector<2x16xf32>
    %829 = arith.subf %773, %828 : vector<2x16xf32>
    %830 = arith.mulf %821, %829 : vector<2x16xf32>
    %831 = arith.addf %828, %830 : vector<2x16xf32>
    %832 = vector.extract_strided_slice %805 {offsets = [0, 0], sizes = [2, 16], strides = [1, 1]} : vector<2x48xf32> to vector<2x16xf32>
    %833 = vector.extract_strided_slice %803 {offsets = [0, 0], sizes = [2, 16], strides = [1, 1]} : vector<2x48xf32> to vector<2x16xf32>
    %834 = arith.addf %832, %833 : vector<2x16xf32>
    %835 = arith.negf %834 : vector<2x16xf32>
    %836 = math.exp %835 : vector<2x16xf32>
    %cst_180 = arith.constant 1.000000e+00 : f32
    %837 = vector.broadcast %cst_180 : f32 to vector<2x16xf32>
    %838 = arith.addf %837, %836 : vector<2x16xf32>
    %839 = arith.divf %837, %838 : vector<2x16xf32>
    %840 = vector.extract_strided_slice %805 {offsets = [0, 16], sizes = [2, 16], strides = [1, 1]} : vector<2x48xf32> to vector<2x16xf32>
    %841 = vector.extract_strided_slice %803 {offsets = [0, 16], sizes = [2, 16], strides = [1, 1]} : vector<2x48xf32> to vector<2x16xf32>
    %842 = arith.addf %840, %841 : vector<2x16xf32>
    %843 = arith.negf %842 : vector<2x16xf32>
    %844 = math.exp %843 : vector<2x16xf32>
    %cst_181 = arith.constant 1.000000e+00 : f32
    %845 = vector.broadcast %cst_181 : f32 to vector<2x16xf32>
    %846 = arith.addf %845, %844 : vector<2x16xf32>
    %847 = arith.divf %845, %846 : vector<2x16xf32>
    %848 = vector.extract_strided_slice %805 {offsets = [0, 32], sizes = [2, 16], strides = [1, 1]} : vector<2x48xf32> to vector<2x16xf32>
    %849 = vector.extract_strided_slice %803 {offsets = [0, 32], sizes = [2, 16], strides = [1, 1]} : vector<2x48xf32> to vector<2x16xf32>
    %850 = vector.broadcast %502 : vector<1x16xf32> to vector<2x16xf32>
    %851 = arith.addf %849, %850 : vector<2x16xf32>
    %852 = arith.mulf %839, %851 : vector<2x16xf32>
    %853 = arith.addf %848, %852 : vector<2x16xf32>
    %854 = math.tanh %853 : vector<2x16xf32>
    %855 = arith.subf %799, %854 : vector<2x16xf32>
    %856 = arith.mulf %847, %855 : vector<2x16xf32>
    %857 = arith.addf %854, %856 : vector<2x16xf32>
    %c10_182 = arith.constant 10 : index
    %c0_183 = arith.constant 0 : index
    %858 = vector.load %arg19[%c10_182, %c0_183] : memref<16x32xf32, #tpu.memory_space<vmem>>, vector<2x16xf32>
    tpu.vector_store %arg19[%c10_182, %c0_183], %831 {strides = array<i32>} : memref<16x32xf32, #tpu.memory_space<vmem>>, vector<2x16xf32>,
    %c4_184 = arith.constant 4 : index
    %c16_185 = arith.constant 16 : index
    %859 = vector.load %arg19[%c4_184, %c16_185] : memref<16x32xf32, #tpu.memory_space<vmem>>, vector<2x16xf32>
    tpu.vector_store %arg19[%c4_184, %c16_185], %857 {strides = array<i32>} : memref<16x32xf32, #tpu.memory_space<vmem>>, vector<2x16xf32>,
    %cst_186 = arith.constant dense<0.000000e+00> : vector<2x48xf32>
    %860 = tpu.matmul %831, %496, %cst_186 {dimension_numbers = #tpu.dot_dimension_numbers<[1], [0], [0], [1], [0, 0, 1, 1], [], []>} : vector<2x16xf32>, vector<16x48xf32>, vector<2x48xf32> -> vector<2x48xf32>
    %cst_187 = arith.constant dense<0.000000e+00> : vector<2x48xf32>
    %861 = tpu.matmul %857, %500, %cst_187 {dimension_numbers = #tpu.dot_dimension_numbers<[1], [0], [0], [1], [0, 0, 1, 1], [], []>} : vector<2x16xf32>, vector<16x48xf32>, vector<2x48xf32> -> vector<2x48xf32>
    %862 = vector.extract_strided_slice %506 {offsets = [12, 0], sizes = [2, 48], strides = [1, 1]} : vector<16x48xf32> to vector<2x48xf32>
    %863 = vector.extract_strided_slice %509 {offsets = [2, 0], sizes = [2, 48], strides = [1, 1]} : vector<16x48xf32> to vector<2x48xf32>
    %864 = vector.extract_strided_slice %862 {offsets = [0, 0], sizes = [2, 16], strides = [1, 1]} : vector<2x48xf32> to vector<2x16xf32>
    %865 = vector.extract_strided_slice %860 {offsets = [0, 0], sizes = [2, 16], strides = [1, 1]} : vector<2x48xf32> to vector<2x16xf32>
    %866 = arith.addf %864, %865 : vector<2x16xf32>
    %867 = arith.negf %866 : vector<2x16xf32>
    %868 = math.exp %867 : vector<2x16xf32>
    %cst_188 = arith.constant 1.000000e+00 : f32
    %869 = vector.broadcast %cst_188 : f32 to vector<2x16xf32>
    %870 = arith.addf %869, %868 : vector<2x16xf32>
    %871 = arith.divf %869, %870 : vector<2x16xf32>
    %872 = vector.extract_strided_slice %862 {offsets = [0, 16], sizes = [2, 16], strides = [1, 1]} : vector<2x48xf32> to vector<2x16xf32>
    %873 = vector.extract_strided_slice %860 {offsets = [0, 16], sizes = [2, 16], strides = [1, 1]} : vector<2x48xf32> to vector<2x16xf32>
    %874 = arith.addf %872, %873 : vector<2x16xf32>
    %875 = arith.negf %874 : vector<2x16xf32>
    %876 = math.exp %875 : vector<2x16xf32>
    %cst_189 = arith.constant 1.000000e+00 : f32
    %877 = vector.broadcast %cst_189 : f32 to vector<2x16xf32>
    %878 = arith.addf %877, %876 : vector<2x16xf32>
    %879 = arith.divf %877, %878 : vector<2x16xf32>
    %880 = vector.extract_strided_slice %862 {offsets = [0, 32], sizes = [2, 16], strides = [1, 1]} : vector<2x48xf32> to vector<2x16xf32>
    %881 = vector.extract_strided_slice %860 {offsets = [0, 32], sizes = [2, 16], strides = [1, 1]} : vector<2x48xf32> to vector<2x16xf32>
    %882 = vector.broadcast %498 : vector<1x16xf32> to vector<2x16xf32>
    %883 = arith.addf %881, %882 : vector<2x16xf32>
    %884 = arith.mulf %871, %883 : vector<2x16xf32>
    %885 = arith.addf %880, %884 : vector<2x16xf32>
    %886 = math.tanh %885 : vector<2x16xf32>
    %887 = arith.subf %831, %886 : vector<2x16xf32>
    %888 = arith.mulf %879, %887 : vector<2x16xf32>
    %889 = arith.addf %886, %888 : vector<2x16xf32>
    %890 = vector.extract_strided_slice %863 {offsets = [0, 0], sizes = [2, 16], strides = [1, 1]} : vector<2x48xf32> to vector<2x16xf32>
    %891 = vector.extract_strided_slice %861 {offsets = [0, 0], sizes = [2, 16], strides = [1, 1]} : vector<2x48xf32> to vector<2x16xf32>
    %892 = arith.addf %890, %891 : vector<2x16xf32>
    %893 = arith.negf %892 : vector<2x16xf32>
    %894 = math.exp %893 : vector<2x16xf32>
    %cst_190 = arith.constant 1.000000e+00 : f32
    %895 = vector.broadcast %cst_190 : f32 to vector<2x16xf32>
    %896 = arith.addf %895, %894 : vector<2x16xf32>
    %897 = arith.divf %895, %896 : vector<2x16xf32>
    %898 = vector.extract_strided_slice %863 {offsets = [0, 16], sizes = [2, 16], strides = [1, 1]} : vector<2x48xf32> to vector<2x16xf32>
    %899 = vector.extract_strided_slice %861 {offsets = [0, 16], sizes = [2, 16], strides = [1, 1]} : vector<2x48xf32> to vector<2x16xf32>
    %900 = arith.addf %898, %899 : vector<2x16xf32>
    %901 = arith.negf %900 : vector<2x16xf32>
    %902 = math.exp %901 : vector<2x16xf32>
    %cst_191 = arith.constant 1.000000e+00 : f32
    %903 = vector.broadcast %cst_191 : f32 to vector<2x16xf32>
    %904 = arith.addf %903, %902 : vector<2x16xf32>
    %905 = arith.divf %903, %904 : vector<2x16xf32>
    %906 = vector.extract_strided_slice %863 {offsets = [0, 32], sizes = [2, 16], strides = [1, 1]} : vector<2x48xf32> to vector<2x16xf32>
    %907 = vector.extract_strided_slice %861 {offsets = [0, 32], sizes = [2, 16], strides = [1, 1]} : vector<2x48xf32> to vector<2x16xf32>
    %908 = vector.broadcast %502 : vector<1x16xf32> to vector<2x16xf32>
    %909 = arith.addf %907, %908 : vector<2x16xf32>
    %910 = arith.mulf %897, %909 : vector<2x16xf32>
    %911 = arith.addf %906, %910 : vector<2x16xf32>
    %912 = math.tanh %911 : vector<2x16xf32>
    %913 = arith.subf %857, %912 : vector<2x16xf32>
    %914 = arith.mulf %905, %913 : vector<2x16xf32>
    %915 = arith.addf %912, %914 : vector<2x16xf32>
    %c12_192 = arith.constant 12 : index
    %c0_193 = arith.constant 0 : index
    %916 = vector.load %arg19[%c12_192, %c0_193] : memref<16x32xf32, #tpu.memory_space<vmem>>, vector<2x16xf32>
    tpu.vector_store %arg19[%c12_192, %c0_193], %889 {strides = array<i32>} : memref<16x32xf32, #tpu.memory_space<vmem>>, vector<2x16xf32>,
    %c2_194 = arith.constant 2 : index
    %c16_195 = arith.constant 16 : index
    %917 = vector.load %arg19[%c2_194, %c16_195] : memref<16x32xf32, #tpu.memory_space<vmem>>, vector<2x16xf32>
    tpu.vector_store %arg19[%c2_194, %c16_195], %915 {strides = array<i32>} : memref<16x32xf32, #tpu.memory_space<vmem>>, vector<2x16xf32>,
    %cst_196 = arith.constant dense<0.000000e+00> : vector<2x48xf32>
    %918 = tpu.matmul %889, %496, %cst_196 {dimension_numbers = #tpu.dot_dimension_numbers<[1], [0], [0], [1], [0, 0, 1, 1], [], []>} : vector<2x16xf32>, vector<16x48xf32>, vector<2x48xf32> -> vector<2x48xf32>
    %cst_197 = arith.constant dense<0.000000e+00> : vector<2x48xf32>
    %919 = tpu.matmul %915, %500, %cst_197 {dimension_numbers = #tpu.dot_dimension_numbers<[1], [0], [0], [1], [0, 0, 1, 1], [], []>} : vector<2x16xf32>, vector<16x48xf32>, vector<2x48xf32> -> vector<2x48xf32>
    %920 = vector.extract_strided_slice %506 {offsets = [14, 0], sizes = [2, 48], strides = [1, 1]} : vector<16x48xf32> to vector<2x48xf32>
    %921 = vector.extract_strided_slice %509 {offsets = [0, 0], sizes = [2, 48], strides = [1, 1]} : vector<16x48xf32> to vector<2x48xf32>
    %922 = vector.extract_strided_slice %920 {offsets = [0, 0], sizes = [2, 16], strides = [1, 1]} : vector<2x48xf32> to vector<2x16xf32>
    %923 = vector.extract_strided_slice %918 {offsets = [0, 0], sizes = [2, 16], strides = [1, 1]} : vector<2x48xf32> to vector<2x16xf32>
    %924 = arith.addf %922, %923 : vector<2x16xf32>
    %925 = arith.negf %924 : vector<2x16xf32>
    %926 = math.exp %925 : vector<2x16xf32>
    %cst_198 = arith.constant 1.000000e+00 : f32
    %927 = vector.broadcast %cst_198 : f32 to vector<2x16xf32>
    %928 = arith.addf %927, %926 : vector<2x16xf32>
    %929 = arith.divf %927, %928 : vector<2x16xf32>
    %930 = vector.extract_strided_slice %920 {offsets = [0, 16], sizes = [2, 16], strides = [1, 1]} : vector<2x48xf32> to vector<2x16xf32>
    %931 = vector.extract_strided_slice %918 {offsets = [0, 16], sizes = [2, 16], strides = [1, 1]} : vector<2x48xf32> to vector<2x16xf32>
    %932 = arith.addf %930, %931 : vector<2x16xf32>
    %933 = arith.negf %932 : vector<2x16xf32>
    %934 = math.exp %933 : vector<2x16xf32>
    %cst_199 = arith.constant 1.000000e+00 : f32
    %935 = vector.broadcast %cst_199 : f32 to vector<2x16xf32>
    %936 = arith.addf %935, %934 : vector<2x16xf32>
    %937 = arith.divf %935, %936 : vector<2x16xf32>
    %938 = vector.extract_strided_slice %920 {offsets = [0, 32], sizes = [2, 16], strides = [1, 1]} : vector<2x48xf32> to vector<2x16xf32>
    %939 = vector.extract_strided_slice %918 {offsets = [0, 32], sizes = [2, 16], strides = [1, 1]} : vector<2x48xf32> to vector<2x16xf32>
    %940 = vector.broadcast %498 : vector<1x16xf32> to vector<2x16xf32>
    %941 = arith.addf %939, %940 : vector<2x16xf32>
    %942 = arith.mulf %929, %941 : vector<2x16xf32>
    %943 = arith.addf %938, %942 : vector<2x16xf32>
    %944 = math.tanh %943 : vector<2x16xf32>
    %945 = arith.subf %889, %944 : vector<2x16xf32>
    %946 = arith.mulf %937, %945 : vector<2x16xf32>
    %947 = arith.addf %944, %946 : vector<2x16xf32>
    %948 = vector.extract_strided_slice %921 {offsets = [0, 0], sizes = [2, 16], strides = [1, 1]} : vector<2x48xf32> to vector<2x16xf32>
    %949 = vector.extract_strided_slice %919 {offsets = [0, 0], sizes = [2, 16], strides = [1, 1]} : vector<2x48xf32> to vector<2x16xf32>
    %950 = arith.addf %948, %949 : vector<2x16xf32>
    %951 = arith.negf %950 : vector<2x16xf32>
    %952 = math.exp %951 : vector<2x16xf32>
    %cst_200 = arith.constant 1.000000e+00 : f32
    %953 = vector.broadcast %cst_200 : f32 to vector<2x16xf32>
    %954 = arith.addf %953, %952 : vector<2x16xf32>
    %955 = arith.divf %953, %954 : vector<2x16xf32>
    %956 = vector.extract_strided_slice %921 {offsets = [0, 16], sizes = [2, 16], strides = [1, 1]} : vector<2x48xf32> to vector<2x16xf32>
    %957 = vector.extract_strided_slice %919 {offsets = [0, 16], sizes = [2, 16], strides = [1, 1]} : vector<2x48xf32> to vector<2x16xf32>
    %958 = arith.addf %956, %957 : vector<2x16xf32>
    %959 = arith.negf %958 : vector<2x16xf32>
    %960 = math.exp %959 : vector<2x16xf32>
    %cst_201 = arith.constant 1.000000e+00 : f32
    %961 = vector.broadcast %cst_201 : f32 to vector<2x16xf32>
    %962 = arith.addf %961, %960 : vector<2x16xf32>
    %963 = arith.divf %961, %962 : vector<2x16xf32>
    %964 = vector.extract_strided_slice %921 {offsets = [0, 32], sizes = [2, 16], strides = [1, 1]} : vector<2x48xf32> to vector<2x16xf32>
    %965 = vector.extract_strided_slice %919 {offsets = [0, 32], sizes = [2, 16], strides = [1, 1]} : vector<2x48xf32> to vector<2x16xf32>
    %966 = vector.broadcast %502 : vector<1x16xf32> to vector<2x16xf32>
    %967 = arith.addf %965, %966 : vector<2x16xf32>
    %968 = arith.mulf %955, %967 : vector<2x16xf32>
    %969 = arith.addf %964, %968 : vector<2x16xf32>
    %970 = math.tanh %969 : vector<2x16xf32>
    %971 = arith.subf %915, %970 : vector<2x16xf32>
    %972 = arith.mulf %963, %971 : vector<2x16xf32>
    %973 = arith.addf %970, %972 : vector<2x16xf32>
    %c14_202 = arith.constant 14 : index
    %c0_203 = arith.constant 0 : index
    %974 = vector.load %arg19[%c14_202, %c0_203] : memref<16x32xf32, #tpu.memory_space<vmem>>, vector<2x16xf32>
    tpu.vector_store %arg19[%c14_202, %c0_203], %947 {strides = array<i32>} : memref<16x32xf32, #tpu.memory_space<vmem>>, vector<2x16xf32>,
    %c0_204 = arith.constant 0 : index
    %c16_205 = arith.constant 16 : index
    %975 = vector.load %arg19[%c0_204, %c16_205] : memref<16x32xf32, #tpu.memory_space<vmem>>, vector<2x16xf32>
    tpu.vector_store %arg19[%c0_204, %c16_205], %973 {strides = array<i32>} : memref<16x32xf32, #tpu.memory_space<vmem>>, vector<2x16xf32>,
    %cst_206 = arith.constant dense<0.000000e+00> : vector<2x32xf32>
    %976 = tpu.matmul %947, %1, %cst_206 {dimension_numbers = #tpu.dot_dimension_numbers<[1], [0], [0], [1], [0, 0, 1, 1], [], []>} : vector<2x16xf32>, vector<16x32xf32>, vector<2x32xf32> -> vector<2x32xf32>
    %cst_207 = arith.constant dense<0.000000e+00> : vector<2x32xf32>
    %977 = tpu.matmul %973, %3, %cst_207 {dimension_numbers = #tpu.dot_dimension_numbers<[1], [0], [0], [1], [0, 0, 1, 1], [], []>} : vector<2x16xf32>, vector<16x32xf32>, vector<2x32xf32> -> vector<2x32xf32>
    %978 = arith.addf %976, %977 : vector<2x32xf32>
    %979 = vector.broadcast %4 : vector<1x32xf32> to vector<2x32xf32>
    %980 = arith.addf %978, %979 : vector<2x32xf32>
    %981 = math.tanh %980 : vector<2x32xf32>
    %c1_208 = arith.constant 1 : index
    %c0_209 = arith.constant 0 : index
    %c0_210 = arith.constant 0 : index
    %982 = vector.load %arg20[%c1_208, %c0_209, %c0_210] : memref<2x2x32xf32, #tpu.memory_space<vmem>>, vector<1x2x32xf32>
    %983 = vector.shape_cast %982 : vector<1x2x32xf32> to vector<2x32xf32>
    %984 = vector.shape_cast %981 : vector<2x32xf32> to vector<1x2x32xf32>
    tpu.vector_store %arg20[%c1_208, %c0_209, %c0_210], %984 {strides = array<i32>} : memref<2x2x32xf32, #tpu.memory_space<vmem>>, vector<1x2x32xf32>,
    return
  }
}

</mosaic_0001>

<llo_original>
// kernel: tpu_custom_call.1
$region0: #{tpu_custom_call.1}
  #allocation0 [shape = 'u32[]', space=smem, size = 0x4, offset = 0x4, fixed_abs, tag = 'smem constant byte address 0x4 - core index']
  #allocation1 [shape = 'u32[144,128]{1,0:T(1,128)}', space=vmem, size = 0x12000, scoped, tag = 'internal scratch']
  #allocation2 [shape = 'f32[16,32]{1,0:T(8,128)}', space=vmem, size = 0x2000, scoped, tag = 'scratch operand']
  %s0 = inlined_call_operand.hbm [shape: f32[16,32], index: 0, kind: input, shape index: {}]
  %s1 = inlined_call_operand.hbm [shape: f32[32,48], index: 1, kind: input, shape index: {}]
  %s2 = inlined_call_operand.hbm [shape: f32[16,48], index: 2, kind: input, shape index: {}]
  %s3 = inlined_call_operand.hbm [shape: f32[1,48], index: 3, kind: input, shape index: {}]
  %s4 = inlined_call_operand.hbm [shape: f32[1,16], index: 4, kind: input, shape index: {}]
  %s5 = inlined_call_operand.hbm [shape: f32[32,48], index: 5, kind: input, shape index: {}]
  %s6 = inlined_call_operand.hbm [shape: f32[16,48], index: 6, kind: input, shape index: {}]
  %s7 = inlined_call_operand.hbm [shape: f32[1,48], index: 7, kind: input, shape index: {}]
  %s8 = inlined_call_operand.hbm [shape: f32[1,16], index: 8, kind: input, shape index: {}]
  %s9 = inlined_call_operand.vmem [shape: f32[32,48], index: 9, kind: input, shape index: {}]
  %s10 = inlined_call_operand.hbm [shape: f32[16,48], index: 10, kind: input, shape index: {}]
  %s11 = inlined_call_operand.hbm [shape: f32[1,48], index: 11, kind: input, shape index: {}]
  %s12 = inlined_call_operand.hbm [shape: f32[1,16], index: 12, kind: input, shape index: {}]
  %s13 = inlined_call_operand.hbm [shape: f32[32,48], index: 13, kind: input, shape index: {}]
  %s14 = inlined_call_operand.hbm [shape: f32[16,48], index: 14, kind: input, shape index: {}]
  %s15 = inlined_call_operand.hbm [shape: f32[1,48], index: 15, kind: input, shape index: {}]
  %s16 = inlined_call_operand.hbm [shape: f32[1,16], index: 16, kind: input, shape index: {}]
  %s17 = inlined_call_operand.vmem [shape: f32[2,16,32], index: 17, kind: input, shape index: {}]
  %s18 = inlined_call_operand.vmem [shape: f32[1,32], index: 18, kind: input, shape index: {}]
  %s19 = inlined_call_operand.hbm [shape: f32[16,32], index: 19, kind: output, shape index: {0}]
  %s20 = inlined_call_operand.hbm [shape: f32[2,2,32], index: 20, kind: output, shape index: {1}]
  %21 = xla_tuple %s19, %s20
  %s22 = sld [smem:[#allocation0]]
  $region158: #{tpu_custom_call.1} parent=0
    _
  %s24 = ssub.s32 1, %s22
  %s25 = scalar_select 0, %s24, %s22
  $region1: #{tpu_custom_call.1} parent=0
    #allocation3 [shape = 'u8[8192]{0}', space=vmem, size = 0x2000, scoped, tag = 'input window, operand 0, single buffered']
    #allocation4 [shape = 's32[1]{0}', space=sflag, size = 0x4, scoped, tag = 'scoped memory for tpu_custom_call.1']
    #allocation5 [shape = 's32[1]{0}', space=sflag, size = 0x4, scoped, tag = 'scoped memory for tpu_custom_call.1']
    #allocation6 [shape = 'u8[16384]{0}', space=vmem, size = 0x4000, scoped, tag = 'input window, operand 1, single buffered']
    #allocation7 [shape = 's32[1]{0}', space=sflag, size = 0x4, scoped, tag = 'scoped memory for tpu_custom_call.1']
    #allocation8 [shape = 'u8[8192]{0}', space=vmem, size = 0x2000, scoped, tag = 'input window, operand 2, single buffered']
    #allocation9 [shape = 'u8[512]{0}', space=vmem, size = 0x400, scoped, tag = 'input window, operand 3, single buffered']
    #allocation10 [shape = 's32[1]{0}', space=sflag, size = 0x4, scoped, tag = 'scoped memory for tpu_custom_call.1']
    #allocation11 [shape = 'u8[512]{0}', space=vmem, size = 0x400, scoped, tag = 'input window, operand 4, single buffered']
    #allocation12 [shape = 'u8[16384]{0}', space=vmem, size = 0x4000, scoped, tag = 'input window, operand 5, single buffered']
    #allocation13 [shape = 's32[1]{0}', space=sflag, size = 0x4, scoped, tag = 'scoped memory for tpu_custom_call.1']
    #allocation14 [shape = 'u8[8192]{0}', space=vmem, size = 0x2000, scoped, tag = 'input window, operand 6, single buffered']
    #allocation15 [shape = 'u8[512]{0}', space=vmem, size = 0x400, scoped, tag = 'input window, operand 7, single buffered']
    #allocation16 [shape = 's32[1]{0}', space=sflag, size = 0x4, scoped, tag = 'scoped memory for tpu_custom_call.1']
    #allocation17 [shape = 'u8[512]{0}', space=vmem, size = 0x400, scoped, tag = 'input window, operand 8, single buffered']
    #allocation18 [shape = 'u8[8192]{0}', space=vmem, size = 0x2000, scoped, tag = 'input window, operand 10, single buffered']
    #allocation19 [shape = 's32[1]{0}', space=sflag, size = 0x4, scoped, tag = 'scoped memory for tpu_custom_call.1']
    #allocation20 [shape = 'u8[512]{0}', space=vmem, size = 0x400, scoped, tag = 'input window, operand 11, single buffered']
    #allocation21 [shape = 'u8[512]{0}', space=vmem, size = 0x400, scoped, tag = 'input window, operand 12, single buffered']
    #allocation22 [shape = 's32[1]{0}', space=sflag, size = 0x4, scoped, tag = 'scoped memory for tpu_custom_call.1']
    #allocation23 [shape = 'u8[16384]{0}', space=vmem, size = 0x4000, scoped, tag = 'input window, operand 13, single buffered']
    #allocation24 [shape = 'u8[8192]{0}', space=vmem, size = 0x2000, scoped, tag = 'input window, operand 14, single buffered']
    #allocation25 [shape = 's32[1]{0}', space=sflag, size = 0x4, scoped, tag = 'scoped memory for tpu_custom_call.1']
    #allocation26 [shape = 'u8[512]{0}', space=vmem, size = 0x400, scoped, tag = 'input window, operand 15, single buffered']
    #allocation27 [shape = 'u8[512]{0}', space=vmem, size = 0x400, scoped, tag = 'input window, operand 16, single buffered']
    #allocation28 [shape = 's32[1]{0}', space=sflag, size = 0x4, scoped, tag = 'scoped memory for tpu_custom_call.1']
    #allocation29 [shape = 'u8[8192]{0}', space=vmem, size = 0x2000, scoped, tag = 'output window, operand 0, single buffered']
    #allocation30 [shape = 'u8[2048]{0}', space=vmem, size = 0x800, scoped, tag = 'output window, operand 1, single buffered']
    #allocation31 [shape = 's32[1]{0}', space=sflag, size = 0x4, scoped, tag = 'scoped memory for tpu_custom_call.1']
    %26 = vsyncpa [#allocation4], 0
    %27 = vsyncpa [#allocation7], 0
    %28 = vsyncpa [#allocation10], 0
    %29 = vsyncpa [#allocation13], 0
    %30 = vsyncpa [#allocation16], 0
    %31 = vsyncpa [#allocation19], 0
    %32 = vsyncpa [#allocation22], 0
    %33 = vsyncpa [#allocation25], 0
    %34 = vsyncpa [#allocation28], 0
    %35 = vsyncpa [#allocation5], 0
    %36 = vsyncpa [#allocation31], 0
    // Predicated region
    $region2: #{tpu_custom_call.1} parent=1 // pred_check
      _
    $region3: #{tpu_custom_call.1} parent=1 // pred_check_branch
      %38 = sbr.rel (0) target = $region5
    $region4: #{tpu_custom_call.1} parent=1 // pred_region
      %s40 = ssub.s32 256, 256
      %41 = vsyncadd [#allocation4], %s40
      %s42 = sshll.u32 [#allocation3], 4
      %s43 = int_to_ptr.vmem [resolvable:$true] %s42
      %48 = dma.hbm_to_vmem [thread:$0]  %s0, 256, %s43, [#allocation4], 128, 128, 8
    $region5: #{tpu_custom_call.1} parent=1 // pred_fallthru
      _
    // Predicated region
    $region6: #{tpu_custom_call.1} parent=1 // pred_check
      _
    $region7: #{tpu_custom_call.1} parent=1 // pred_check_branch
      %50 = sbr.rel (0) target = $region9
    $region8: #{tpu_custom_call.1} parent=1 // pred_region
      %s52 = ssub.s32 512, 512
      %53 = vsyncadd [#allocation7], %s52
      %s54 = sshll.u32 [#allocation6], 4
      %s55 = int_to_ptr.vmem [resolvable:$true] %s54
      %60 = dma.hbm_to_vmem [thread:$0]  %s1, 512, %s55, [#allocation7], 128, 128, 8
    $region9: #{tpu_custom_call.1} parent=1 // pred_fallthru
      _
    // Predicated region
    $region10: #{tpu_custom_call.1} parent=1 // pred_check
      _
    $region11: #{tpu_custom_call.1} parent=1 // pred_check_branch
      %62 = sbr.rel (0) target = $region13
    $region12: #{tpu_custom_call.1} parent=1 // pred_region
      %s64 = ssub.s32 256, 256
      %65 = vsyncadd [#allocation7], %s64
      %s66 = sshll.u32 [#allocation8], 4
      %s67 = int_to_ptr.vmem [resolvable:$true] %s66
      %72 = dma.hbm_to_vmem [thread:$0]  %s2, 256, %s67, [#allocation7], 128, 128, 8
    $region13: #{tpu_custom_call.1} parent=1 // pred_fallthru
      _
    // Predicated region
    $region14: #{tpu_custom_call.1} parent=1 // pred_check
      _
    $region15: #{tpu_custom_call.1} parent=1 // pred_check_branch
      %74 = sbr.rel (0) target = $region17
    $region16: #{tpu_custom_call.1} parent=1 // pred_region
      %s76 = ssub.s32 16, 16
      %77 = vsyncadd [#allocation10], %s76
      %s79 = sshll.u32 [#allocation9], 4
      %s80 = int_to_ptr.vmem [resolvable:$true] %s79
      %82 = dma.hbm_to_vmem [thread:$0]  %s3, 16, %s80, [#allocation10]
    $region17: #{tpu_custom_call.1} parent=1 // pred_fallthru
      _
    // Predicated region
    $region18: #{tpu_custom_call.1} parent=1 // pred_check
      _
    $region19: #{tpu_custom_call.1} parent=1 // pred_check_branch
      %84 = sbr.rel (0) target = $region21
    $region20: #{tpu_custom_call.1} parent=1 // pred_region
      %s86 = ssub.s32 16, 16
      %87 = vsyncadd [#allocation10], %s86
      %s89 = sshll.u32 [#allocation11], 4
      %s90 = int_to_ptr.vmem [resolvable:$true] %s89
      %92 = dma.hbm_to_vmem [thread:$0]  %s4, 16, %s90, [#allocation10]
    $region21: #{tpu_custom_call.1} parent=1 // pred_fallthru
      _
    // Predicated region
    $region22: #{tpu_custom_call.1} parent=1 // pred_check
      _
    $region23: #{tpu_custom_call.1} parent=1 // pred_check_branch
      %94 = sbr.rel (0) target = $region25
    $region24: #{tpu_custom_call.1} parent=1 // pred_region
      %s96 = ssub.s32 512, 512
      %97 = vsyncadd [#allocation13], %s96
      %s98 = sshll.u32 [#allocation12], 4
      %s99 = int_to_ptr.vmem [resolvable:$true] %s98
      %104 = dma.hbm_to_vmem [thread:$0]  %s5, 512, %s99, [#allocation13], 128, 128, 8
    $region25: #{tpu_custom_call.1} parent=1 // pred_fallthru
      _
    // Predicated region
    $region26: #{tpu_custom_call.1} parent=1 // pred_check
      _
    $region27: #{tpu_custom_call.1} parent=1 // pred_check_branch
      %106 = sbr.rel (0) target = $region29
    $region28: #{tpu_custom_call.1} parent=1 // pred_region
      %s108 = ssub.s32 256, 256
      %109 = vsyncadd [#allocation13], %s108
      %s110 = sshll.u32 [#allocation14], 4
      %s111 = int_to_ptr.vmem [resolvable:$true] %s110
      %116 = dma.hbm_to_vmem [thread:$0]  %s6, 256, %s111, [#allocation13], 128, 128, 8
    $region29: #{tpu_custom_call.1} parent=1 // pred_fallthru
      _
    // Predicated region
    $region30: #{tpu_custom_call.1} parent=1 // pred_check
      _
    $region31: #{tpu_custom_call.1} parent=1 // pred_check_branch
      %118 = sbr.rel (0) target = $region33
    $region32: #{tpu_custom_call.1} parent=1 // pred_region
      %s120 = ssub.s32 16, 16
      %121 = vsyncadd [#allocation16], %s120
      %s123 = sshll.u32 [#allocation15], 4
      %s124 = int_to_ptr.vmem [resolvable:$true] %s123
      %126 = dma.hbm_to_vmem [thread:$0]  %s7, 16, %s124, [#allocation16]
    $region33: #{tpu_custom_call.1} parent=1 // pred_fallthru
      _
    // Predicated region
    $region34: #{tpu_custom_call.1} parent=1 // pred_check
      _
    $region35: #{tpu_custom_call.1} parent=1 // pred_check_branch
      %128 = sbr.rel (0) target = $region37
    $region36: #{tpu_custom_call.1} parent=1 // pred_region
      %s130 = ssub.s32 16, 16
      %131 = vsyncadd [#allocation16], %s130
      %s133 = sshll.u32 [#allocation17], 4
      %s134 = int_to_ptr.vmem [resolvable:$true] %s133
      %136 = dma.hbm_to_vmem [thread:$0]  %s8, 16, %s134, [#allocation16]
    $region37: #{tpu_custom_call.1} parent=1 // pred_fallthru
      _
    // Predicated region
    $region38: #{tpu_custom_call.1} parent=1 // pred_check
      _
    $region39: #{tpu_custom_call.1} parent=1 // pred_check_branch
      %138 = sbr.rel (0) target = $region41
    $region40: #{tpu_custom_call.1} parent=1 // pred_region
      _
    $region41: #{tpu_custom_call.1} parent=1 // pred_fallthru
      _
    // Predicated region
    $region42: #{tpu_custom_call.1} parent=1 // pred_check
      _
    $region43: #{tpu_custom_call.1} parent=1 // pred_check_branch
      %140 = sbr.rel (0) target = $region45
    $region44: #{tpu_custom_call.1} parent=1 // pred_region
      %s142 = ssub.s32 256, 256
      %143 = vsyncadd [#allocation19], %s142
      %s144 = sshll.u32 [#allocation18], 4
      %s145 = int_to_ptr.vmem [resolvable:$true] %s144
      %150 = dma.hbm_to_vmem [thread:$0]  %s10, 256, %s145, [#allocation19], 128, 128, 8
    $region45: #{tpu_custom_call.1} parent=1 // pred_fallthru
      _
    // Predicated region
    $region46: #{tpu_custom_call.1} parent=1 // pred_check
      _
    $region47: #{tpu_custom_call.1} parent=1 // pred_check_branch
      %152 = sbr.rel (0) target = $region49
    $region48: #{tpu_custom_call.1} parent=1 // pred_region
      %s154 = ssub.s32 16, 16
      %155 = vsyncadd [#allocation19], %s154
      %s157 = sshll.u32 [#allocation20], 4
      %s158 = int_to_ptr.vmem [resolvable:$true] %s157
      %160 = dma.hbm_to_vmem [thread:$0]  %s11, 16, %s158, [#allocation19]
    $region49: #{tpu_custom_call.1} parent=1 // pred_fallthru
      _
    // Predicated region
    $region50: #{tpu_custom_call.1} parent=1 // pred_check
      _
    $region51: #{tpu_custom_call.1} parent=1 // pred_check_branch
      %162 = sbr.rel (0) target = $region53
    $region52: #{tpu_custom_call.1} parent=1 // pred_region
      %s164 = ssub.s32 16, 16
      %165 = vsyncadd [#allocation22], %s164
      %s167 = sshll.u32 [#allocation21], 4
      %s168 = int_to_ptr.vmem [resolvable:$true] %s167
      %170 = dma.hbm_to_vmem [thread:$0]  %s12, 16, %s168, [#allocation22]
    $region53: #{tpu_custom_call.1} parent=1 // pred_fallthru
      _
    // Predicated region
    $region54: #{tpu_custom_call.1} parent=1 // pred_check
      _
    $region55: #{tpu_custom_call.1} parent=1 // pred_check_branch
      %172 = sbr.rel (0) target = $region57
    $region56: #{tpu_custom_call.1} parent=1 // pred_region
      %s174 = ssub.s32 512, 512
      %175 = vsyncadd [#allocation22], %s174
      %s176 = sshll.u32 [#allocation23], 4
      %s177 = int_to_ptr.vmem [resolvable:$true] %s176
      %182 = dma.hbm_to_vmem [thread:$0]  %s13, 512, %s177, [#allocation22], 128, 128, 8
    $region57: #{tpu_custom_call.1} parent=1 // pred_fallthru
      _
    // Predicated region
    $region58: #{tpu_custom_call.1} parent=1 // pred_check
      _
    $region59: #{tpu_custom_call.1} parent=1 // pred_check_branch
      %184 = sbr.rel (0) target = $region61
    $region60: #{tpu_custom_call.1} parent=1 // pred_region
      %s186 = ssub.s32 256, 256
      %187 = vsyncadd [#allocation25], %s186
      %s188 = sshll.u32 [#allocation24], 4
      %s189 = int_to_ptr.vmem [resolvable:$true] %s188
      %194 = dma.hbm_to_vmem [thread:$0]  %s14, 256, %s189, [#allocation25], 128, 128, 8
    $region61: #{tpu_custom_call.1} parent=1 // pred_fallthru
      _
    // Predicated region
    $region62: #{tpu_custom_call.1} parent=1 // pred_check
      _
    $region63: #{tpu_custom_call.1} parent=1 // pred_check_branch
      %196 = sbr.rel (0) target = $region65
    $region64: #{tpu_custom_call.1} parent=1 // pred_region
      %s198 = ssub.s32 16, 16
      %199 = vsyncadd [#allocation25], %s198
      %s201 = sshll.u32 [#allocation26], 4
      %s202 = int_to_ptr.vmem [resolvable:$true] %s201
      %204 = dma.hbm_to_vmem [thread:$0]  %s15, 16, %s202, [#allocation25]
    $region65: #{tpu_custom_call.1} parent=1 // pred_fallthru
      _
    // Predicated region
    $region66: #{tpu_custom_call.1} parent=1 // pred_check
      _
    $region67: #{tpu_custom_call.1} parent=1 // pred_check_branch
      %206 = sbr.rel (0) target = $region69
    $region68: #{tpu_custom_call.1} parent=1 // pred_region
      %s208 = ssub.s32 16, 16
      %209 = vsyncadd [#allocation28], %s208
      %s211 = sshll.u32 [#allocation27], 4
      %s212 = int_to_ptr.vmem [resolvable:$true] %s211
      %214 = dma.hbm_to_vmem [thread:$0]  %s16, 16, %s212, [#allocation28]
    $region69: #{tpu_custom_call.1} parent=1 // pred_fallthru
      _
    // Predicated region
    $region70: #{tpu_custom_call.1} parent=1 // pred_check
      _
    $region71: #{tpu_custom_call.1} parent=1 // pred_check_branch
      %216 = sbr.rel (0) target = $region73
    $region72: #{tpu_custom_call.1} parent=1 // pred_region
      _
    $region73: #{tpu_custom_call.1} parent=1 // pred_fallthru
      _
    // Predicated region
    $region74: #{tpu_custom_call.1} parent=1 // pred_check
      _
    $region75: #{tpu_custom_call.1} parent=1 // pred_check_branch
      %218 = sbr.rel (0) target = $region77
    $region76: #{tpu_custom_call.1} parent=1 // pred_region
      _
    $region77: #{tpu_custom_call.1} parent=1 // pred_fallthru
      _
    // Predicated region
    $region78: #{tpu_custom_call.1} parent=1 // pred_check
      _
    $region79: #{tpu_custom_call.1} parent=1 // pred_check_branch
      %220 = sbr.rel (0) target = $region81
    $region80: #{tpu_custom_call.1} parent=1 // pred_region
      %221 = dma.done [#allocation4], 256
    $region81: #{tpu_custom_call.1} parent=1 // pred_fallthru
      _
    // Predicated region
    $region82: #{tpu_custom_call.1} parent=1 // pred_check
      _
    $region83: #{tpu_custom_call.1} parent=1 // pred_check_branch
      %223 = sbr.rel (0) target = $region85
    $region84: #{tpu_custom_call.1} parent=1 // pred_region
      %224 = dma.done [#allocation7], 512
    $region85: #{tpu_custom_call.1} parent=1 // pred_fallthru
      _
    // Predicated region
    $region86: #{tpu_custom_call.1} parent=1 // pred_check
      _
    $region87: #{tpu_custom_call.1} parent=1 // pred_check_branch
      %226 = sbr.rel (0) target = $region89
    $region88: #{tpu_custom_call.1} parent=1 // pred_region
      %227 = dma.done [#allocation7], 256
    $region89: #{tpu_custom_call.1} parent=1 // pred_fallthru
      _
    // Predicated region
    $region90: #{tpu_custom_call.1} parent=1 // pred_check
      _
    $region91: #{tpu_custom_call.1} parent=1 // pred_check_branch
      %229 = sbr.rel (0) target = $region93
    $region92: #{tpu_custom_call.1} parent=1 // pred_region
      %230 = dma.done [#allocation10], 16
    $region93: #{tpu_custom_call.1} parent=1 // pred_fallthru
      _
    // Predicated region
    $region94: #{tpu_custom_call.1} parent=1 // pred_check
      _
    $region95: #{tpu_custom_call.1} parent=1 // pred_check_branch
      %232 = sbr.rel (0) target = $region97
    $region96: #{tpu_custom_call.1} parent=1 // pred_region
      %233 = dma.done [#allocation10], 16
    $region97: #{tpu_custom_call.1} parent=1 // pred_fallthru
      _
    // Predicated region
    $region98: #{tpu_custom_call.1} parent=1 // pred_check
      _
    $region99: #{tpu_custom_call.1} parent=1 // pred_check_branch
      %235 = sbr.rel (0) target = $region101
    $region100: #{tpu_custom_call.1} parent=1 // pred_region
      %236 = dma.done [#allocation13], 512
    $region101: #{tpu_custom_call.1} parent=1 // pred_fallthru
      _
    // Predicated region
    $region102: #{tpu_custom_call.1} parent=1 // pred_check
      _
    $region103: #{tpu_custom_call.1} parent=1 // pred_check_branch
      %238 = sbr.rel (0) target = $region105
    $region104: #{tpu_custom_call.1} parent=1 // pred_region
      %239 = dma.done [#allocation13], 256
    $region105: #{tpu_custom_call.1} parent=1 // pred_fallthru
      _
    // Predicated region
    $region106: #{tpu_custom_call.1} parent=1 // pred_check
      _
    $region107: #{tpu_custom_call.1} parent=1 // pred_check_branch
      %241 = sbr.rel (0) target = $region109
    $region108: #{tpu_custom_call.1} parent=1 // pred_region
      %242 = dma.done [#allocation16], 16
    $region109: #{tpu_custom_call.1} parent=1 // pred_fallthru
      _
    // Predicated region
    $region110: #{tpu_custom_call.1} parent=1 // pred_check
      _
    $region111: #{tpu_custom_call.1} parent=1 // pred_check_branch
      %244 = sbr.rel (0) target = $region113
    $region112: #{tpu_custom_call.1} parent=1 // pred_region
      %245 = dma.done [#allocation16], 16
    $region113: #{tpu_custom_call.1} parent=1 // pred_fallthru
      _
    // Predicated region
    $region114: #{tpu_custom_call.1} parent=1 // pred_check
      _
    $region115: #{tpu_custom_call.1} parent=1 // pred_check_branch
      %247 = sbr.rel (0) target = $region117
    $region116: #{tpu_custom_call.1} parent=1 // pred_region
      %248 = dma.done [#allocation19], 256
    $region117: #{tpu_custom_call.1} parent=1 // pred_fallthru
      _
    // Predicated region
    $region118: #{tpu_custom_call.1} parent=1 // pred_check
      _
    $region119: #{tpu_custom_call.1} parent=1 // pred_check_branch
      %250 = sbr.rel (0) target = $region121
    $region120: #{tpu_custom_call.1} parent=1 // pred_region
      %251 = dma.done [#allocation19], 16
    $region121: #{tpu_custom_call.1} parent=1 // pred_fallthru
      _
    // Predicated region
    $region122: #{tpu_custom_call.1} parent=1 // pred_check
      _
    $region123: #{tpu_custom_call.1} parent=1 // pred_check_branch
      %253 = sbr.rel (0) target = $region125
    $region124: #{tpu_custom_call.1} parent=1 // pred_region
      %254 = dma.done [#allocation22], 16
    $region125: #{tpu_custom_call.1} parent=1 // pred_fallthru
      _
    // Predicated region
    $region126: #{tpu_custom_call.1} parent=1 // pred_check
      _
    $region127: #{tpu_custom_call.1} parent=1 // pred_check_branch
      %256 = sbr.rel (0) target = $region129
    $region128: #{tpu_custom_call.1} parent=1 // pred_region
      %257 = dma.done [#allocation22], 512
    $region129: #{tpu_custom_call.1} parent=1 // pred_fallthru
      _
    // Predicated region
    $region130: #{tpu_custom_call.1} parent=1 // pred_check
      _
    $region131: #{tpu_custom_call.1} parent=1 // pred_check_branch
      %259 = sbr.rel (0) target = $region133
    $region132: #{tpu_custom_call.1} parent=1 // pred_region
      %260 = dma.done [#allocation25], 256
    $region133: #{tpu_custom_call.1} parent=1 // pred_fallthru
      _
    // Predicated region
    $region134: #{tpu_custom_call.1} parent=1 // pred_check
      _
    $region135: #{tpu_custom_call.1} parent=1 // pred_check_branch
      %262 = sbr.rel (0) target = $region137
    $region136: #{tpu_custom_call.1} parent=1 // pred_region
      %263 = dma.done [#allocation25], 16
    $region137: #{tpu_custom_call.1} parent=1 // pred_fallthru
      _
    // Predicated region
    $region138: #{tpu_custom_call.1} parent=1 // pred_check
      _
    $region139: #{tpu_custom_call.1} parent=1 // pred_check_branch
      %265 = sbr.rel (0) target = $region141
    $region140: #{tpu_custom_call.1} parent=1 // pred_region
      %266 = dma.done [#allocation28], 16
    $region141: #{tpu_custom_call.1} parent=1 // pred_fallthru
      _
    %v267 = vld [vmem:[%s17] sm:$0xff]
    %v268 = vld [vmem:[%s17 + $0x8] sm:$0xff]
    %s269 = scalar_lea.vmem %s17, 16
    %v270 = vld [vmem:[%s269] sm:$0xff]
    %v271 = vld [vmem:[%s269 + $0x8] sm:$0xff]
    %v272 = vld [vmem:[%s18] sm:$0x1]
    %v273 = vld [vmem:[#allocation6] sm:$0xff]
    %v274 = vld [vmem:[#allocation6 + $0x8] sm:$0xff]
    %v275 = vld [vmem:[#allocation6 + $0x10] sm:$0xff]
    %v276 = vld [vmem:[#allocation6 + $0x18] sm:$0xff]
    %v277 = vld [vmem:[#allocation8] sm:$0xff]
    %v278 = vld [vmem:[#allocation8 + $0x8] sm:$0xff]
    %v279 = vld [vmem:[#allocation9] sm:$0x1]
    %v280 = vld [vmem:[#allocation11] sm:$0x1]
    %v281 = vld [vmem:[#allocation12] sm:$0xff]
    %v282 = vld [vmem:[#allocation12 + $0x8] sm:$0xff]
    %v283 = vld [vmem:[#allocation12 + $0x10] sm:$0xff]
    %v284 = vld [vmem:[#allocation12 + $0x18] sm:$0xff]
    %v285 = vld [vmem:[#allocation14] sm:$0xff]
    %v286 = vld [vmem:[#allocation14 + $0x8] sm:$0xff]
    %v287 = vld [vmem:[#allocation15] sm:$0x1]
    %v288 = vld [vmem:[#allocation17] sm:$0x1]
    %v289 = vld [vmem:[#allocation3] sm:$0xff]
    %v290 = vld [vmem:[#allocation3 + $0x8] sm:$0xff]
    %v292 = vlaneseq
    %v293 = vshrl.u32 %v292, 7
    %v294 = vsub.s32 0, %v293
    %v295 = vrot.slane %v279, %v294
    %vm297 = vcmask 261120
    %v299 = vsel %vm297, %v289, 0
    %v302 = vsel %vm297, %v290, 0
    %304 = vmatprep.subr.mxu0 0.0
    %305 = vmatpush1.msra.mxu0 %v273
    %306 = vmatprep.subr.mxu0 0.0
    %307 = vmatpush1.msra.mxu0 %v274
    %308 = vmatprep.subr.mxu0 0.0
    %309 = vmatpush1.msra.mxu0 %v275
    %310 = vmatprep.subr.mxu0 0.0
    %311 = vmatpush1.msra.mxu0 %v276
    %312 = vmatprep.subr.mxu0 0.0
    %313 = vmatpush1.msra.mxu0 0.0
    %314 = vmatprep.subr.mxu0 0.0
    %315 = vmatpush1.msra.mxu0 0.0
    %316 = vmatprep.subr.mxu0 0.0
    %317 = vmatpush1.msra.mxu0 0.0
    %318 = vmatprep.subr.mxu0 0.0
    %319 = vmatpush1.msra.mxu0 0.0
    %320 = vmatprep.subr.mxu0 0.0
    %321 = vmatpush1.msra.mxu0 0.0
    %322 = vmatprep.subr.mxu0 0.0
    %323 = vmatpush1.msra.mxu0 0.0
    %324 = vmatprep.subr.mxu0 0.0
    %325 = vmatpush1.msra.mxu0 0.0
    %326 = vmatprep.subr.mxu0 0.0
    %327 = vmatpush1.msra.mxu0 0.0
    %328 = vmatprep.subr.mxu0 0.0
    %329 = vmatpush1.msra.mxu0 0.0
    %330 = vmatprep.subr.mxu0 0.0
    %331 = vmatpush1.msra.mxu0 0.0
    %332 = vmatprep.subr.mxu0 0.0
    %333 = vmatpush1.msra.mxu0 0.0
    %334 = vmatprep.subr.mxu0 0.0
    %335 = vmatpush1.msra.mxu0 0.0
    %336 = vmatprep.subr.mxu0 0.0
    %337 = vmatpush1.msra.mxu0 0.0
    %338 = vmatprep.subr.mxu0 0.0
    %339 = vmatpush1.msra.mxu0 0.0
    %340 = vmatprep.subr.mxu0 0.0
    %341 = vmatpush1.msra.mxu0 0.0
    %342 = vmatprep.subr.mxu0 0.0
    %343 = vmatpush1.msra.mxu0 0.0
    %344 = vmatprep.subr.mxu0 0.0
    %345 = vmatpush1.msra.mxu0 0.0
    %346 = vmatprep.subr.mxu0 0.0
    %347 = vmatpush1.msra.mxu0 0.0
    %348 = vmatprep.subr.mxu0 0.0
    %349 = vmatpush1.msra.mxu0 0.0
    %350 = vmatprep.subr.mxu0 0.0
    %351 = vmatpush1.msra.mxu0 0.0
    %352 = vmatprep.subr.mxu0 0.0
    %353 = vmatpush1.msra.mxu0 0.0
    %354 = vmatprep.subr.mxu0 0.0
    %355 = vmatpush1.msra.mxu0 0.0
    %356 = vmatprep.subr.mxu0 0.0
    %357 = vmatpush1.msra.mxu0 0.0
    %358 = vmatprep.subr.mxu0 0.0
    %359 = vmatpush1.msra.mxu0 0.0
    %360 = vmatprep.subr.mxu0 0.0
    %361 = vmatpush1.msra.mxu0 0.0
    %362 = vmatprep.subr.mxu0 0.0
    %363 = vmatpush1.msra.mxu0 0.0
    %364 = vmatprep.subr.mxu0 0.0
    %365 = vmatpush1.msra.mxu0 0.0
    %366 = vmatprep.subr.mxu0 0.0
    %367 = vmatpush1.msra.mxu0 0.0
    %368 = vmatprep.mubr.f32.mxu0 0.0
    %369 = vmatmul.mubr.f32.gmra.mrb[0].mxu0 %v299
    %v370 = vpop.f32.mrb[0].mxu0
    %v371 = vadd.f32 %v295, %v370
    %v372 = vpop.f32.mrb[0].mxu0
    %373 = vmatprep.mubr.f32.mxu0 0.0
    %374 = vmatmul.mubr.f32.gmra.mrb[0].mxu0 %v302
    %v375 = vpop.f32.mrb[0].mxu0
    %v376 = vadd.f32 %v295, %v375
    %v377 = vpop.f32.mrb[0].mxu0
    %378 = vdwg.mxu0
    %v380 = vlaneseq
    %v381 = vshrl.u32 %v380, 7
    %v382 = vsub.s32 0, %v381
    %v383 = vrot.slane %v287, %v382
    %385 = vmatprep.subr.mxu0 0.0
    %386 = vmatpush1.msra.mxu0 %v281
    %387 = vmatprep.subr.mxu0 0.0
    %388 = vmatpush1.msra.mxu0 %v282
    %389 = vmatprep.subr.mxu0 0.0
    %390 = vmatpush1.msra.mxu0 %v283
    %391 = vmatprep.subr.mxu0 0.0
    %392 = vmatpush1.msra.mxu0 %v284
    %393 = vmatprep.subr.mxu0 0.0
    %394 = vmatpush1.msra.mxu0 0.0
    %395 = vmatprep.subr.mxu0 0.0
    %396 = vmatpush1.msra.mxu0 0.0
    %397 = vmatprep.subr.mxu0 0.0
    %398 = vmatpush1.msra.mxu0 0.0
    %399 = vmatprep.subr.mxu0 0.0
    %400 = vmatpush1.msra.mxu0 0.0
    %401 = vmatprep.subr.mxu0 0.0
    %402 = vmatpush1.msra.mxu0 0.0
    %403 = vmatprep.subr.mxu0 0.0
    %404 = vmatpush1.msra.mxu0 0.0
    %405 = vmatprep.subr.mxu0 0.0
    %406 = vmatpush1.msra.mxu0 0.0
    %407 = vmatprep.subr.mxu0 0.0
    %408 = vmatpush1.msra.mxu0 0.0
    %409 = vmatprep.subr.mxu0 0.0
    %410 = vmatpush1.msra.mxu0 0.0
    %411 = vmatprep.subr.mxu0 0.0
    %412 = vmatpush1.msra.mxu0 0.0
    %413 = vmatprep.subr.mxu0 0.0
    %414 = vmatpush1.msra.mxu0 0.0
    %415 = vmatprep.subr.mxu0 0.0
    %416 = vmatpush1.msra.mxu0 0.0
    %417 = vmatprep.subr.mxu0 0.0
    %418 = vmatpush1.msra.mxu0 0.0
    %419 = vmatprep.subr.mxu0 0.0
    %420 = vmatpush1.msra.mxu0 0.0
    %421 = vmatprep.subr.mxu0 0.0
    %422 = vmatpush1.msra.mxu0 0.0
    %423 = vmatprep.subr.mxu0 0.0
    %424 = vmatpush1.msra.mxu0 0.0
    %425 = vmatprep.subr.mxu0 0.0
    %426 = vmatpush1.msra.mxu0 0.0
    %427 = vmatprep.subr.mxu0 0.0
    %428 = vmatpush1.msra.mxu0 0.0
    %429 = vmatprep.subr.mxu0 0.0
    %430 = vmatpush1.msra.mxu0 0.0
    %431 = vmatprep.subr.mxu0 0.0
    %432 = vmatpush1.msra.mxu0 0.0
    %433 = vmatprep.subr.mxu0 0.0
    %434 = vmatpush1.msra.mxu0 0.0
    %435 = vmatprep.subr.mxu0 0.0
    %436 = vmatpush1.msra.mxu0 0.0
    %437 = vmatprep.subr.mxu0 0.0
    %438 = vmatpush1.msra.mxu0 0.0
    %439 = vmatprep.subr.mxu0 0.0
    %440 = vmatpush1.msra.mxu0 0.0
    %441 = vmatprep.subr.mxu0 0.0
    %442 = vmatpush1.msra.mxu0 0.0
    %443 = vmatprep.subr.mxu0 0.0
    %444 = vmatpush1.msra.mxu0 0.0
    %445 = vmatprep.subr.mxu0 0.0
    %446 = vmatpush1.msra.mxu0 0.0
    %447 = vmatprep.subr.mxu0 0.0
    %448 = vmatpush1.msra.mxu0 0.0
    %449 = vmatprep.mubr.f32.mxu0 0.0
    %450 = vmatmul.mubr.f32.gmra.mrb[0].mxu0 %v299
    %v451 = vpop.f32.mrb[0].mxu0
    %v452 = vadd.f32 %v383, %v451
    %v453 = vpop.f32.mrb[0].mxu0
    %454 = vmatprep.mubr.f32.mxu0 0.0
    %455 = vmatmul.mubr.f32.gmra.mrb[0].mxu0 %v302
    %v456 = vpop.f32.mrb[0].mxu0
    %v457 = vadd.f32 %v383, %v456
    %v458 = vpop.f32.mrb[0].mxu0
    %459 = vdwg.mxu0
    %vm460 = vcmask 130048
    %v462 = vsel %vm460, 0.0, 0
    %464 = vmatprep.subr.mxu0 0.0
    %465 = vmatpush1.msra.mxu0 %v277
    %466 = vmatprep.subr.mxu0 0.0
    %467 = vmatpush1.msra.mxu0 %v278
    %468 = vmatprep.subr.mxu0 0.0
    %469 = vmatpush1.msra.mxu0 0.0
    %470 = vmatprep.subr.mxu0 0.0
    %471 = vmatpush1.msra.mxu0 0.0
    %472 = vmatprep.subr.mxu0 0.0
    %473 = vmatpush1.msra.mxu0 0.0
    %474 = vmatprep.subr.mxu0 0.0
    %475 = vmatpush1.msra.mxu0 0.0
    %476 = vmatprep.subr.mxu0 0.0
    %477 = vmatpush1.msra.mxu0 0.0
    %478 = vmatprep.subr.mxu0 0.0
    %479 = vmatpush1.msra.mxu0 0.0
    %480 = vmatprep.subr.mxu0 0.0
    %481 = vmatpush1.msra.mxu0 0.0
    %482 = vmatprep.subr.mxu0 0.0
    %483 = vmatpush1.msra.mxu0 0.0
    %484 = vmatprep.subr.mxu0 0.0
    %485 = vmatpush1.msra.mxu0 0.0
    %486 = vmatprep.subr.mxu0 0.0
    %487 = vmatpush1.msra.mxu0 0.0
    %488 = vmatprep.subr.mxu0 0.0
    %489 = vmatpush1.msra.mxu0 0.0
    %490 = vmatprep.subr.mxu0 0.0
    %491 = vmatpush1.msra.mxu0 0.0
    %492 = vmatprep.subr.mxu0 0.0
    %493 = vmatpush1.msra.mxu0 0.0
    %494 = vmatprep.subr.mxu0 0.0
    %495 = vmatpush1.msra.mxu0 0.0
    %496 = vmatprep.subr.mxu0 0.0
    %497 = vmatpush1.msra.mxu0 0.0
    %498 = vmatprep.subr.mxu0 0.0
    %499 = vmatpush1.msra.mxu0 0.0
    %500 = vmatprep.subr.mxu0 0.0
    %501 = vmatpush1.msra.mxu0 0.0
    %502 = vmatprep.subr.mxu0 0.0
    %503 = vmatpush1.msra.mxu0 0.0
    %504 = vmatprep.subr.mxu0 0.0
    %505 = vmatpush1.msra.mxu0 0.0
    %506 = vmatprep.subr.mxu0 0.0
    %507 = vmatpush1.msra.mxu0 0.0
    %508 = vmatprep.subr.mxu0 0.0
    %509 = vmatpush1.msra.mxu0 0.0
    %510 = vmatprep.subr.mxu0 0.0
    %511 = vmatpush1.msra.mxu0 0.0
    %512 = vmatprep.subr.mxu0 0.0
    %513 = vmatpush1.msra.mxu0 0.0
    %514 = vmatprep.subr.mxu0 0.0
    %515 = vmatpush1.msra.mxu0 0.0
    %516 = vmatprep.subr.mxu0 0.0
    %517 = vmatpush1.msra.mxu0 0.0
    %518 = vmatprep.subr.mxu0 0.0
    %519 = vmatpush1.msra.mxu0 0.0
    %520 = vmatprep.subr.mxu0 0.0
    %521 = vmatpush1.msra.mxu0 0.0
    %522 = vmatprep.subr.mxu0 0.0
    %523 = vmatpush1.msra.mxu0 0.0
    %524 = vmatprep.subr.mxu0 0.0
    %525 = vmatpush1.msra.mxu0 0.0
    %526 = vmatprep.subr.mxu0 0.0
    %527 = vmatpush1.msra.mxu0 0.0
    %528 = vmatprep.mubr.f32.mxu0 0.0
    %529 = vmatmul.mubr.f32.gmra.mrb[0].mxu0 %v462
    %v530 = vpop.f32.mrb[0].mxu0
    %v531 = vadd.f32 0.0, %v530
    %v532 = vpop.f32.mrb[0].mxu0
    %533 = vdwg.mxu0
    %534 = vmatprep.subr.mxu0 0.0
    %535 = vmatpush1.msra.mxu0 %v285
    %536 = vmatprep.subr.mxu0 0.0
    %537 = vmatpush1.msra.mxu0 %v286
    %538 = vmatprep.subr.mxu0 0.0
    %539 = vmatpush1.msra.mxu0 0.0
    %540 = vmatprep.subr.mxu0 0.0
    %541 = vmatpush1.msra.mxu0 0.0
    %542 = vmatprep.subr.mxu0 0.0
    %543 = vmatpush1.msra.mxu0 0.0
    %544 = vmatprep.subr.mxu0 0.0
    %545 = vmatpush1.msra.mxu0 0.0
    %546 = vmatprep.subr.mxu0 0.0
    %547 = vmatpush1.msra.mxu0 0.0
    %548 = vmatprep.subr.mxu0 0.0
    %549 = vmatpush1.msra.mxu0 0.0
    %550 = vmatprep.subr.mxu0 0.0
    %551 = vmatpush1.msra.mxu0 0.0
    %552 = vmatprep.subr.mxu0 0.0
    %553 = vmatpush1.msra.mxu0 0.0
    %554 = vmatprep.subr.mxu0 0.0
    %555 = vmatpush1.msra.mxu0 0.0
    %556 = vmatprep.subr.mxu0 0.0
    %557 = vmatpush1.msra.mxu0 0.0
    %558 = vmatprep.subr.mxu0 0.0
    %559 = vmatpush1.msra.mxu0 0.0
    %560 = vmatprep.subr.mxu0 0.0
    %561 = vmatpush1.msra.mxu0 0.0
    %562 = vmatprep.subr.mxu0 0.0
    %563 = vmatpush1.msra.mxu0 0.0
    %564 = vmatprep.subr.mxu0 0.0
    %565 = vmatpush1.msra.mxu0 0.0
    %566 = vmatprep.subr.mxu0 0.0
    %567 = vmatpush1.msra.mxu0 0.0
    %568 = vmatprep.subr.mxu0 0.0
    %569 = vmatpush1.msra.mxu0 0.0
    %570 = vmatprep.subr.mxu0 0.0
    %571 = vmatpush1.msra.mxu0 0.0
    %572 = vmatprep.subr.mxu0 0.0
    %573 = vmatpush1.msra.mxu0 0.0
    %574 = vmatprep.subr.mxu0 0.0
    %575 = vmatpush1.msra.mxu0 0.0
    %576 = vmatprep.subr.mxu0 0.0
    %577 = vmatpush1.msra.mxu0 0.0
    %578 = vmatprep.subr.mxu0 0.0
    %579 = vmatpush1.msra.mxu0 0.0
    %580 = vmatprep.subr.mxu0 0.0
    %581 = vmatpush1.msra.mxu0 0.0
    %582 = vmatprep.subr.mxu0 0.0
    %583 = vmatpush1.msra.mxu0 0.0
    %584 = vmatprep.subr.mxu0 0.0
    %585 = vmatpush1.msra.mxu0 0.0
    %586 = vmatprep.subr.mxu0 0.0
    %587 = vmatpush1.msra.mxu0 0.0
    %588 = vmatprep.subr.mxu0 0.0
    %589 = vmatpush1.msra.mxu0 0.0
    %590 = vmatprep.subr.mxu0 0.0
    %591 = vmatpush1.msra.mxu0 0.0
    %592 = vmatprep.subr.mxu0 0.0
    %593 = vmatpush1.msra.mxu0 0.0
    %594 = vmatprep.subr.mxu0 0.0
    %595 = vmatpush1.msra.mxu0 0.0
    %596 = vmatprep.subr.mxu0 0.0
    %597 = vmatpush1.msra.mxu0 0.0
    %598 = vmatprep.mubr.f32.mxu0 0.0
    %599 = vmatmul.mubr.f32.gmra.mrb[0].mxu0 %v462
    %v600 = vpop.f32.mrb[0].mxu0
    %v601 = vadd.f32 0.0, %v600
    %v602 = vpop.f32.mrb[0].mxu0
    %603 = vdwg.mxu0
    %v604 = vadd.f32 %v371, %v531
    %v605 = vxor.u32 %v604, 2147483648
    %v606 = vmul.f32 %v605, 1.442695
    %v607 = vpow.pop %v606
    %v608 = vadd.f32 %v607, 1.0
    %v609 = vrcp.pop %v608
    %v610 = vmul.f32 1.0, %v609
    %v612 = vlaneseq
    %v613 = vshrl.u32 %v612, 7
    %v614 = vsub.s32 0, %v613
    %v615 = vrot.slane %v280, %v614
    %616 = vrot.lane.b32.xlu0 %v615, 32
    %v617 = vpop.permute.xlu0 %616
    %v619 = vadd.f32 %v531, %v617
    %621 = vrot.lane.b32.xlu0 %v619, 96
    %v622 = vpop.permute.xlu0 %621
    %v624 = vmul.f32 %v610, %v622
    %626 = vrot.lane.b32.xlu0 %v624, 32
    %v627 = vpop.permute.xlu0 %626
    %v629 = vadd.f32 %v371, %v627
    %v630 = vtanh.pop %v629
    %v631 = vsub.f32 0.0, %v630
    %633 = vrot.lane.b32.xlu0 %v631, 112
    %v634 = vpop.permute.xlu0 %633
    %v636 = vmul.f32 %v610, %v634
    %638 = vrot.lane.b32.xlu0 %v636, 16
    %v639 = vpop.permute.xlu0 %638
    %v641 = vadd.f32 %v630, %v639
    %v643 = vrot.slane %v601, 2
    %v645 = vadd.f32 %v457, %v643
    %v646 = vxor.u32 %v645, 2147483648
    %v647 = vmul.f32 %v646, 1.442695
    %v648 = vpow.pop %v647
    %v649 = vadd.f32 %v648, 1.0
    %v650 = vrcp.pop %v649
    %v651 = vmul.f32 1.0, %v650
    %v653 = vlaneseq
    %v654 = vshrl.u32 %v653, 7
    %v655 = vsub.s32 0, %v654
    %v656 = vrot.slane %v288, %v655
    %657 = vrot.lane.b32.xlu0 %v656, 32
    %v658 = vpop.permute.xlu0 %657
    %v660 = vadd.f32 %v601, %v658
    %v662 = vrot.slane %v660, 2
    %663 = vrot.lane.b32.xlu0 %v662, 96
    %v664 = vpop.permute.xlu0 %663
    %v666 = vmul.f32 %v651, %v664
    %668 = vrot.lane.b32.xlu0 %v666, 32
    %v669 = vpop.permute.xlu0 %668
    %v671 = vadd.f32 %v457, %v669
    %v672 = vtanh.pop %v671
    %v673 = vsub.f32 0.0, %v672
    %675 = vrot.lane.b32.xlu0 %v673, 112
    %v676 = vpop.permute.xlu0 %675
    %v678 = vmul.f32 %v651, %v676
    %680 = vrot.lane.b32.xlu0 %v678, 16
    %v681 = vpop.permute.xlu0 %680
    %v683 = vadd.f32 %v672, %v681
    %685 = vrot.lane.b32.xlu0 %v641, 96
    %v686 = vpop.permute.xlu0 %685
    %vm688 = vcmask 123904
    %689 = vst.msk [vmem:[#allocation2] sm:$0x3] %vm688, %v686
    %691 = vrot.lane.b32.xlu0 %v683, 112
    %v692 = vpop.permute.xlu0 %691
    %vm694 = vcmask 261254
    %695 = vst.msk [vmem:[#allocation2 + $0x8] sm:$0xc0] %vm694, %v692
    %v696 = vsel %vm460, %v686, 0
    %698 = vmatprep.subr.mxu0 0.0
    %699 = vmatpush1.msra.mxu0 %v277
    %700 = vmatprep.subr.mxu0 0.0
    %701 = vmatpush1.msra.mxu0 %v278
    %702 = vmatprep.subr.mxu0 0.0
    %703 = vmatpush1.msra.mxu0 0.0
    %704 = vmatprep.subr.mxu0 0.0
    %705 = vmatpush1.msra.mxu0 0.0
    %706 = vmatprep.subr.mxu0 0.0
    %707 = vmatpush1.msra.mxu0 0.0
    %708 = vmatprep.subr.mxu0 0.0
    %709 = vmatpush1.msra.mxu0 0.0
    %710 = vmatprep.subr.mxu0 0.0
    %711 = vmatpush1.msra.mxu0 0.0
    %712 = vmatprep.subr.mxu0 0.0
    %713 = vmatpush1.msra.mxu0 0.0
    %714 = vmatprep.subr.mxu0 0.0
    %715 = vmatpush1.msra.mxu0 0.0
    %716 = vmatprep.subr.mxu0 0.0
    %717 = vmatpush1.msra.mxu0 0.0
    %718 = vmatprep.subr.mxu0 0.0
    %719 = vmatpush1.msra.mxu0 0.0
    %720 = vmatprep.subr.mxu0 0.0
    %721 = vmatpush1.msra.mxu0 0.0
    %722 = vmatprep.subr.mxu0 0.0
    %723 = vmatpush1.msra.mxu0 0.0
    %724 = vmatprep.subr.mxu0 0.0
    %725 = vmatpush1.msra.mxu0 0.0
    %726 = vmatprep.subr.mxu0 0.0
    %727 = vmatpush1.msra.mxu0 0.0
    %728 = vmatprep.subr.mxu0 0.0
    %729 = vmatpush1.msra.mxu0 0.0
    %730 = vmatprep.subr.mxu0 0.0
    %731 = vmatpush1.msra.mxu0 0.0
    %732 = vmatprep.subr.mxu0 0.0
    %733 = vmatpush1.msra.mxu0 0.0
    %734 = vmatprep.subr.mxu0 0.0
    %735 = vmatpush1.msra.mxu0 0.0
    %736 = vmatprep.subr.mxu0 0.0
    %737 = vmatpush1.msra.mxu0 0.0
    %738 = vmatprep.subr.mxu0 0.0
    %739 = vmatpush1.msra.mxu0 0.0
    %740 = vmatprep.subr.mxu0 0.0
    %741 = vmatpush1.msra.mxu0 0.0
    %742 = vmatprep.subr.mxu0 0.0
    %743 = vmatpush1.msra.mxu0 0.0
    %744 = vmatprep.subr.mxu0 0.0
    %745 = vmatpush1.msra.mxu0 0.0
    %746 = vmatprep.subr.mxu0 0.0
    %747 = vmatpush1.msra.mxu0 0.0
    %748 = vmatprep.subr.mxu0 0.0
    %749 = vmatpush1.msra.mxu0 0.0
    %750 = vmatprep.subr.mxu0 0.0
    %751 = vmatpush1.msra.mxu0 0.0
    %752 = vmatprep.subr.mxu0 0.0
    %753 = vmatpush1.msra.mxu0 0.0
    %754 = vmatprep.subr.mxu0 0.0
    %755 = vmatpush1.msra.mxu0 0.0
    %756 = vmatprep.subr.mxu0 0.0
    %757 = vmatpush1.msra.mxu0 0.0
    %758 = vmatprep.subr.mxu0 0.0
    %759 = vmatpush1.msra.mxu0 0.0
    %760 = vmatprep.subr.mxu0 0.0
    %761 = vmatpush1.msra.mxu0 0.0
    %762 = vmatprep.mubr.f32.mxu0 0.0
    %763 = vmatmul.mubr.f32.gmra.mrb[0].mxu0 %v696
    %v764 = vpop.f32.mrb[0].mxu0
    %v765 = vadd.f32 0.0, %v764
    %v766 = vpop.f32.mrb[0].mxu0
    %767 = vdwg.mxu0
    %v768 = vrot.slane %v683, 6
    %769 = vrot.lane.b32.xlu0 %v768, 96
    %v770 = vpop.permute.xlu0 %769
    %v771 = vsel %vm460, %v770, 0
    %773 = vmatprep.subr.mxu0 0.0
    %774 = vmatpush1.msra.mxu0 %v285
    %775 = vmatprep.subr.mxu0 0.0
    %776 = vmatpush1.msra.mxu0 %v286
    %777 = vmatprep.subr.mxu0 0.0
    %778 = vmatpush1.msra.mxu0 0.0
    %779 = vmatprep.subr.mxu0 0.0
    %780 = vmatpush1.msra.mxu0 0.0
    %781 = vmatprep.subr.mxu0 0.0
    %782 = vmatpush1.msra.mxu0 0.0
    %783 = vmatprep.subr.mxu0 0.0
    %784 = vmatpush1.msra.mxu0 0.0
    %785 = vmatprep.subr.mxu0 0.0
    %786 = vmatpush1.msra.mxu0 0.0
    %787 = vmatprep.subr.mxu0 0.0
    %788 = vmatpush1.msra.mxu0 0.0
    %789 = vmatprep.subr.mxu0 0.0
    %790 = vmatpush1.msra.mxu0 0.0
    %791 = vmatprep.subr.mxu0 0.0
    %792 = vmatpush1.msra.mxu0 0.0
    %793 = vmatprep.subr.mxu0 0.0
    %794 = vmatpush1.msra.mxu0 0.0
    %795 = vmatprep.subr.mxu0 0.0
    %796 = vmatpush1.msra.mxu0 0.0
    %797 = vmatprep.subr.mxu0 0.0
    %798 = vmatpush1.msra.mxu0 0.0
    %799 = vmatprep.subr.mxu0 0.0
    %800 = vmatpush1.msra.mxu0 0.0
    %801 = vmatprep.subr.mxu0 0.0
    %802 = vmatpush1.msra.mxu0 0.0
    %803 = vmatprep.subr.mxu0 0.0
    %804 = vmatpush1.msra.mxu0 0.0
    %805 = vmatprep.subr.mxu0 0.0
    %806 = vmatpush1.msra.mxu0 0.0
    %807 = vmatprep.subr.mxu0 0.0
    %808 = vmatpush1.msra.mxu0 0.0
    %809 = vmatprep.subr.mxu0 0.0
    %810 = vmatpush1.msra.mxu0 0.0
    %811 = vmatprep.subr.mxu0 0.0
    %812 = vmatpush1.msra.mxu0 0.0
    %813 = vmatprep.subr.mxu0 0.0
    %814 = vmatpush1.msra.mxu0 0.0
    %815 = vmatprep.subr.mxu0 0.0
    %816 = vmatpush1.msra.mxu0 0.0
    %817 = vmatprep.subr.mxu0 0.0
    %818 = vmatpush1.msra.mxu0 0.0
    %819 = vmatprep.subr.mxu0 0.0
    %820 = vmatpush1.msra.mxu0 0.0
    %821 = vmatprep.subr.mxu0 0.0
    %822 = vmatpush1.msra.mxu0 0.0
    %823 = vmatprep.subr.mxu0 0.0
    %824 = vmatpush1.msra.mxu0 0.0
    %825 = vmatprep.subr.mxu0 0.0
    %826 = vmatpush1.msra.mxu0 0.0
    %827 = vmatprep.subr.mxu0 0.0
    %828 = vmatpush1.msra.mxu0 0.0
    %829 = vmatprep.subr.mxu0 0.0
    %830 = vmatpush1.msra.mxu0 0.0
    %831 = vmatprep.subr.mxu0 0.0
    %832 = vmatpush1.msra.mxu0 0.0
    %833 = vmatprep.subr.mxu0 0.0
    %834 = vmatpush1.msra.mxu0 0.0
    %835 = vmatprep.subr.mxu0 0.0
    %836 = vmatpush1.msra.mxu0 0.0
    %837 = vmatprep.mubr.f32.mxu0 0.0
    %838 = vmatmul.mubr.f32.gmra.mrb[0].mxu0 %v771
    %v839 = vpop.f32.mrb[0].mxu0
    %v840 = vadd.f32 0.0, %v839
    %v841 = vpop.f32.mrb[0].mxu0
    %842 = vdwg.mxu0
    %v844 = vrot.slane %v765, 6
    %v846 = vadd.f32 %v371, %v844
    %v847 = vxor.u32 %v846, 2147483648
    %v848 = vmul.f32 %v847, 1.442695
    %v849 = vpow.pop %v848
    %v850 = vadd.f32 %v849, 1.0
    %v851 = vrcp.pop %v850
    %v852 = vmul.f32 1.0, %v851
    %v853 = vadd.f32 %v765, %v617
    %v855 = vrot.slane %v853, 6
    %856 = vrot.lane.b32.xlu0 %v855, 96
    %v857 = vpop.permute.xlu0 %856
    %v859 = vmul.f32 %v852, %v857
    %861 = vrot.lane.b32.xlu0 %v859, 32
    %v862 = vpop.permute.xlu0 %861
    %v864 = vadd.f32 %v371, %v862
    %v865 = vtanh.pop %v864
    %v867 = vrot.slane %v865, 2
    %v869 = vsub.f32 %v641, %v867
    %v871 = vrot.slane %v869, 6
    %872 = vrot.lane.b32.xlu0 %v871, 112
    %v873 = vpop.permute.xlu0 %872
    %v875 = vmul.f32 %v852, %v873
    %877 = vrot.lane.b32.xlu0 %v875, 16
    %v878 = vpop.permute.xlu0 %877
    %v880 = vadd.f32 %v865, %v878
    %v882 = vrot.slane %v840, 4
    %v884 = vadd.f32 %v457, %v882
    %v885 = vxor.u32 %v884, 2147483648
    %v886 = vmul.f32 %v885, 1.442695
    %v887 = vpow.pop %v886
    %v888 = vadd.f32 %v887, 1.0
    %v889 = vrcp.pop %v888
    %v890 = vmul.f32 1.0, %v889
    %v891 = vadd.f32 %v840, %v658
    %v893 = vrot.slane %v891, 4
    %894 = vrot.lane.b32.xlu0 %v893, 96
    %v895 = vpop.permute.xlu0 %894
    %v897 = vmul.f32 %v890, %v895
    %899 = vrot.lane.b32.xlu0 %v897, 32
    %v900 = vpop.permute.xlu0 %899
    %v902 = vadd.f32 %v457, %v900
    %v903 = vtanh.pop %v902
    %v905 = vrot.slane %v903, 6
    %v907 = vsub.f32 %v683, %v905
    %v909 = vrot.slane %v907, 2
    %910 = vrot.lane.b32.xlu0 %v909, 112
    %v911 = vpop.permute.xlu0 %910
    %v913 = vmul.f32 %v890, %v911
    %915 = vrot.lane.b32.xlu0 %v913, 16
    %v916 = vpop.permute.xlu0 %915
    %v918 = vadd.f32 %v903, %v916
    %920 = vrot.lane.b32.xlu0 %v880, 96
    %v921 = vpop.permute.xlu0 %920
    %vm923 = vcmask 125954
    %924 = vst.msk [vmem:[#allocation2] sm:$0xc] %vm923, %v921
    %926 = vrot.lane.b32.xlu0 %v918, 112
    %v927 = vpop.permute.xlu0 %926
    %vm929 = vcmask 259204
    %930 = vst.msk [vmem:[#allocation2 + $0x8] sm:$0x30] %vm929, %v927
    %v931 = vrot.slane %v880, 2
    %932 = vrot.lane.b32.xlu0 %v931, 96
    %v933 = vpop.permute.xlu0 %932
    %v934 = vsel %vm460, %v933, 0
    %936 = vmatprep.subr.mxu0 0.0
    %937 = vmatpush1.msra.mxu0 %v277
    %938 = vmatprep.subr.mxu0 0.0
    %939 = vmatpush1.msra.mxu0 %v278
    %940 = vmatprep.subr.mxu0 0.0
    %941 = vmatpush1.msra.mxu0 0.0
    %942 = vmatprep.subr.mxu0 0.0
    %943 = vmatpush1.msra.mxu0 0.0
    %944 = vmatprep.subr.mxu0 0.0
    %945 = vmatpush1.msra.mxu0 0.0
    %946 = vmatprep.subr.mxu0 0.0
    %947 = vmatpush1.msra.mxu0 0.0
    %948 = vmatprep.subr.mxu0 0.0
    %949 = vmatpush1.msra.mxu0 0.0
    %950 = vmatprep.subr.mxu0 0.0
    %951 = vmatpush1.msra.mxu0 0.0
    %952 = vmatprep.subr.mxu0 0.0
    %953 = vmatpush1.msra.mxu0 0.0
    %954 = vmatprep.subr.mxu0 0.0
    %955 = vmatpush1.msra.mxu0 0.0
    %956 = vmatprep.subr.mxu0 0.0
    %957 = vmatpush1.msra.mxu0 0.0
    %958 = vmatprep.subr.mxu0 0.0
    %959 = vmatpush1.msra.mxu0 0.0
    %960 = vmatprep.subr.mxu0 0.0
    %961 = vmatpush1.msra.mxu0 0.0
    %962 = vmatprep.subr.mxu0 0.0
    %963 = vmatpush1.msra.mxu0 0.0
    %964 = vmatprep.subr.mxu0 0.0
    %965 = vmatpush1.msra.mxu0 0.0
    %966 = vmatprep.subr.mxu0 0.0
    %967 = vmatpush1.msra.mxu0 0.0
    %968 = vmatprep.subr.mxu0 0.0
    %969 = vmatpush1.msra.mxu0 0.0
    %970 = vmatprep.subr.mxu0 0.0
    %971 = vmatpush1.msra.mxu0 0.0
    %972 = vmatprep.subr.mxu0 0.0
    %973 = vmatpush1.msra.mxu0 0.0
    %974 = vmatprep.subr.mxu0 0.0
    %975 = vmatpush1.msra.mxu0 0.0
    %976 = vmatprep.subr.mxu0 0.0
    %977 = vmatpush1.msra.mxu0 0.0
    %978 = vmatprep.subr.mxu0 0.0
    %979 = vmatpush1.msra.mxu0 0.0
    %980 = vmatprep.subr.mxu0 0.0
    %981 = vmatpush1.msra.mxu0 0.0
    %982 = vmatprep.subr.mxu0 0.0
    %983 = vmatpush1.msra.mxu0 0.0
    %984 = vmatprep.subr.mxu0 0.0
    %985 = vmatpush1.msra.mxu0 0.0
    %986 = vmatprep.subr.mxu0 0.0
    %987 = vmatpush1.msra.mxu0 0.0
    %988 = vmatprep.subr.mxu0 0.0
    %989 = vmatpush1.msra.mxu0 0.0
    %990 = vmatprep.subr.mxu0 0.0
    %991 = vmatpush1.msra.mxu0 0.0
    %992 = vmatprep.subr.mxu0 0.0
    %993 = vmatpush1.msra.mxu0 0.0
    %994 = vmatprep.subr.mxu0 0.0
    %995 = vmatpush1.msra.mxu0 0.0
    %996 = vmatprep.subr.mxu0 0.0
    %997 = vmatpush1.msra.mxu0 0.0
    %998 = vmatprep.subr.mxu0 0.0
    %999 = vmatpush1.msra.mxu0 0.0
    %1000 = vmatprep.mubr.f32.mxu0 0.0
    %1001 = vmatmul.mubr.f32.gmra.mrb[0].mxu0 %v934
    %v1002 = vpop.f32.mrb[0].mxu0
    %v1003 = vadd.f32 0.0, %v1002
    %v1004 = vpop.f32.mrb[0].mxu0
    %1005 = vdwg.mxu0
    %v1006 = vrot.slane %v918, 4
    %1007 = vrot.lane.b32.xlu0 %v1006, 96
    %v1008 = vpop.permute.xlu0 %1007
    %v1009 = vsel %vm460, %v1008, 0
    %1011 = vmatprep.subr.mxu0 0.0
    %1012 = vmatpush1.msra.mxu0 %v285
    %1013 = vmatprep.subr.mxu0 0.0
    %1014 = vmatpush1.msra.mxu0 %v286
    %1015 = vmatprep.subr.mxu0 0.0
    %1016 = vmatpush1.msra.mxu0 0.0
    %1017 = vmatprep.subr.mxu0 0.0
    %1018 = vmatpush1.msra.mxu0 0.0
    %1019 = vmatprep.subr.mxu0 0.0
    %1020 = vmatpush1.msra.mxu0 0.0
    %1021 = vmatprep.subr.mxu0 0.0
    %1022 = vmatpush1.msra.mxu0 0.0
    %1023 = vmatprep.subr.mxu0 0.0
    %1024 = vmatpush1.msra.mxu0 0.0
    %1025 = vmatprep.subr.mxu0 0.0
    %1026 = vmatpush1.msra.mxu0 0.0
    %1027 = vmatprep.subr.mxu0 0.0
    %1028 = vmatpush1.msra.mxu0 0.0
    %1029 = vmatprep.subr.mxu0 0.0
    %1030 = vmatpush1.msra.mxu0 0.0
    %1031 = vmatprep.subr.mxu0 0.0
    %1032 = vmatpush1.msra.mxu0 0.0
    %1033 = vmatprep.subr.mxu0 0.0
    %1034 = vmatpush1.msra.mxu0 0.0
    %1035 = vmatprep.subr.mxu0 0.0
    %1036 = vmatpush1.msra.mxu0 0.0
    %1037 = vmatprep.subr.mxu0 0.0
    %1038 = vmatpush1.msra.mxu0 0.0
    %1039 = vmatprep.subr.mxu0 0.0
    %1040 = vmatpush1.msra.mxu0 0.0
    %1041 = vmatprep.subr.mxu0 0.0
    %1042 = vmatpush1.msra.mxu0 0.0
    %1043 = vmatprep.subr.mxu0 0.0
    %1044 = vmatpush1.msra.mxu0 0.0
    %1045 = vmatprep.subr.mxu0 0.0
    %1046 = vmatpush1.msra.mxu0 0.0
    %1047 = vmatprep.subr.mxu0 0.0
    %1048 = vmatpush1.msra.mxu0 0.0
    %1049 = vmatprep.subr.mxu0 0.0
    %1050 = vmatpush1.msra.mxu0 0.0
    %1051 = vmatprep.subr.mxu0 0.0
    %1052 = vmatpush1.msra.mxu0 0.0
    %1053 = vmatprep.subr.mxu0 0.0
    %1054 = vmatpush1.msra.mxu0 0.0
    %1055 = vmatprep.subr.mxu0 0.0
    %1056 = vmatpush1.msra.mxu0 0.0
    %1057 = vmatprep.subr.mxu0 0.0
    %1058 = vmatpush1.msra.mxu0 0.0
    %1059 = vmatprep.subr.mxu0 0.0
    %1060 = vmatpush1.msra.mxu0 0.0
    %1061 = vmatprep.subr.mxu0 0.0
    %1062 = vmatpush1.msra.mxu0 0.0
    %1063 = vmatprep.subr.mxu0 0.0
    %1064 = vmatpush1.msra.mxu0 0.0
    %1065 = vmatprep.subr.mxu0 0.0
    %1066 = vmatpush1.msra.mxu0 0.0
    %1067 = vmatprep.subr.mxu0 0.0
    %1068 = vmatpush1.msra.mxu0 0.0
    %1069 = vmatprep.subr.mxu0 0.0
    %1070 = vmatpush1.msra.mxu0 0.0
    %1071 = vmatprep.subr.mxu0 0.0
    %1072 = vmatpush1.msra.mxu0 0.0
    %1073 = vmatprep.subr.mxu0 0.0
    %1074 = vmatpush1.msra.mxu0 0.0
    %1075 = vmatprep.mubr.f32.mxu0 0.0
    %1076 = vmatmul.mubr.f32.gmra.mrb[0].mxu0 %v1009
    %v1077 = vpop.f32.mrb[0].mxu0
    %v1078 = vadd.f32 0.0, %v1077
    %v1079 = vpop.f32.mrb[0].mxu0
    %1080 = vdwg.mxu0
    %v1082 = vrot.slane %v1003, 4
    %v1084 = vadd.f32 %v371, %v1082
    %v1085 = vxor.u32 %v1084, 2147483648
    %v1086 = vmul.f32 %v1085, 1.442695
    %v1087 = vpow.pop %v1086
    %v1088 = vadd.f32 %v1087, 1.0
    %v1089 = vrcp.pop %v1088
    %v1090 = vmul.f32 1.0, %v1089
    %v1091 = vadd.f32 %v1003, %v617
    %v1093 = vrot.slane %v1091, 4
    %1094 = vrot.lane.b32.xlu0 %v1093, 96
    %v1095 = vpop.permute.xlu0 %1094
    %v1097 = vmul.f32 %v1090, %v1095
    %1099 = vrot.lane.b32.xlu0 %v1097, 32
    %v1100 = vpop.permute.xlu0 %1099
    %v1102 = vadd.f32 %v371, %v1100
    %v1103 = vtanh.pop %v1102
    %v1105 = vrot.slane %v1103, 2
    %v1107 = vsub.f32 %v880, %v1105
    %v1109 = vrot.slane %v1107, 6
    %1110 = vrot.lane.b32.xlu0 %v1109, 112
    %v1111 = vpop.permute.xlu0 %1110
    %v1113 = vmul.f32 %v1090, %v1111
    %1115 = vrot.lane.b32.xlu0 %v1113, 16
    %v1116 = vpop.permute.xlu0 %1115
    %v1118 = vadd.f32 %v1103, %v1116
    %v1120 = vrot.slane %v1078, 6
    %v1122 = vadd.f32 %v457, %v1120
    %v1123 = vxor.u32 %v1122, 2147483648
    %v1124 = vmul.f32 %v1123, 1.442695
    %v1125 = vpow.pop %v1124
    %v1126 = vadd.f32 %v1125, 1.0
    %v1127 = vrcp.pop %v1126
    %v1128 = vmul.f32 1.0, %v1127
    %v1129 = vadd.f32 %v1078, %v658
    %v1131 = vrot.slane %v1129, 6
    %1132 = vrot.lane.b32.xlu0 %v1131, 96
    %v1133 = vpop.permute.xlu0 %1132
    %v1135 = vmul.f32 %v1128, %v1133
    %1137 = vrot.lane.b32.xlu0 %v1135, 32
    %v1138 = vpop.permute.xlu0 %1137
    %v1140 = vadd.f32 %v457, %v1138
    %v1141 = vtanh.pop %v1140
    %v1143 = vrot.slane %v1141, 6
    %v1145 = vsub.f32 %v918, %v1143
    %v1147 = vrot.slane %v1145, 2
    %1148 = vrot.lane.b32.xlu0 %v1147, 112
    %v1149 = vpop.permute.xlu0 %1148
    %v1151 = vmul.f32 %v1128, %v1149
    %1153 = vrot.lane.b32.xlu0 %v1151, 16
    %v1154 = vpop.permute.xlu0 %1153
    %v1156 = vadd.f32 %v1141, %v1154
    %1158 = vrot.lane.b32.xlu0 %v1118, 96
    %v1159 = vpop.permute.xlu0 %1158
    %vm1161 = vcmask 128004
    %1162 = vst.msk [vmem:[#allocation2] sm:$0x30] %vm1161, %v1159
    %1164 = vrot.lane.b32.xlu0 %v1156, 112
    %v1165 = vpop.permute.xlu0 %1164
    %vm1167 = vcmask 257154
    %1168 = vst.msk [vmem:[#allocation2 + $0x8] sm:$0xc] %vm1167, %v1165
    %v1169 = vrot.slane %v1118, 4
    %1170 = vrot.lane.b32.xlu0 %v1169, 96
    %v1171 = vpop.permute.xlu0 %1170
    %v1172 = vsel %vm460, %v1171, 0
    %1174 = vmatprep.subr.mxu0 0.0
    %1175 = vmatpush1.msra.mxu0 %v277
    %1176 = vmatprep.subr.mxu0 0.0
    %1177 = vmatpush1.msra.mxu0 %v278
    %1178 = vmatprep.subr.mxu0 0.0
    %1179 = vmatpush1.msra.mxu0 0.0
    %1180 = vmatprep.subr.mxu0 0.0
    %1181 = vmatpush1.msra.mxu0 0.0
    %1182 = vmatprep.subr.mxu0 0.0
    %1183 = vmatpush1.msra.mxu0 0.0
    %1184 = vmatprep.subr.mxu0 0.0
    %1185 = vmatpush1.msra.mxu0 0.0
    %1186 = vmatprep.subr.mxu0 0.0
    %1187 = vmatpush1.msra.mxu0 0.0
    %1188 = vmatprep.subr.mxu0 0.0
    %1189 = vmatpush1.msra.mxu0 0.0
    %1190 = vmatprep.subr.mxu0 0.0
    %1191 = vmatpush1.msra.mxu0 0.0
    %1192 = vmatprep.subr.mxu0 0.0
    %1193 = vmatpush1.msra.mxu0 0.0
    %1194 = vmatprep.subr.mxu0 0.0
    %1195 = vmatpush1.msra.mxu0 0.0
    %1196 = vmatprep.subr.mxu0 0.0
    %1197 = vmatpush1.msra.mxu0 0.0
    %1198 = vmatprep.subr.mxu0 0.0
    %1199 = vmatpush1.msra.mxu0 0.0
    %1200 = vmatprep.subr.mxu0 0.0
    %1201 = vmatpush1.msra.mxu0 0.0
    %1202 = vmatprep.subr.mxu0 0.0
    %1203 = vmatpush1.msra.mxu0 0.0
    %1204 = vmatprep.subr.mxu0 0.0
    %1205 = vmatpush1.msra.mxu0 0.0
    %1206 = vmatprep.subr.mxu0 0.0
    %1207 = vmatpush1.msra.mxu0 0.0
    %1208 = vmatprep.subr.mxu0 0.0
    %1209 = vmatpush1.msra.mxu0 0.0
    %1210 = vmatprep.subr.mxu0 0.0
    %1211 = vmatpush1.msra.mxu0 0.0
    %1212 = vmatprep.subr.mxu0 0.0
    %1213 = vmatpush1.msra.mxu0 0.0
    %1214 = vmatprep.subr.mxu0 0.0
    %1215 = vmatpush1.msra.mxu0 0.0
    %1216 = vmatprep.subr.mxu0 0.0
    %1217 = vmatpush1.msra.mxu0 0.0
    %1218 = vmatprep.subr.mxu0 0.0
    %1219 = vmatpush1.msra.mxu0 0.0
    %1220 = vmatprep.subr.mxu0 0.0
    %1221 = vmatpush1.msra.mxu0 0.0
    %1222 = vmatprep.subr.mxu0 0.0
    %1223 = vmatpush1.msra.mxu0 0.0
    %1224 = vmatprep.subr.mxu0 0.0
    %1225 = vmatpush1.msra.mxu0 0.0
    %1226 = vmatprep.subr.mxu0 0.0
    %1227 = vmatpush1.msra.mxu0 0.0
    %1228 = vmatprep.subr.mxu0 0.0
    %1229 = vmatpush1.msra.mxu0 0.0
    %1230 = vmatprep.subr.mxu0 0.0
    %1231 = vmatpush1.msra.mxu0 0.0
    %1232 = vmatprep.subr.mxu0 0.0
    %1233 = vmatpush1.msra.mxu0 0.0
    %1234 = vmatprep.subr.mxu0 0.0
    %1235 = vmatpush1.msra.mxu0 0.0
    %1236 = vmatprep.subr.mxu0 0.0
    %1237 = vmatpush1.msra.mxu0 0.0
    %1238 = vmatprep.mubr.f32.mxu0 0.0
    %1239 = vmatmul.mubr.f32.gmra.mrb[0].mxu0 %v1172
    %v1240 = vpop.f32.mrb[0].mxu0
    %v1241 = vadd.f32 0.0, %v1240
    %v1242 = vpop.f32.mrb[0].mxu0
    %1243 = vdwg.mxu0
    %v1244 = vrot.slane %v1156, 2
    %1245 = vrot.lane.b32.xlu0 %v1244, 96
    %v1246 = vpop.permute.xlu0 %1245
    %v1247 = vsel %vm460, %v1246, 0
    %1249 = vmatprep.subr.mxu0 0.0
    %1250 = vmatpush1.msra.mxu0 %v285
    %1251 = vmatprep.subr.mxu0 0.0
    %1252 = vmatpush1.msra.mxu0 %v286
    %1253 = vmatprep.subr.mxu0 0.0
    %1254 = vmatpush1.msra.mxu0 0.0
    %1255 = vmatprep.subr.mxu0 0.0
    %1256 = vmatpush1.msra.mxu0 0.0
    %1257 = vmatprep.subr.mxu0 0.0
    %1258 = vmatpush1.msra.mxu0 0.0
    %1259 = vmatprep.subr.mxu0 0.0
    %1260 = vmatpush1.msra.mxu0 0.0
    %1261 = vmatprep.subr.mxu0 0.0
    %1262 = vmatpush1.msra.mxu0 0.0
    %1263 = vmatprep.subr.mxu0 0.0
    %1264 = vmatpush1.msra.mxu0 0.0
    %1265 = vmatprep.subr.mxu0 0.0
    %1266 = vmatpush1.msra.mxu0 0.0
    %1267 = vmatprep.subr.mxu0 0.0
    %1268 = vmatpush1.msra.mxu0 0.0
    %1269 = vmatprep.subr.mxu0 0.0
    %1270 = vmatpush1.msra.mxu0 0.0
    %1271 = vmatprep.subr.mxu0 0.0
    %1272 = vmatpush1.msra.mxu0 0.0
    %1273 = vmatprep.subr.mxu0 0.0
    %1274 = vmatpush1.msra.mxu0 0.0
    %1275 = vmatprep.subr.mxu0 0.0
    %1276 = vmatpush1.msra.mxu0 0.0
    %1277 = vmatprep.subr.mxu0 0.0
    %1278 = vmatpush1.msra.mxu0 0.0
    %1279 = vmatprep.subr.mxu0 0.0
    %1280 = vmatpush1.msra.mxu0 0.0
    %1281 = vmatprep.subr.mxu0 0.0
    %1282 = vmatpush1.msra.mxu0 0.0
    %1283 = vmatprep.subr.mxu0 0.0
    %1284 = vmatpush1.msra.mxu0 0.0
    %1285 = vmatprep.subr.mxu0 0.0
    %1286 = vmatpush1.msra.mxu0 0.0
    %1287 = vmatprep.subr.mxu0 0.0
    %1288 = vmatpush1.msra.mxu0 0.0
    %1289 = vmatprep.subr.mxu0 0.0
    %1290 = vmatpush1.msra.mxu0 0.0
    %1291 = vmatprep.subr.mxu0 0.0
    %1292 = vmatpush1.msra.mxu0 0.0
    %1293 = vmatprep.subr.mxu0 0.0
    %1294 = vmatpush1.msra.mxu0 0.0
    %1295 = vmatprep.subr.mxu0 0.0
    %1296 = vmatpush1.msra.mxu0 0.0
    %1297 = vmatprep.subr.mxu0 0.0
    %1298 = vmatpush1.msra.mxu0 0.0
    %1299 = vmatprep.subr.mxu0 0.0
    %1300 = vmatpush1.msra.mxu0 0.0
    %1301 = vmatprep.subr.mxu0 0.0
    %1302 = vmatpush1.msra.mxu0 0.0
    %1303 = vmatprep.subr.mxu0 0.0
    %1304 = vmatpush1.msra.mxu0 0.0
    %1305 = vmatprep.subr.mxu0 0.0
    %1306 = vmatpush1.msra.mxu0 0.0
    %1307 = vmatprep.subr.mxu0 0.0
    %1308 = vmatpush1.msra.mxu0 0.0
    %1309 = vmatprep.subr.mxu0 0.0
    %1310 = vmatpush1.msra.mxu0 0.0
    %1311 = vmatprep.subr.mxu0 0.0
    %1312 = vmatpush1.msra.mxu0 0.0
    %1313 = vmatprep.mubr.f32.mxu0 0.0
    %1314 = vmatmul.mubr.f32.gmra.mrb[0].mxu0 %v1247
    %v1315 = vpop.f32.mrb[0].mxu0
    %v1316 = vadd.f32 0.0, %v1315
    %v1317 = vpop.f32.mrb[0].mxu0
    %1318 = vdwg.mxu0
    %v1320 = vrot.slane %v1241, 2
    %v1322 = vadd.f32 %v371, %v1320
    %v1323 = vxor.u32 %v1322, 2147483648
    %v1324 = vmul.f32 %v1323, 1.442695
    %v1325 = vpow.pop %v1324
    %v1326 = vadd.f32 %v1325, 1.0
    %v1327 = vrcp.pop %v1326
    %v1328 = vmul.f32 1.0, %v1327
    %v1329 = vadd.f32 %v1241, %v617
    %v1331 = vrot.slane %v1329, 2
    %1332 = vrot.lane.b32.xlu0 %v1331, 96
    %v1333 = vpop.permute.xlu0 %1332
    %v1335 = vmul.f32 %v1328, %v1333
    %1337 = vrot.lane.b32.xlu0 %v1335, 32
    %v1338 = vpop.permute.xlu0 %1337
    %v1340 = vadd.f32 %v371, %v1338
    %v1341 = vtanh.pop %v1340
    %v1343 = vrot.slane %v1341, 2
    %v1345 = vsub.f32 %v1118, %v1343
    %v1347 = vrot.slane %v1345, 6
    %1348 = vrot.lane.b32.xlu0 %v1347, 112
    %v1349 = vpop.permute.xlu0 %1348
    %v1351 = vmul.f32 %v1328, %v1349
    %1353 = vrot.lane.b32.xlu0 %v1351, 16
    %v1354 = vpop.permute.xlu0 %1353
    %v1356 = vadd.f32 %v1341, %v1354
    %v1357 = vadd.f32 %v457, %v1316
    %v1358 = vxor.u32 %v1357, 2147483648
    %v1359 = vmul.f32 %v1358, 1.442695
    %v1360 = vpow.pop %v1359
    %v1361 = vadd.f32 %v1360, 1.0
    %v1362 = vrcp.pop %v1361
    %v1363 = vmul.f32 1.0, %v1362
    %v1364 = vadd.f32 %v1316, %v658
    %1366 = vrot.lane.b32.xlu0 %v1364, 96
    %v1367 = vpop.permute.xlu0 %1366
    %v1369 = vmul.f32 %v1363, %v1367
    %1371 = vrot.lane.b32.xlu0 %v1369, 32
    %v1372 = vpop.permute.xlu0 %1371
    %v1374 = vadd.f32 %v457, %v1372
    %v1375 = vtanh.pop %v1374
    %v1377 = vrot.slane %v1375, 6
    %v1379 = vsub.f32 %v1156, %v1377
    %v1381 = vrot.slane %v1379, 2
    %1382 = vrot.lane.b32.xlu0 %v1381, 112
    %v1383 = vpop.permute.xlu0 %1382
    %v1385 = vmul.f32 %v1363, %v1383
    %1387 = vrot.lane.b32.xlu0 %v1385, 16
    %v1388 = vpop.permute.xlu0 %1387
    %v1390 = vadd.f32 %v1375, %v1388
    %1392 = vrot.lane.b32.xlu0 %v1356, 96
    %v1393 = vpop.permute.xlu0 %1392
    %vm1395 = vcmask 130054
    %1396 = vst.msk [vmem:[#allocation2] sm:$0xc0] %vm1395, %v1393
    %1398 = vrot.lane.b32.xlu0 %v1390, 112
    %v1399 = vpop.permute.xlu0 %1398
    %vm1401 = vcmask 255104
    %1402 = vst.msk [vmem:[#allocation2 + $0x8] sm:$0x3] %vm1401, %v1399
    %v1403 = vrot.slane %v1356, 6
    %1404 = vrot.lane.b32.xlu0 %v1403, 96
    %v1405 = vpop.permute.xlu0 %1404
    %v1406 = vsel %vm460, %v1405, 0
    %1408 = vmatprep.subr.mxu0 0.0
    %1409 = vmatpush1.msra.mxu0 %v277
    %1410 = vmatprep.subr.mxu0 0.0
    %1411 = vmatpush1.msra.mxu0 %v278
    %1412 = vmatprep.subr.mxu0 0.0
    %1413 = vmatpush1.msra.mxu0 0.0
    %1414 = vmatprep.subr.mxu0 0.0
    %1415 = vmatpush1.msra.mxu0 0.0
    %1416 = vmatprep.subr.mxu0 0.0
    %1417 = vmatpush1.msra.mxu0 0.0
    %1418 = vmatprep.subr.mxu0 0.0
    %1419 = vmatpush1.msra.mxu0 0.0
    %1420 = vmatprep.subr.mxu0 0.0
    %1421 = vmatpush1.msra.mxu0 0.0
    %1422 = vmatprep.subr.mxu0 0.0
    %1423 = vmatpush1.msra.mxu0 0.0
    %1424 = vmatprep.subr.mxu0 0.0
    %1425 = vmatpush1.msra.mxu0 0.0
    %1426 = vmatprep.subr.mxu0 0.0
    %1427 = vmatpush1.msra.mxu0 0.0
    %1428 = vmatprep.subr.mxu0 0.0
    %1429 = vmatpush1.msra.mxu0 0.0
    %1430 = vmatprep.subr.mxu0 0.0
    %1431 = vmatpush1.msra.mxu0 0.0
    %1432 = vmatprep.subr.mxu0 0.0
    %1433 = vmatpush1.msra.mxu0 0.0
    %1434 = vmatprep.subr.mxu0 0.0
    %1435 = vmatpush1.msra.mxu0 0.0
    %1436 = vmatprep.subr.mxu0 0.0
    %1437 = vmatpush1.msra.mxu0 0.0
    %1438 = vmatprep.subr.mxu0 0.0
    %1439 = vmatpush1.msra.mxu0 0.0
    %1440 = vmatprep.subr.mxu0 0.0
    %1441 = vmatpush1.msra.mxu0 0.0
    %1442 = vmatprep.subr.mxu0 0.0
    %1443 = vmatpush1.msra.mxu0 0.0
    %1444 = vmatprep.subr.mxu0 0.0
    %1445 = vmatpush1.msra.mxu0 0.0
    %1446 = vmatprep.subr.mxu0 0.0
    %1447 = vmatpush1.msra.mxu0 0.0
    %1448 = vmatprep.subr.mxu0 0.0
    %1449 = vmatpush1.msra.mxu0 0.0
    %1450 = vmatprep.subr.mxu0 0.0
    %1451 = vmatpush1.msra.mxu0 0.0
    %1452 = vmatprep.subr.mxu0 0.0
    %1453 = vmatpush1.msra.mxu0 0.0
    %1454 = vmatprep.subr.mxu0 0.0
    %1455 = vmatpush1.msra.mxu0 0.0
    %1456 = vmatprep.subr.mxu0 0.0
    %1457 = vmatpush1.msra.mxu0 0.0
    %1458 = vmatprep.subr.mxu0 0.0
    %1459 = vmatpush1.msra.mxu0 0.0
    %1460 = vmatprep.subr.mxu0 0.0
    %1461 = vmatpush1.msra.mxu0 0.0
    %1462 = vmatprep.subr.mxu0 0.0
    %1463 = vmatpush1.msra.mxu0 0.0
    %1464 = vmatprep.subr.mxu0 0.0
    %1465 = vmatpush1.msra.mxu0 0.0
    %1466 = vmatprep.subr.mxu0 0.0
    %1467 = vmatpush1.msra.mxu0 0.0
    %1468 = vmatprep.subr.mxu0 0.0
    %1469 = vmatpush1.msra.mxu0 0.0
    %1470 = vmatprep.subr.mxu0 0.0
    %1471 = vmatpush1.msra.mxu0 0.0
    %1472 = vmatprep.mubr.f32.mxu0 0.0
    %1473 = vmatmul.mubr.f32.gmra.mrb[0].mxu0 %v1406
    %v1474 = vpop.f32.mrb[0].mxu0
    %v1475 = vadd.f32 0.0, %v1474
    %v1476 = vpop.f32.mrb[0].mxu0
    %1477 = vdwg.mxu0
    %1478 = vrot.lane.b32.xlu0 %v1390, 96
    %v1479 = vpop.permute.xlu0 %1478
    %v1480 = vsel %vm460, %v1479, 0
    %1482 = vmatprep.subr.mxu0 0.0
    %1483 = vmatpush1.msra.mxu0 %v285
    %1484 = vmatprep.subr.mxu0 0.0
    %1485 = vmatpush1.msra.mxu0 %v286
    %1486 = vmatprep.subr.mxu0 0.0
    %1487 = vmatpush1.msra.mxu0 0.0
    %1488 = vmatprep.subr.mxu0 0.0
    %1489 = vmatpush1.msra.mxu0 0.0
    %1490 = vmatprep.subr.mxu0 0.0
    %1491 = vmatpush1.msra.mxu0 0.0
    %1492 = vmatprep.subr.mxu0 0.0
    %1493 = vmatpush1.msra.mxu0 0.0
    %1494 = vmatprep.subr.mxu0 0.0
    %1495 = vmatpush1.msra.mxu0 0.0
    %1496 = vmatprep.subr.mxu0 0.0
    %1497 = vmatpush1.msra.mxu0 0.0
    %1498 = vmatprep.subr.mxu0 0.0
    %1499 = vmatpush1.msra.mxu0 0.0
    %1500 = vmatprep.subr.mxu0 0.0
    %1501 = vmatpush1.msra.mxu0 0.0
    %1502 = vmatprep.subr.mxu0 0.0
    %1503 = vmatpush1.msra.mxu0 0.0
    %1504 = vmatprep.subr.mxu0 0.0
    %1505 = vmatpush1.msra.mxu0 0.0
    %1506 = vmatprep.subr.mxu0 0.0
    %1507 = vmatpush1.msra.mxu0 0.0
    %1508 = vmatprep.subr.mxu0 0.0
    %1509 = vmatpush1.msra.mxu0 0.0
    %1510 = vmatprep.subr.mxu0 0.0
    %1511 = vmatpush1.msra.mxu0 0.0
    %1512 = vmatprep.subr.mxu0 0.0
    %1513 = vmatpush1.msra.mxu0 0.0
    %1514 = vmatprep.subr.mxu0 0.0
    %1515 = vmatpush1.msra.mxu0 0.0
    %1516 = vmatprep.subr.mxu0 0.0
    %1517 = vmatpush1.msra.mxu0 0.0
    %1518 = vmatprep.subr.mxu0 0.0
    %1519 = vmatpush1.msra.mxu0 0.0
    %1520 = vmatprep.subr.mxu0 0.0
    %1521 = vmatpush1.msra.mxu0 0.0
    %1522 = vmatprep.subr.mxu0 0.0
    %1523 = vmatpush1.msra.mxu0 0.0
    %1524 = vmatprep.subr.mxu0 0.0
    %1525 = vmatpush1.msra.mxu0 0.0
    %1526 = vmatprep.subr.mxu0 0.0
    %1527 = vmatpush1.msra.mxu0 0.0
    %1528 = vmatprep.subr.mxu0 0.0
    %1529 = vmatpush1.msra.mxu0 0.0
    %1530 = vmatprep.subr.mxu0 0.0
    %1531 = vmatpush1.msra.mxu0 0.0
    %1532 = vmatprep.subr.mxu0 0.0
    %1533 = vmatpush1.msra.mxu0 0.0
    %1534 = vmatprep.subr.mxu0 0.0
    %1535 = vmatpush1.msra.mxu0 0.0
    %1536 = vmatprep.subr.mxu0 0.0
    %1537 = vmatpush1.msra.mxu0 0.0
    %1538 = vmatprep.subr.mxu0 0.0
    %1539 = vmatpush1.msra.mxu0 0.0
    %1540 = vmatprep.subr.mxu0 0.0
    %1541 = vmatpush1.msra.mxu0 0.0
    %1542 = vmatprep.subr.mxu0 0.0
    %1543 = vmatpush1.msra.mxu0 0.0
    %1544 = vmatprep.subr.mxu0 0.0
    %1545 = vmatpush1.msra.mxu0 0.0
    %1546 = vmatprep.mubr.f32.mxu0 0.0
    %1547 = vmatmul.mubr.f32.gmra.mrb[0].mxu0 %v1480
    %v1548 = vpop.f32.mrb[0].mxu0
    %v1549 = vadd.f32 0.0, %v1548
    %v1550 = vpop.f32.mrb[0].mxu0
    %1551 = vdwg.mxu0
    %v1552 = vadd.f32 %v376, %v1475
    %v1553 = vxor.u32 %v1552, 2147483648
    %v1554 = vmul.f32 %v1553, 1.442695
    %v1555 = vpow.pop %v1554
    %v1556 = vadd.f32 %v1555, 1.0
    %v1557 = vrcp.pop %v1556
    %v1558 = vmul.f32 1.0, %v1557
    %v1559 = vadd.f32 %v1475, %v617
    %1561 = vrot.lane.b32.xlu0 %v1559, 96
    %v1562 = vpop.permute.xlu0 %1561
    %v1564 = vmul.f32 %v1558, %v1562
    %1566 = vrot.lane.b32.xlu0 %v1564, 32
    %v1567 = vpop.permute.xlu0 %1566
    %v1569 = vadd.f32 %v376, %v1567
    %v1570 = vtanh.pop %v1569
    %v1572 = vrot.slane %v1570, 2
    %v1574 = vsub.f32 %v1356, %v1572
    %v1576 = vrot.slane %v1574, 6
    %1577 = vrot.lane.b32.xlu0 %v1576, 112
    %v1578 = vpop.permute.xlu0 %1577
    %v1580 = vmul.f32 %v1558, %v1578
    %1582 = vrot.lane.b32.xlu0 %v1580, 16
    %v1583 = vpop.permute.xlu0 %1582
    %v1585 = vadd.f32 %v1570, %v1583
    %v1587 = vrot.slane %v1549, 2
    %v1589 = vadd.f32 %v452, %v1587
    %v1590 = vxor.u32 %v1589, 2147483648
    %v1591 = vmul.f32 %v1590, 1.442695
    %v1592 = vpow.pop %v1591
    %v1593 = vadd.f32 %v1592, 1.0
    %v1594 = vrcp.pop %v1593
    %v1595 = vmul.f32 1.0, %v1594
    %v1596 = vadd.f32 %v1549, %v658
    %v1598 = vrot.slane %v1596, 2
    %1599 = vrot.lane.b32.xlu0 %v1598, 96
    %v1600 = vpop.permute.xlu0 %1599
    %v1602 = vmul.f32 %v1595, %v1600
    %1604 = vrot.lane.b32.xlu0 %v1602, 32
    %v1605 = vpop.permute.xlu0 %1604
    %v1607 = vadd.f32 %v452, %v1605
    %v1608 = vtanh.pop %v1607
    %v1610 = vrot.slane %v1608, 6
    %v1612 = vsub.f32 %v1390, %v1610
    %v1614 = vrot.slane %v1612, 2
    %1615 = vrot.lane.b32.xlu0 %v1614, 112
    %v1616 = vpop.permute.xlu0 %1615
    %v1618 = vmul.f32 %v1595, %v1616
    %1620 = vrot.lane.b32.xlu0 %v1618, 16
    %v1621 = vpop.permute.xlu0 %1620
    %v1623 = vadd.f32 %v1608, %v1621
    %1625 = vrot.lane.b32.xlu0 %v1585, 96
    %v1626 = vpop.permute.xlu0 %1625
    %1628 = vst.msk [vmem:[#allocation2 + $0x8] sm:$0x3] %vm688, %v1626
    %1630 = vrot.lane.b32.xlu0 %v1623, 112
    %v1631 = vpop.permute.xlu0 %1630
    %1633 = vst.msk [vmem:[#allocation2] sm:$0xc0] %vm694, %v1631
    %v1634 = vsel %vm460, %v1626, 0
    %1636 = vmatprep.subr.mxu0 0.0
    %1637 = vmatpush1.msra.mxu0 %v277
    %1638 = vmatprep.subr.mxu0 0.0
    %1639 = vmatpush1.msra.mxu0 %v278
    %1640 = vmatprep.subr.mxu0 0.0
    %1641 = vmatpush1.msra.mxu0 0.0
    %1642 = vmatprep.subr.mxu0 0.0
    %1643 = vmatpush1.msra.mxu0 0.0
    %1644 = vmatprep.subr.mxu0 0.0
    %1645 = vmatpush1.msra.mxu0 0.0
    %1646 = vmatprep.subr.mxu0 0.0
    %1647 = vmatpush1.msra.mxu0 0.0
    %1648 = vmatprep.subr.mxu0 0.0
    %1649 = vmatpush1.msra.mxu0 0.0
    %1650 = vmatprep.subr.mxu0 0.0
    %1651 = vmatpush1.msra.mxu0 0.0
    %1652 = vmatprep.subr.mxu0 0.0
    %1653 = vmatpush1.msra.mxu0 0.0
    %1654 = vmatprep.subr.mxu0 0.0
    %1655 = vmatpush1.msra.mxu0 0.0
    %1656 = vmatprep.subr.mxu0 0.0
    %1657 = vmatpush1.msra.mxu0 0.0
    %1658 = vmatprep.subr.mxu0 0.0
    %1659 = vmatpush1.msra.mxu0 0.0
    %1660 = vmatprep.subr.mxu0 0.0
    %1661 = vmatpush1.msra.mxu0 0.0
    %1662 = vmatprep.subr.mxu0 0.0
    %1663 = vmatpush1.msra.mxu0 0.0
    %1664 = vmatprep.subr.mxu0 0.0
    %1665 = vmatpush1.msra.mxu0 0.0
    %1666 = vmatprep.subr.mxu0 0.0
    %1667 = vmatpush1.msra.mxu0 0.0
    %1668 = vmatprep.subr.mxu0 0.0
    %1669 = vmatpush1.msra.mxu0 0.0
    %1670 = vmatprep.subr.mxu0 0.0
    %1671 = vmatpush1.msra.mxu0 0.0
    %1672 = vmatprep.subr.mxu0 0.0
    %1673 = vmatpush1.msra.mxu0 0.0
    %1674 = vmatprep.subr.mxu0 0.0
    %1675 = vmatpush1.msra.mxu0 0.0
    %1676 = vmatprep.subr.mxu0 0.0
    %1677 = vmatpush1.msra.mxu0 0.0
    %1678 = vmatprep.subr.mxu0 0.0
    %1679 = vmatpush1.msra.mxu0 0.0
    %1680 = vmatprep.subr.mxu0 0.0
    %1681 = vmatpush1.msra.mxu0 0.0
    %1682 = vmatprep.subr.mxu0 0.0
    %1683 = vmatpush1.msra.mxu0 0.0
    %1684 = vmatprep.subr.mxu0 0.0
    %1685 = vmatpush1.msra.mxu0 0.0
    %1686 = vmatprep.subr.mxu0 0.0
    %1687 = vmatpush1.msra.mxu0 0.0
    %1688 = vmatprep.subr.mxu0 0.0
    %1689 = vmatpush1.msra.mxu0 0.0
    %1690 = vmatprep.subr.mxu0 0.0
    %1691 = vmatpush1.msra.mxu0 0.0
    %1692 = vmatprep.subr.mxu0 0.0
    %1693 = vmatpush1.msra.mxu0 0.0
    %1694 = vmatprep.subr.mxu0 0.0
    %1695 = vmatpush1.msra.mxu0 0.0
    %1696 = vmatprep.subr.mxu0 0.0
    %1697 = vmatpush1.msra.mxu0 0.0
    %1698 = vmatprep.subr.mxu0 0.0
    %1699 = vmatpush1.msra.mxu0 0.0
    %1700 = vmatprep.mubr.f32.mxu0 0.0
    %1701 = vmatmul.mubr.f32.gmra.mrb[0].mxu0 %v1634
    %v1702 = vpop.f32.mrb[0].mxu0
    %v1703 = vadd.f32 0.0, %v1702
    %v1704 = vpop.f32.mrb[0].mxu0
    %1705 = vdwg.mxu0
    %v1706 = vrot.slane %v1623, 6
    %1707 = vrot.lane.b32.xlu0 %v1706, 96
    %v1708 = vpop.permute.xlu0 %1707
    %v1709 = vsel %vm460, %v1708, 0
    %1711 = vmatprep.subr.mxu0 0.0
    %1712 = vmatpush1.msra.mxu0 %v285
    %1713 = vmatprep.subr.mxu0 0.0
    %1714 = vmatpush1.msra.mxu0 %v286
    %1715 = vmatprep.subr.mxu0 0.0
    %1716 = vmatpush1.msra.mxu0 0.0
    %1717 = vmatprep.subr.mxu0 0.0
    %1718 = vmatpush1.msra.mxu0 0.0
    %1719 = vmatprep.subr.mxu0 0.0
    %1720 = vmatpush1.msra.mxu0 0.0
    %1721 = vmatprep.subr.mxu0 0.0
    %1722 = vmatpush1.msra.mxu0 0.0
    %1723 = vmatprep.subr.mxu0 0.0
    %1724 = vmatpush1.msra.mxu0 0.0
    %1725 = vmatprep.subr.mxu0 0.0
    %1726 = vmatpush1.msra.mxu0 0.0
    %1727 = vmatprep.subr.mxu0 0.0
    %1728 = vmatpush1.msra.mxu0 0.0
    %1729 = vmatprep.subr.mxu0 0.0
    %1730 = vmatpush1.msra.mxu0 0.0
    %1731 = vmatprep.subr.mxu0 0.0
    %1732 = vmatpush1.msra.mxu0 0.0
    %1733 = vmatprep.subr.mxu0 0.0
    %1734 = vmatpush1.msra.mxu0 0.0
    %1735 = vmatprep.subr.mxu0 0.0
    %1736 = vmatpush1.msra.mxu0 0.0
    %1737 = vmatprep.subr.mxu0 0.0
    %1738 = vmatpush1.msra.mxu0 0.0
    %1739 = vmatprep.subr.mxu0 0.0
    %1740 = vmatpush1.msra.mxu0 0.0
    %1741 = vmatprep.subr.mxu0 0.0
    %1742 = vmatpush1.msra.mxu0 0.0
    %1743 = vmatprep.subr.mxu0 0.0
    %1744 = vmatpush1.msra.mxu0 0.0
    %1745 = vmatprep.subr.mxu0 0.0
    %1746 = vmatpush1.msra.mxu0 0.0
    %1747 = vmatprep.subr.mxu0 0.0
    %1748 = vmatpush1.msra.mxu0 0.0
    %1749 = vmatprep.subr.mxu0 0.0
    %1750 = vmatpush1.msra.mxu0 0.0
    %1751 = vmatprep.subr.mxu0 0.0
    %1752 = vmatpush1.msra.mxu0 0.0
    %1753 = vmatprep.subr.mxu0 0.0
    %1754 = vmatpush1.msra.mxu0 0.0
    %1755 = vmatprep.subr.mxu0 0.0
    %1756 = vmatpush1.msra.mxu0 0.0
    %1757 = vmatprep.subr.mxu0 0.0
    %1758 = vmatpush1.msra.mxu0 0.0
    %1759 = vmatprep.subr.mxu0 0.0
    %1760 = vmatpush1.msra.mxu0 0.0
    %1761 = vmatprep.subr.mxu0 0.0
    %1762 = vmatpush1.msra.mxu0 0.0
    %1763 = vmatprep.subr.mxu0 0.0
    %1764 = vmatpush1.msra.mxu0 0.0
    %1765 = vmatprep.subr.mxu0 0.0
    %1766 = vmatpush1.msra.mxu0 0.0
    %1767 = vmatprep.subr.mxu0 0.0
    %1768 = vmatpush1.msra.mxu0 0.0
    %1769 = vmatprep.subr.mxu0 0.0
    %1770 = vmatpush1.msra.mxu0 0.0
    %1771 = vmatprep.subr.mxu0 0.0
    %1772 = vmatpush1.msra.mxu0 0.0
    %1773 = vmatprep.subr.mxu0 0.0
    %1774 = vmatpush1.msra.mxu0 0.0
    %1775 = vmatprep.mubr.f32.mxu0 0.0
    %1776 = vmatmul.mubr.f32.gmra.mrb[0].mxu0 %v1709
    %v1777 = vpop.f32.mrb[0].mxu0
    %v1778 = vadd.f32 0.0, %v1777
    %v1779 = vpop.f32.mrb[0].mxu0
    %1780 = vdwg.mxu0
    %v1782 = vrot.slane %v1703, 6
    %v1784 = vadd.f32 %v376, %v1782
    %v1785 = vxor.u32 %v1784, 2147483648
    %v1786 = vmul.f32 %v1785, 1.442695
    %v1787 = vpow.pop %v1786
    %v1788 = vadd.f32 %v1787, 1.0
    %v1789 = vrcp.pop %v1788
    %v1790 = vmul.f32 1.0, %v1789
    %v1791 = vadd.f32 %v1703, %v617
    %v1793 = vrot.slane %v1791, 6
    %1794 = vrot.lane.b32.xlu0 %v1793, 96
    %v1795 = vpop.permute.xlu0 %1794
    %v1797 = vmul.f32 %v1790, %v1795
    %1799 = vrot.lane.b32.xlu0 %v1797, 32
    %v1800 = vpop.permute.xlu0 %1799
    %v1802 = vadd.f32 %v376, %v1800
    %v1803 = vtanh.pop %v1802
    %v1805 = vrot.slane %v1803, 2
    %v1807 = vsub.f32 %v1585, %v1805
    %v1809 = vrot.slane %v1807, 6
    %1810 = vrot.lane.b32.xlu0 %v1809, 112
    %v1811 = vpop.permute.xlu0 %1810
    %v1813 = vmul.f32 %v1790, %v1811
    %1815 = vrot.lane.b32.xlu0 %v1813, 16
    %v1816 = vpop.permute.xlu0 %1815
    %v1818 = vadd.f32 %v1803, %v1816
    %v1820 = vrot.slane %v1778, 4
    %v1822 = vadd.f32 %v452, %v1820
    %v1823 = vxor.u32 %v1822, 2147483648
    %v1824 = vmul.f32 %v1823, 1.442695
    %v1825 = vpow.pop %v1824
    %v1826 = vadd.f32 %v1825, 1.0
    %v1827 = vrcp.pop %v1826
    %v1828 = vmul.f32 1.0, %v1827
    %v1829 = vadd.f32 %v1778, %v658
    %v1831 = vrot.slane %v1829, 4
    %1832 = vrot.lane.b32.xlu0 %v1831, 96
    %v1833 = vpop.permute.xlu0 %1832
    %v1835 = vmul.f32 %v1828, %v1833
    %1837 = vrot.lane.b32.xlu0 %v1835, 32
    %v1838 = vpop.permute.xlu0 %1837
    %v1840 = vadd.f32 %v452, %v1838
    %v1841 = vtanh.pop %v1840
    %v1843 = vrot.slane %v1841, 6
    %v1845 = vsub.f32 %v1623, %v1843
    %v1847 = vrot.slane %v1845, 2
    %1848 = vrot.lane.b32.xlu0 %v1847, 112
    %v1849 = vpop.permute.xlu0 %1848
    %v1851 = vmul.f32 %v1828, %v1849
    %1853 = vrot.lane.b32.xlu0 %v1851, 16
    %v1854 = vpop.permute.xlu0 %1853
    %v1856 = vadd.f32 %v1841, %v1854
    %1858 = vrot.lane.b32.xlu0 %v1818, 96
    %v1859 = vpop.permute.xlu0 %1858
    %1861 = vst.msk [vmem:[#allocation2 + $0x8] sm:$0xc] %vm923, %v1859
    %1863 = vrot.lane.b32.xlu0 %v1856, 112
    %v1864 = vpop.permute.xlu0 %1863
    %1866 = vst.msk [vmem:[#allocation2] sm:$0x30] %vm929, %v1864
    %v1867 = vrot.slane %v1818, 2
    %1868 = vrot.lane.b32.xlu0 %v1867, 96
    %v1869 = vpop.permute.xlu0 %1868
    %v1870 = vsel %vm460, %v1869, 0
    %1872 = vmatprep.subr.mxu0 0.0
    %1873 = vmatpush1.msra.mxu0 %v277
    %1874 = vmatprep.subr.mxu0 0.0
    %1875 = vmatpush1.msra.mxu0 %v278
    %1876 = vmatprep.subr.mxu0 0.0
    %1877 = vmatpush1.msra.mxu0 0.0
    %1878 = vmatprep.subr.mxu0 0.0
    %1879 = vmatpush1.msra.mxu0 0.0
    %1880 = vmatprep.subr.mxu0 0.0
    %1881 = vmatpush1.msra.mxu0 0.0
    %1882 = vmatprep.subr.mxu0 0.0
    %1883 = vmatpush1.msra.mxu0 0.0
    %1884 = vmatprep.subr.mxu0 0.0
    %1885 = vmatpush1.msra.mxu0 0.0
    %1886 = vmatprep.subr.mxu0 0.0
    %1887 = vmatpush1.msra.mxu0 0.0
    %1888 = vmatprep.subr.mxu0 0.0
    %1889 = vmatpush1.msra.mxu0 0.0
    %1890 = vmatprep.subr.mxu0 0.0
    %1891 = vmatpush1.msra.mxu0 0.0
    %1892 = vmatprep.subr.mxu0 0.0
    %1893 = vmatpush1.msra.mxu0 0.0
    %1894 = vmatprep.subr.mxu0 0.0
    %1895 = vmatpush1.msra.mxu0 0.0
    %1896 = vmatprep.subr.mxu0 0.0
    %1897 = vmatpush1.msra.mxu0 0.0
    %1898 = vmatprep.subr.mxu0 0.0
    %1899 = vmatpush1.msra.mxu0 0.0
    %1900 = vmatprep.subr.mxu0 0.0
    %1901 = vmatpush1.msra.mxu0 0.0
    %1902 = vmatprep.subr.mxu0 0.0
    %1903 = vmatpush1.msra.mxu0 0.0
    %1904 = vmatprep.subr.mxu0 0.0
    %1905 = vmatpush1.msra.mxu0 0.0
    %1906 = vmatprep.subr.mxu0 0.0
    %1907 = vmatpush1.msra.mxu0 0.0
    %1908 = vmatprep.subr.mxu0 0.0
    %1909 = vmatpush1.msra.mxu0 0.0
    %1910 = vmatprep.subr.mxu0 0.0
    %1911 = vmatpush1.msra.mxu0 0.0
    %1912 = vmatprep.subr.mxu0 0.0
    %1913 = vmatpush1.msra.mxu0 0.0
    %1914 = vmatprep.subr.mxu0 0.0
    %1915 = vmatpush1.msra.mxu0 0.0
    %1916 = vmatprep.subr.mxu0 0.0
    %1917 = vmatpush1.msra.mxu0 0.0
    %1918 = vmatprep.subr.mxu0 0.0
    %1919 = vmatpush1.msra.mxu0 0.0
    %1920 = vmatprep.subr.mxu0 0.0
    %1921 = vmatpush1.msra.mxu0 0.0
    %1922 = vmatprep.subr.mxu0 0.0
    %1923 = vmatpush1.msra.mxu0 0.0
    %1924 = vmatprep.subr.mxu0 0.0
    %1925 = vmatpush1.msra.mxu0 0.0
    %1926 = vmatprep.subr.mxu0 0.0
    %1927 = vmatpush1.msra.mxu0 0.0
    %1928 = vmatprep.subr.mxu0 0.0
    %1929 = vmatpush1.msra.mxu0 0.0
    %1930 = vmatprep.subr.mxu0 0.0
    %1931 = vmatpush1.msra.mxu0 0.0
    %1932 = vmatprep.subr.mxu0 0.0
    %1933 = vmatpush1.msra.mxu0 0.0
    %1934 = vmatprep.subr.mxu0 0.0
    %1935 = vmatpush1.msra.mxu0 0.0
    %1936 = vmatprep.mubr.f32.mxu0 0.0
    %1937 = vmatmul.mubr.f32.gmra.mrb[0].mxu0 %v1870
    %v1938 = vpop.f32.mrb[0].mxu0
    %v1939 = vadd.f32 0.0, %v1938
    %v1940 = vpop.f32.mrb[0].mxu0
    %1941 = vdwg.mxu0
    %v1942 = vrot.slane %v1856, 4
    %1943 = vrot.lane.b32.xlu0 %v1942, 96
    %v1944 = vpop.permute.xlu0 %1943
    %v1945 = vsel %vm460, %v1944, 0
    %1947 = vmatprep.subr.mxu0 0.0
    %1948 = vmatpush1.msra.mxu0 %v285
    %1949 = vmatprep.subr.mxu0 0.0
    %1950 = vmatpush1.msra.mxu0 %v286
    %1951 = vmatprep.subr.mxu0 0.0
    %1952 = vmatpush1.msra.mxu0 0.0
    %1953 = vmatprep.subr.mxu0 0.0
    %1954 = vmatpush1.msra.mxu0 0.0
    %1955 = vmatprep.subr.mxu0 0.0
    %1956 = vmatpush1.msra.mxu0 0.0
    %1957 = vmatprep.subr.mxu0 0.0
    %1958 = vmatpush1.msra.mxu0 0.0
    %1959 = vmatprep.subr.mxu0 0.0
    %1960 = vmatpush1.msra.mxu0 0.0
    %1961 = vmatprep.subr.mxu0 0.0
    %1962 = vmatpush1.msra.mxu0 0.0
    %1963 = vmatprep.subr.mxu0 0.0
    %1964 = vmatpush1.msra.mxu0 0.0
    %1965 = vmatprep.subr.mxu0 0.0
    %1966 = vmatpush1.msra.mxu0 0.0
    %1967 = vmatprep.subr.mxu0 0.0
    %1968 = vmatpush1.msra.mxu0 0.0
    %1969 = vmatprep.subr.mxu0 0.0
    %1970 = vmatpush1.msra.mxu0 0.0
    %1971 = vmatprep.subr.mxu0 0.0
    %1972 = vmatpush1.msra.mxu0 0.0
    %1973 = vmatprep.subr.mxu0 0.0
    %1974 = vmatpush1.msra.mxu0 0.0
    %1975 = vmatprep.subr.mxu0 0.0
    %1976 = vmatpush1.msra.mxu0 0.0
    %1977 = vmatprep.subr.mxu0 0.0
    %1978 = vmatpush1.msra.mxu0 0.0
    %1979 = vmatprep.subr.mxu0 0.0
    %1980 = vmatpush1.msra.mxu0 0.0
    %1981 = vmatprep.subr.mxu0 0.0
    %1982 = vmatpush1.msra.mxu0 0.0
    %1983 = vmatprep.subr.mxu0 0.0
    %1984 = vmatpush1.msra.mxu0 0.0
    %1985 = vmatprep.subr.mxu0 0.0
    %1986 = vmatpush1.msra.mxu0 0.0
    %1987 = vmatprep.subr.mxu0 0.0
    %1988 = vmatpush1.msra.mxu0 0.0
    %1989 = vmatprep.subr.mxu0 0.0
    %1990 = vmatpush1.msra.mxu0 0.0
    %1991 = vmatprep.subr.mxu0 0.0
    %1992 = vmatpush1.msra.mxu0 0.0
    %1993 = vmatprep.subr.mxu0 0.0
    %1994 = vmatpush1.msra.mxu0 0.0
    %1995 = vmatprep.subr.mxu0 0.0
    %1996 = vmatpush1.msra.mxu0 0.0
    %1997 = vmatprep.subr.mxu0 0.0
    %1998 = vmatpush1.msra.mxu0 0.0
    %1999 = vmatprep.subr.mxu0 0.0
    %2000 = vmatpush1.msra.mxu0 0.0
    %2001 = vmatprep.subr.mxu0 0.0
    %2002 = vmatpush1.msra.mxu0 0.0
    %2003 = vmatprep.subr.mxu0 0.0
    %2004 = vmatpush1.msra.mxu0 0.0
    %2005 = vmatprep.subr.mxu0 0.0
    %2006 = vmatpush1.msra.mxu0 0.0
    %2007 = vmatprep.subr.mxu0 0.0
    %2008 = vmatpush1.msra.mxu0 0.0
    %2009 = vmatprep.subr.mxu0 0.0
    %2010 = vmatpush1.msra.mxu0 0.0
    %2011 = vmatprep.mubr.f32.mxu0 0.0
    %2012 = vmatmul.mubr.f32.gmra.mrb[0].mxu0 %v1945
    %v2013 = vpop.f32.mrb[0].mxu0
    %v2014 = vadd.f32 0.0, %v2013
    %v2015 = vpop.f32.mrb[0].mxu0
    %2016 = vdwg.mxu0
    %v2018 = vrot.slane %v1939, 4
    %v2020 = vadd.f32 %v376, %v2018
    %v2021 = vxor.u32 %v2020, 2147483648
    %v2022 = vmul.f32 %v2021, 1.442695
    %v2023 = vpow.pop %v2022
    %v2024 = vadd.f32 %v2023, 1.0
    %v2025 = vrcp.pop %v2024
    %v2026 = vmul.f32 1.0, %v2025
    %v2027 = vadd.f32 %v1939, %v617
    %v2029 = vrot.slane %v2027, 4
    %2030 = vrot.lane.b32.xlu0 %v2029, 96
    %v2031 = vpop.permute.xlu0 %2030
    %v2033 = vmul.f32 %v2026, %v2031
    %2035 = vrot.lane.b32.xlu0 %v2033, 32
    %v2036 = vpop.permute.xlu0 %2035
    %v2038 = vadd.f32 %v376, %v2036
    %v2039 = vtanh.pop %v2038
    %v2041 = vrot.slane %v2039, 2
    %v2043 = vsub.f32 %v1818, %v2041
    %v2045 = vrot.slane %v2043, 6
    %2046 = vrot.lane.b32.xlu0 %v2045, 112
    %v2047 = vpop.permute.xlu0 %2046
    %v2049 = vmul.f32 %v2026, %v2047
    %2051 = vrot.lane.b32.xlu0 %v2049, 16
    %v2052 = vpop.permute.xlu0 %2051
    %v2054 = vadd.f32 %v2039, %v2052
    %v2056 = vrot.slane %v2014, 6
    %v2058 = vadd.f32 %v452, %v2056
    %v2059 = vxor.u32 %v2058, 2147483648
    %v2060 = vmul.f32 %v2059, 1.442695
    %v2061 = vpow.pop %v2060
    %v2062 = vadd.f32 %v2061, 1.0
    %v2063 = vrcp.pop %v2062
    %v2064 = vmul.f32 1.0, %v2063
    %v2065 = vadd.f32 %v2014, %v658
    %v2067 = vrot.slane %v2065, 6
    %2068 = vrot.lane.b32.xlu0 %v2067, 96
    %v2069 = vpop.permute.xlu0 %2068
    %v2071 = vmul.f32 %v2064, %v2069
    %2073 = vrot.lane.b32.xlu0 %v2071, 32
    %v2074 = vpop.permute.xlu0 %2073
    %v2076 = vadd.f32 %v452, %v2074
    %v2077 = vtanh.pop %v2076
    %v2079 = vrot.slane %v2077, 6
    %v2081 = vsub.f32 %v1856, %v2079
    %v2083 = vrot.slane %v2081, 2
    %2084 = vrot.lane.b32.xlu0 %v2083, 112
    %v2085 = vpop.permute.xlu0 %2084
    %v2087 = vmul.f32 %v2064, %v2085
    %2089 = vrot.lane.b32.xlu0 %v2087, 16
    %v2090 = vpop.permute.xlu0 %2089
    %v2092 = vadd.f32 %v2077, %v2090
    %2094 = vrot.lane.b32.xlu0 %v2054, 96
    %v2095 = vpop.permute.xlu0 %2094
    %2097 = vst.msk [vmem:[#allocation2 + $0x8] sm:$0x30] %vm1161, %v2095
    %2099 = vrot.lane.b32.xlu0 %v2092, 112
    %v2100 = vpop.permute.xlu0 %2099
    %2102 = vst.msk [vmem:[#allocation2] sm:$0xc] %vm1167, %v2100
    %v2103 = vrot.slane %v2054, 4
    %2104 = vrot.lane.b32.xlu0 %v2103, 96
    %v2105 = vpop.permute.xlu0 %2104
    %v2106 = vsel %vm460, %v2105, 0
    %2108 = vmatprep.subr.mxu0 0.0
    %2109 = vmatpush1.msra.mxu0 %v277
    %2110 = vmatprep.subr.mxu0 0.0
    %2111 = vmatpush1.msra.mxu0 %v278
    %2112 = vmatprep.subr.mxu0 0.0
    %2113 = vmatpush1.msra.mxu0 0.0
    %2114 = vmatprep.subr.mxu0 0.0
    %2115 = vmatpush1.msra.mxu0 0.0
    %2116 = vmatprep.subr.mxu0 0.0
    %2117 = vmatpush1.msra.mxu0 0.0
    %2118 = vmatprep.subr.mxu0 0.0
    %2119 = vmatpush1.msra.mxu0 0.0
    %2120 = vmatprep.subr.mxu0 0.0
    %2121 = vmatpush1.msra.mxu0 0.0
    %2122 = vmatprep.subr.mxu0 0.0
    %2123 = vmatpush1.msra.mxu0 0.0
    %2124 = vmatprep.subr.mxu0 0.0
    %2125 = vmatpush1.msra.mxu0 0.0
    %2126 = vmatprep.subr.mxu0 0.0
    %2127 = vmatpush1.msra.mxu0 0.0
    %2128 = vmatprep.subr.mxu0 0.0
    %2129 = vmatpush1.msra.mxu0 0.0
    %2130 = vmatprep.subr.mxu0 0.0
    %2131 = vmatpush1.msra.mxu0 0.0
    %2132 = vmatprep.subr.mxu0 0.0
    %2133 = vmatpush1.msra.mxu0 0.0
    %2134 = vmatprep.subr.mxu0 0.0
    %2135 = vmatpush1.msra.mxu0 0.0
    %2136 = vmatprep.subr.mxu0 0.0
    %2137 = vmatpush1.msra.mxu0 0.0
    %2138 = vmatprep.subr.mxu0 0.0
    %2139 = vmatpush1.msra.mxu0 0.0
    %2140 = vmatprep.subr.mxu0 0.0
    %2141 = vmatpush1.msra.mxu0 0.0
    %2142 = vmatprep.subr.mxu0 0.0
    %2143 = vmatpush1.msra.mxu0 0.0
    %2144 = vmatprep.subr.mxu0 0.0
    %2145 = vmatpush1.msra.mxu0 0.0
    %2146 = vmatprep.subr.mxu0 0.0
    %2147 = vmatpush1.msra.mxu0 0.0
    %2148 = vmatprep.subr.mxu0 0.0
    %2149 = vmatpush1.msra.mxu0 0.0
    %2150 = vmatprep.subr.mxu0 0.0
    %2151 = vmatpush1.msra.mxu0 0.0
    %2152 = vmatprep.subr.mxu0 0.0
    %2153 = vmatpush1.msra.mxu0 0.0
    %2154 = vmatprep.subr.mxu0 0.0
    %2155 = vmatpush1.msra.mxu0 0.0
    %2156 = vmatprep.subr.mxu0 0.0
    %2157 = vmatpush1.msra.mxu0 0.0
    %2158 = vmatprep.subr.mxu0 0.0
    %2159 = vmatpush1.msra.mxu0 0.0
    %2160 = vmatprep.subr.mxu0 0.0
    %2161 = vmatpush1.msra.mxu0 0.0
    %2162 = vmatprep.subr.mxu0 0.0
    %2163 = vmatpush1.msra.mxu0 0.0
    %2164 = vmatprep.subr.mxu0 0.0
    %2165 = vmatpush1.msra.mxu0 0.0
    %2166 = vmatprep.subr.mxu0 0.0
    %2167 = vmatpush1.msra.mxu0 0.0
    %2168 = vmatprep.subr.mxu0 0.0
    %2169 = vmatpush1.msra.mxu0 0.0
    %2170 = vmatprep.subr.mxu0 0.0
    %2171 = vmatpush1.msra.mxu0 0.0
    %2172 = vmatprep.mubr.f32.mxu0 0.0
    %2173 = vmatmul.mubr.f32.gmra.mrb[0].mxu0 %v2106
    %v2174 = vpop.f32.mrb[0].mxu0
    %v2175 = vadd.f32 0.0, %v2174
    %v2176 = vpop.f32.mrb[0].mxu0
    %2177 = vdwg.mxu0
    %v2178 = vrot.slane %v2092, 2
    %2179 = vrot.lane.b32.xlu0 %v2178, 96
    %v2180 = vpop.permute.xlu0 %2179
    %v2181 = vsel %vm460, %v2180, 0
    %2183 = vmatprep.subr.mxu0 0.0
    %2184 = vmatpush1.msra.mxu0 %v285
    %2185 = vmatprep.subr.mxu0 0.0
    %2186 = vmatpush1.msra.mxu0 %v286
    %2187 = vmatprep.subr.mxu0 0.0
    %2188 = vmatpush1.msra.mxu0 0.0
    %2189 = vmatprep.subr.mxu0 0.0
    %2190 = vmatpush1.msra.mxu0 0.0
    %2191 = vmatprep.subr.mxu0 0.0
    %2192 = vmatpush1.msra.mxu0 0.0
    %2193 = vmatprep.subr.mxu0 0.0
    %2194 = vmatpush1.msra.mxu0 0.0
    %2195 = vmatprep.subr.mxu0 0.0
    %2196 = vmatpush1.msra.mxu0 0.0
    %2197 = vmatprep.subr.mxu0 0.0
    %2198 = vmatpush1.msra.mxu0 0.0
    %2199 = vmatprep.subr.mxu0 0.0
    %2200 = vmatpush1.msra.mxu0 0.0
    %2201 = vmatprep.subr.mxu0 0.0
    %2202 = vmatpush1.msra.mxu0 0.0
    %2203 = vmatprep.subr.mxu0 0.0
    %2204 = vmatpush1.msra.mxu0 0.0
    %2205 = vmatprep.subr.mxu0 0.0
    %2206 = vmatpush1.msra.mxu0 0.0
    %2207 = vmatprep.subr.mxu0 0.0
    %2208 = vmatpush1.msra.mxu0 0.0
    %2209 = vmatprep.subr.mxu0 0.0
    %2210 = vmatpush1.msra.mxu0 0.0
    %2211 = vmatprep.subr.mxu0 0.0
    %2212 = vmatpush1.msra.mxu0 0.0
    %2213 = vmatprep.subr.mxu0 0.0
    %2214 = vmatpush1.msra.mxu0 0.0
    %2215 = vmatprep.subr.mxu0 0.0
    %2216 = vmatpush1.msra.mxu0 0.0
    %2217 = vmatprep.subr.mxu0 0.0
    %2218 = vmatpush1.msra.mxu0 0.0
    %2219 = vmatprep.subr.mxu0 0.0
    %2220 = vmatpush1.msra.mxu0 0.0
    %2221 = vmatprep.subr.mxu0 0.0
    %2222 = vmatpush1.msra.mxu0 0.0
    %2223 = vmatprep.subr.mxu0 0.0
    %2224 = vmatpush1.msra.mxu0 0.0
    %2225 = vmatprep.subr.mxu0 0.0
    %2226 = vmatpush1.msra.mxu0 0.0
    %2227 = vmatprep.subr.mxu0 0.0
    %2228 = vmatpush1.msra.mxu0 0.0
    %2229 = vmatprep.subr.mxu0 0.0
    %2230 = vmatpush1.msra.mxu0 0.0
    %2231 = vmatprep.subr.mxu0 0.0
    %2232 = vmatpush1.msra.mxu0 0.0
    %2233 = vmatprep.subr.mxu0 0.0
    %2234 = vmatpush1.msra.mxu0 0.0
    %2235 = vmatprep.subr.mxu0 0.0
    %2236 = vmatpush1.msra.mxu0 0.0
    %2237 = vmatprep.subr.mxu0 0.0
    %2238 = vmatpush1.msra.mxu0 0.0
    %2239 = vmatprep.subr.mxu0 0.0
    %2240 = vmatpush1.msra.mxu0 0.0
    %2241 = vmatprep.subr.mxu0 0.0
    %2242 = vmatpush1.msra.mxu0 0.0
    %2243 = vmatprep.subr.mxu0 0.0
    %2244 = vmatpush1.msra.mxu0 0.0
    %2245 = vmatprep.subr.mxu0 0.0
    %2246 = vmatpush1.msra.mxu0 0.0
    %2247 = vmatprep.mubr.f32.mxu0 0.0
    %2248 = vmatmul.mubr.f32.gmra.mrb[0].mxu0 %v2181
    %v2249 = vpop.f32.mrb[0].mxu0
    %v2250 = vadd.f32 0.0, %v2249
    %v2251 = vpop.f32.mrb[0].mxu0
    %2252 = vdwg.mxu0
    %v2254 = vrot.slane %v2175, 2
    %v2256 = vadd.f32 %v376, %v2254
    %v2257 = vxor.u32 %v2256, 2147483648
    %v2258 = vmul.f32 %v2257, 1.442695
    %v2259 = vpow.pop %v2258
    %v2260 = vadd.f32 %v2259, 1.0
    %v2261 = vrcp.pop %v2260
    %v2262 = vmul.f32 1.0, %v2261
    %v2263 = vadd.f32 %v2175, %v617
    %v2265 = vrot.slane %v2263, 2
    %2266 = vrot.lane.b32.xlu0 %v2265, 96
    %v2267 = vpop.permute.xlu0 %2266
    %v2269 = vmul.f32 %v2262, %v2267
    %2271 = vrot.lane.b32.xlu0 %v2269, 32
    %v2272 = vpop.permute.xlu0 %2271
    %v2274 = vadd.f32 %v376, %v2272
    %v2275 = vtanh.pop %v2274
    %v2277 = vrot.slane %v2275, 2
    %v2279 = vsub.f32 %v2054, %v2277
    %v2281 = vrot.slane %v2279, 6
    %2282 = vrot.lane.b32.xlu0 %v2281, 112
    %v2283 = vpop.permute.xlu0 %2282
    %v2285 = vmul.f32 %v2262, %v2283
    %2287 = vrot.lane.b32.xlu0 %v2285, 16
    %v2288 = vpop.permute.xlu0 %2287
    %v2290 = vadd.f32 %v2275, %v2288
    %v2291 = vadd.f32 %v452, %v2250
    %v2292 = vxor.u32 %v2291, 2147483648
    %v2293 = vmul.f32 %v2292, 1.442695
    %v2294 = vpow.pop %v2293
    %v2295 = vadd.f32 %v2294, 1.0
    %v2296 = vrcp.pop %v2295
    %v2297 = vmul.f32 1.0, %v2296
    %v2298 = vadd.f32 %v2250, %v658
    %2300 = vrot.lane.b32.xlu0 %v2298, 96
    %v2301 = vpop.permute.xlu0 %2300
    %v2303 = vmul.f32 %v2297, %v2301
    %2305 = vrot.lane.b32.xlu0 %v2303, 32
    %v2306 = vpop.permute.xlu0 %2305
    %v2308 = vadd.f32 %v452, %v2306
    %v2309 = vtanh.pop %v2308
    %v2311 = vrot.slane %v2309, 6
    %v2313 = vsub.f32 %v2092, %v2311
    %v2315 = vrot.slane %v2313, 2
    %2316 = vrot.lane.b32.xlu0 %v2315, 112
    %v2317 = vpop.permute.xlu0 %2316
    %v2319 = vmul.f32 %v2297, %v2317
    %2321 = vrot.lane.b32.xlu0 %v2319, 16
    %v2322 = vpop.permute.xlu0 %2321
    %v2324 = vadd.f32 %v2309, %v2322
    %2326 = vrot.lane.b32.xlu0 %v2290, 96
    %v2327 = vpop.permute.xlu0 %2326
    %2329 = vst.msk [vmem:[#allocation2 + $0x8] sm:$0xc0] %vm1395, %v2327
    %2331 = vrot.lane.b32.xlu0 %v2324, 112
    %v2332 = vpop.permute.xlu0 %2331
    %2334 = vst.msk [vmem:[#allocation2] sm:$0x3] %vm1401, %v2332
    %2335 = vrot.lane.b32.xlu0 %v2324, 96
    %v2336 = vpop.permute.xlu0 %2335
    %v2337 = vsel %vm460, %v2336, 0
    %2339 = vmatprep.subr.mxu0 0.0
    %2340 = vmatpush1.msra.mxu0 %v270
    %2341 = vmatprep.subr.mxu0 0.0
    %2342 = vmatpush1.msra.mxu0 %v271
    %2343 = vmatprep.subr.mxu0 0.0
    %2344 = vmatpush1.msra.mxu0 0.0
    %2345 = vmatprep.subr.mxu0 0.0
    %2346 = vmatpush1.msra.mxu0 0.0
    %2347 = vmatprep.subr.mxu0 0.0
    %2348 = vmatpush1.msra.mxu0 0.0
    %2349 = vmatprep.subr.mxu0 0.0
    %2350 = vmatpush1.msra.mxu0 0.0
    %2351 = vmatprep.subr.mxu0 0.0
    %2352 = vmatpush1.msra.mxu0 0.0
    %2353 = vmatprep.subr.mxu0 0.0
    %2354 = vmatpush1.msra.mxu0 0.0
    %2355 = vmatprep.subr.mxu0 0.0
    %2356 = vmatpush1.msra.mxu0 0.0
    %2357 = vmatprep.subr.mxu0 0.0
    %2358 = vmatpush1.msra.mxu0 0.0
    %2359 = vmatprep.subr.mxu0 0.0
    %2360 = vmatpush1.msra.mxu0 0.0
    %2361 = vmatprep.subr.mxu0 0.0
    %2362 = vmatpush1.msra.mxu0 0.0
    %2363 = vmatprep.subr.mxu0 0.0
    %2364 = vmatpush1.msra.mxu0 0.0
    %2365 = vmatprep.subr.mxu0 0.0
    %2366 = vmatpush1.msra.mxu0 0.0
    %2367 = vmatprep.subr.mxu0 0.0
    %2368 = vmatpush1.msra.mxu0 0.0
    %2369 = vmatprep.subr.mxu0 0.0
    %2370 = vmatpush1.msra.mxu0 0.0
    %2371 = vmatprep.subr.mxu0 0.0
    %2372 = vmatpush1.msra.mxu0 0.0
    %2373 = vmatprep.subr.mxu0 0.0
    %2374 = vmatpush1.msra.mxu0 0.0
    %2375 = vmatprep.subr.mxu0 0.0
    %2376 = vmatpush1.msra.mxu0 0.0
    %2377 = vmatprep.subr.mxu0 0.0
    %2378 = vmatpush1.msra.mxu0 0.0
    %2379 = vmatprep.subr.mxu0 0.0
    %2380 = vmatpush1.msra.mxu0 0.0
    %2381 = vmatprep.subr.mxu0 0.0
    %2382 = vmatpush1.msra.mxu0 0.0
    %2383 = vmatprep.subr.mxu0 0.0
    %2384 = vmatpush1.msra.mxu0 0.0
    %2385 = vmatprep.subr.mxu0 0.0
    %2386 = vmatpush1.msra.mxu0 0.0
    %2387 = vmatprep.subr.mxu0 0.0
    %2388 = vmatpush1.msra.mxu0 0.0
    %2389 = vmatprep.subr.mxu0 0.0
    %2390 = vmatpush1.msra.mxu0 0.0
    %2391 = vmatprep.subr.mxu0 0.0
    %2392 = vmatpush1.msra.mxu0 0.0
    %2393 = vmatprep.subr.mxu0 0.0
    %2394 = vmatpush1.msra.mxu0 0.0
    %2395 = vmatprep.subr.mxu0 0.0
    %2396 = vmatpush1.msra.mxu0 0.0
    %2397 = vmatprep.subr.mxu0 0.0
    %2398 = vmatpush1.msra.mxu0 0.0
    %2399 = vmatprep.subr.mxu0 0.0
    %2400 = vmatpush1.msra.mxu0 0.0
    %2401 = vmatprep.subr.mxu0 0.0
    %2402 = vmatpush1.msra.mxu0 0.0
    %2403 = vmatprep.mubr.f32.mxu0 0.0
    %2404 = vmatmul.mubr.f32.gmra.mrb[0].mxu0 %v2337
    %v2405 = vpop.f32.mrb[0].mxu0
    %v2406 = vadd.f32 0.0, %v2405
    %v2407 = vpop.f32.mrb[0].mxu0
    %2408 = vdwg.mxu0
    %v2409 = vrot.slane %v2290, 6
    %2410 = vrot.lane.b32.xlu0 %v2409, 96
    %v2411 = vpop.permute.xlu0 %2410
    %v2412 = vsel %vm460, %v2411, 0
    %2414 = vmatprep.subr.mxu0 0.0
    %2415 = vmatpush1.msra.mxu0 %v267
    %2416 = vmatprep.subr.mxu0 0.0
    %2417 = vmatpush1.msra.mxu0 %v268
    %2418 = vmatprep.subr.mxu0 0.0
    %2419 = vmatpush1.msra.mxu0 0.0
    %2420 = vmatprep.subr.mxu0 0.0
    %2421 = vmatpush1.msra.mxu0 0.0
    %2422 = vmatprep.subr.mxu0 0.0
    %2423 = vmatpush1.msra.mxu0 0.0
    %2424 = vmatprep.subr.mxu0 0.0
    %2425 = vmatpush1.msra.mxu0 0.0
    %2426 = vmatprep.subr.mxu0 0.0
    %2427 = vmatpush1.msra.mxu0 0.0
    %2428 = vmatprep.subr.mxu0 0.0
    %2429 = vmatpush1.msra.mxu0 0.0
    %2430 = vmatprep.subr.mxu0 0.0
    %2431 = vmatpush1.msra.mxu0 0.0
    %2432 = vmatprep.subr.mxu0 0.0
    %2433 = vmatpush1.msra.mxu0 0.0
    %2434 = vmatprep.subr.mxu0 0.0
    %2435 = vmatpush1.msra.mxu0 0.0
    %2436 = vmatprep.subr.mxu0 0.0
    %2437 = vmatpush1.msra.mxu0 0.0
    %2438 = vmatprep.subr.mxu0 0.0
    %2439 = vmatpush1.msra.mxu0 0.0
    %2440 = vmatprep.subr.mxu0 0.0
    %2441 = vmatpush1.msra.mxu0 0.0
    %2442 = vmatprep.subr.mxu0 0.0
    %2443 = vmatpush1.msra.mxu0 0.0
    %2444 = vmatprep.subr.mxu0 0.0
    %2445 = vmatpush1.msra.mxu0 0.0
    %2446 = vmatprep.subr.mxu0 0.0
    %2447 = vmatpush1.msra.mxu0 0.0
    %2448 = vmatprep.subr.mxu0 0.0
    %2449 = vmatpush1.msra.mxu0 0.0
    %2450 = vmatprep.subr.mxu0 0.0
    %2451 = vmatpush1.msra.mxu0 0.0
    %2452 = vmatprep.subr.mxu0 0.0
    %2453 = vmatpush1.msra.mxu0 0.0
    %2454 = vmatprep.subr.mxu0 0.0
    %2455 = vmatpush1.msra.mxu0 0.0
    %2456 = vmatprep.subr.mxu0 0.0
    %2457 = vmatpush1.msra.mxu0 0.0
    %2458 = vmatprep.subr.mxu0 0.0
    %2459 = vmatpush1.msra.mxu0 0.0
    %2460 = vmatprep.subr.mxu0 0.0
    %2461 = vmatpush1.msra.mxu0 0.0
    %2462 = vmatprep.subr.mxu0 0.0
    %2463 = vmatpush1.msra.mxu0 0.0
    %2464 = vmatprep.subr.mxu0 0.0
    %2465 = vmatpush1.msra.mxu0 0.0
    %2466 = vmatprep.subr.mxu0 0.0
    %2467 = vmatpush1.msra.mxu0 0.0
    %2468 = vmatprep.subr.mxu0 0.0
    %2469 = vmatpush1.msra.mxu0 0.0
    %2470 = vmatprep.subr.mxu0 0.0
    %2471 = vmatpush1.msra.mxu0 0.0
    %2472 = vmatprep.subr.mxu0 0.0
    %2473 = vmatpush1.msra.mxu0 0.0
    %2474 = vmatprep.subr.mxu0 0.0
    %2475 = vmatpush1.msra.mxu0 0.0
    %2476 = vmatprep.subr.mxu0 0.0
    %2477 = vmatpush1.msra.mxu0 0.0
    %2478 = vmatprep.mubr.f32.mxu0 0.0
    %2479 = vmatmul.mubr.f32.gmra.mrb[0].mxu0 %v2412
    %v2480 = vpop.f32.mrb[0].mxu0
    %v2481 = vadd.f32 %v2406, %v2480
    %v2482 = vpop.f32.mrb[0].mxu0
    %2483 = vdwg.mxu0
    %v2485 = vlaneseq
    %v2486 = vshrl.u32 %v2485, 7
    %v2487 = vsub.s32 0, %v2486
    %v2488 = vrot.slane %v272, %v2487
    %v2490 = vadd.f32 %v2481, %v2488
    %v2491 = vtanh.pop %v2490
    %vm2492 = vcmask 254976
    %2493 = vst.msk [vmem:[#allocation30] sm:$0x3] %vm2492, %v2491
    %v2494 = vld [vmem:[%s9] sm:$0xff]
    %v2495 = vld [vmem:[%s9 + $0x8] sm:$0xff]
    %v2496 = vld [vmem:[%s9 + $0x10] sm:$0xff]
    %v2497 = vld [vmem:[%s9 + $0x18] sm:$0xff]
    %v2498 = vld [vmem:[#allocation18] sm:$0xff]
    %v2499 = vld [vmem:[#allocation18 + $0x8] sm:$0xff]
    %v2500 = vld [vmem:[#allocation20] sm:$0x1]
    %v2501 = vld [vmem:[#allocation21] sm:$0x1]
    %v2502 = vld [vmem:[#allocation23] sm:$0xff]
    %v2503 = vld [vmem:[#allocation23 + $0x8] sm:$0xff]
    %v2504 = vld [vmem:[#allocation23 + $0x10] sm:$0xff]
    %v2505 = vld [vmem:[#allocation23 + $0x18] sm:$0xff]
    %v2506 = vld [vmem:[#allocation24] sm:$0xff]
    %v2507 = vld [vmem:[#allocation24 + $0x8] sm:$0xff]
    %v2508 = vld [vmem:[#allocation26] sm:$0x1]
    %v2509 = vld [vmem:[#allocation27] sm:$0x1]
    %v2510 = vld [vmem:[#allocation2] sm:$0xff]
    %v2511 = vld [vmem:[#allocation2 + $0x8] sm:$0xff]
    %v2513 = vlaneseq
    %v2514 = vshrl.u32 %v2513, 7
    %v2515 = vsub.s32 0, %v2514
    %v2516 = vrot.slane %v2500, %v2515
    %v2519 = vsel %vm297, %v2510, 0
    %v2522 = vsel %vm297, %v2511, 0
    %2524 = vmatprep.subr.mxu0 0.0
    %2525 = vmatpush1.msra.mxu0 %v2494
    %2526 = vmatprep.subr.mxu0 0.0
    %2527 = vmatpush1.msra.mxu0 %v2495
    %2528 = vmatprep.subr.mxu0 0.0
    %2529 = vmatpush1.msra.mxu0 %v2496
    %2530 = vmatprep.subr.mxu0 0.0
    %2531 = vmatpush1.msra.mxu0 %v2497
    %2532 = vmatprep.subr.mxu0 0.0
    %2533 = vmatpush1.msra.mxu0 0.0
    %2534 = vmatprep.subr.mxu0 0.0
    %2535 = vmatpush1.msra.mxu0 0.0
    %2536 = vmatprep.subr.mxu0 0.0
    %2537 = vmatpush1.msra.mxu0 0.0
    %2538 = vmatprep.subr.mxu0 0.0
    %2539 = vmatpush1.msra.mxu0 0.0
    %2540 = vmatprep.subr.mxu0 0.0
    %2541 = vmatpush1.msra.mxu0 0.0
    %2542 = vmatprep.subr.mxu0 0.0
    %2543 = vmatpush1.msra.mxu0 0.0
    %2544 = vmatprep.subr.mxu0 0.0
    %2545 = vmatpush1.msra.mxu0 0.0
    %2546 = vmatprep.subr.mxu0 0.0
    %2547 = vmatpush1.msra.mxu0 0.0
    %2548 = vmatprep.subr.mxu0 0.0
    %2549 = vmatpush1.msra.mxu0 0.0
    %2550 = vmatprep.subr.mxu0 0.0
    %2551 = vmatpush1.msra.mxu0 0.0
    %2552 = vmatprep.subr.mxu0 0.0
    %2553 = vmatpush1.msra.mxu0 0.0
    %2554 = vmatprep.subr.mxu0 0.0
    %2555 = vmatpush1.msra.mxu0 0.0
    %2556 = vmatprep.subr.mxu0 0.0
    %2557 = vmatpush1.msra.mxu0 0.0
    %2558 = vmatprep.subr.mxu0 0.0
    %2559 = vmatpush1.msra.mxu0 0.0
    %2560 = vmatprep.subr.mxu0 0.0
    %2561 = vmatpush1.msra.mxu0 0.0
    %2562 = vmatprep.subr.mxu0 0.0
    %2563 = vmatpush1.msra.mxu0 0.0
    %2564 = vmatprep.subr.mxu0 0.0
    %2565 = vmatpush1.msra.mxu0 0.0
    %2566 = vmatprep.subr.mxu0 0.0
    %2567 = vmatpush1.msra.mxu0 0.0
    %2568 = vmatprep.subr.mxu0 0.0
    %2569 = vmatpush1.msra.mxu0 0.0
    %2570 = vmatprep.subr.mxu0 0.0
    %2571 = vmatpush1.msra.mxu0 0.0
    %2572 = vmatprep.subr.mxu0 0.0
    %2573 = vmatpush1.msra.mxu0 0.0
    %2574 = vmatprep.subr.mxu0 0.0
    %2575 = vmatpush1.msra.mxu0 0.0
    %2576 = vmatprep.subr.mxu0 0.0
    %2577 = vmatpush1.msra.mxu0 0.0
    %2578 = vmatprep.subr.mxu0 0.0
    %2579 = vmatpush1.msra.mxu0 0.0
    %2580 = vmatprep.subr.mxu0 0.0
    %2581 = vmatpush1.msra.mxu0 0.0
    %2582 = vmatprep.subr.mxu0 0.0
    %2583 = vmatpush1.msra.mxu0 0.0
    %2584 = vmatprep.subr.mxu0 0.0
    %2585 = vmatpush1.msra.mxu0 0.0
    %2586 = vmatprep.subr.mxu0 0.0
    %2587 = vmatpush1.msra.mxu0 0.0
    %2588 = vmatprep.mubr.f32.mxu0 0.0
    %2589 = vmatmul.mubr.f32.gmra.mrb[0].mxu0 %v2519
    %v2590 = vpop.f32.mrb[0].mxu0
    %v2591 = vadd.f32 %v2516, %v2590
    %v2592 = vpop.f32.mrb[0].mxu0
    %2593 = vmatprep.mubr.f32.mxu0 0.0
    %2594 = vmatmul.mubr.f32.gmra.mrb[0].mxu0 %v2522
    %v2595 = vpop.f32.mrb[0].mxu0
    %v2596 = vadd.f32 %v2516, %v2595
    %v2597 = vpop.f32.mrb[0].mxu0
    %2598 = vdwg.mxu0
    %v2600 = vlaneseq
    %v2601 = vshrl.u32 %v2600, 7
    %v2602 = vsub.s32 0, %v2601
    %v2603 = vrot.slane %v2508, %v2602
    %2605 = vmatprep.subr.mxu0 0.0
    %2606 = vmatpush1.msra.mxu0 %v2502
    %2607 = vmatprep.subr.mxu0 0.0
    %2608 = vmatpush1.msra.mxu0 %v2503
    %2609 = vmatprep.subr.mxu0 0.0
    %2610 = vmatpush1.msra.mxu0 %v2504
    %2611 = vmatprep.subr.mxu0 0.0
    %2612 = vmatpush1.msra.mxu0 %v2505
    %2613 = vmatprep.subr.mxu0 0.0
    %2614 = vmatpush1.msra.mxu0 0.0
    %2615 = vmatprep.subr.mxu0 0.0
    %2616 = vmatpush1.msra.mxu0 0.0
    %2617 = vmatprep.subr.mxu0 0.0
    %2618 = vmatpush1.msra.mxu0 0.0
    %2619 = vmatprep.subr.mxu0 0.0
    %2620 = vmatpush1.msra.mxu0 0.0
    %2621 = vmatprep.subr.mxu0 0.0
    %2622 = vmatpush1.msra.mxu0 0.0
    %2623 = vmatprep.subr.mxu0 0.0
    %2624 = vmatpush1.msra.mxu0 0.0
    %2625 = vmatprep.subr.mxu0 0.0
    %2626 = vmatpush1.msra.mxu0 0.0
    %2627 = vmatprep.subr.mxu0 0.0
    %2628 = vmatpush1.msra.mxu0 0.0
    %2629 = vmatprep.subr.mxu0 0.0
    %2630 = vmatpush1.msra.mxu0 0.0
    %2631 = vmatprep.subr.mxu0 0.0
    %2632 = vmatpush1.msra.mxu0 0.0
    %2633 = vmatprep.subr.mxu0 0.0
    %2634 = vmatpush1.msra.mxu0 0.0
    %2635 = vmatprep.subr.mxu0 0.0
    %2636 = vmatpush1.msra.mxu0 0.0
    %2637 = vmatprep.subr.mxu0 0.0
    %2638 = vmatpush1.msra.mxu0 0.0
    %2639 = vmatprep.subr.mxu0 0.0
    %2640 = vmatpush1.msra.mxu0 0.0
    %2641 = vmatprep.subr.mxu0 0.0
    %2642 = vmatpush1.msra.mxu0 0.0
    %2643 = vmatprep.subr.mxu0 0.0
    %2644 = vmatpush1.msra.mxu0 0.0
    %2645 = vmatprep.subr.mxu0 0.0
    %2646 = vmatpush1.msra.mxu0 0.0
    %2647 = vmatprep.subr.mxu0 0.0
    %2648 = vmatpush1.msra.mxu0 0.0
    %2649 = vmatprep.subr.mxu0 0.0
    %2650 = vmatpush1.msra.mxu0 0.0
    %2651 = vmatprep.subr.mxu0 0.0
    %2652 = vmatpush1.msra.mxu0 0.0
    %2653 = vmatprep.subr.mxu0 0.0
    %2654 = vmatpush1.msra.mxu0 0.0
    %2655 = vmatprep.subr.mxu0 0.0
    %2656 = vmatpush1.msra.mxu0 0.0
    %2657 = vmatprep.subr.mxu0 0.0
    %2658 = vmatpush1.msra.mxu0 0.0
    %2659 = vmatprep.subr.mxu0 0.0
    %2660 = vmatpush1.msra.mxu0 0.0
    %2661 = vmatprep.subr.mxu0 0.0
    %2662 = vmatpush1.msra.mxu0 0.0
    %2663 = vmatprep.subr.mxu0 0.0
    %2664 = vmatpush1.msra.mxu0 0.0
    %2665 = vmatprep.subr.mxu0 0.0
    %2666 = vmatpush1.msra.mxu0 0.0
    %2667 = vmatprep.subr.mxu0 0.0
    %2668 = vmatpush1.msra.mxu0 0.0
    %2669 = vmatprep.mubr.f32.mxu0 0.0
    %2670 = vmatmul.mubr.f32.gmra.mrb[0].mxu0 %v2519
    %v2671 = vpop.f32.mrb[0].mxu0
    %v2672 = vadd.f32 %v2603, %v2671
    %v2673 = vpop.f32.mrb[0].mxu0
    %2674 = vmatprep.mubr.f32.mxu0 0.0
    %2675 = vmatmul.mubr.f32.gmra.mrb[0].mxu0 %v2522
    %v2676 = vpop.f32.mrb[0].mxu0
    %v2677 = vadd.f32 %v2603, %v2676
    %v2678 = vpop.f32.mrb[0].mxu0
    %2679 = vdwg.mxu0
    %2680 = vmatprep.subr.mxu0 0.0
    %2681 = vmatpush1.msra.mxu0 %v2498
    %2682 = vmatprep.subr.mxu0 0.0
    %2683 = vmatpush1.msra.mxu0 %v2499
    %2684 = vmatprep.subr.mxu0 0.0
    %2685 = vmatpush1.msra.mxu0 0.0
    %2686 = vmatprep.subr.mxu0 0.0
    %2687 = vmatpush1.msra.mxu0 0.0
    %2688 = vmatprep.subr.mxu0 0.0
    %2689 = vmatpush1.msra.mxu0 0.0
    %2690 = vmatprep.subr.mxu0 0.0
    %2691 = vmatpush1.msra.mxu0 0.0
    %2692 = vmatprep.subr.mxu0 0.0
    %2693 = vmatpush1.msra.mxu0 0.0
    %2694 = vmatprep.subr.mxu0 0.0
    %2695 = vmatpush1.msra.mxu0 0.0
    %2696 = vmatprep.subr.mxu0 0.0
    %2697 = vmatpush1.msra.mxu0 0.0
    %2698 = vmatprep.subr.mxu0 0.0
    %2699 = vmatpush1.msra.mxu0 0.0
    %2700 = vmatprep.subr.mxu0 0.0
    %2701 = vmatpush1.msra.mxu0 0.0
    %2702 = vmatprep.subr.mxu0 0.0
    %2703 = vmatpush1.msra.mxu0 0.0
    %2704 = vmatprep.subr.mxu0 0.0
    %2705 = vmatpush1.msra.mxu0 0.0
    %2706 = vmatprep.subr.mxu0 0.0
    %2707 = vmatpush1.msra.mxu0 0.0
    %2708 = vmatprep.subr.mxu0 0.0
    %2709 = vmatpush1.msra.mxu0 0.0
    %2710 = vmatprep.subr.mxu0 0.0
    %2711 = vmatpush1.msra.mxu0 0.0
    %2712 = vmatprep.subr.mxu0 0.0
    %2713 = vmatpush1.msra.mxu0 0.0
    %2714 = vmatprep.subr.mxu0 0.0
    %2715 = vmatpush1.msra.mxu0 0.0
    %2716 = vmatprep.subr.mxu0 0.0
    %2717 = vmatpush1.msra.mxu0 0.0
    %2718 = vmatprep.subr.mxu0 0.0
    %2719 = vmatpush1.msra.mxu0 0.0
    %2720 = vmatprep.subr.mxu0 0.0
    %2721 = vmatpush1.msra.mxu0 0.0
    %2722 = vmatprep.subr.mxu0 0.0
    %2723 = vmatpush1.msra.mxu0 0.0
    %2724 = vmatprep.subr.mxu0 0.0
    %2725 = vmatpush1.msra.mxu0 0.0
    %2726 = vmatprep.subr.mxu0 0.0
    %2727 = vmatpush1.msra.mxu0 0.0
    %2728 = vmatprep.subr.mxu0 0.0
    %2729 = vmatpush1.msra.mxu0 0.0
    %2730 = vmatprep.subr.mxu0 0.0
    %2731 = vmatpush1.msra.mxu0 0.0
    %2732 = vmatprep.subr.mxu0 0.0
    %2733 = vmatpush1.msra.mxu0 0.0
    %2734 = vmatprep.subr.mxu0 0.0
    %2735 = vmatpush1.msra.mxu0 0.0
    %2736 = vmatprep.subr.mxu0 0.0
    %2737 = vmatpush1.msra.mxu0 0.0
    %2738 = vmatprep.subr.mxu0 0.0
    %2739 = vmatpush1.msra.mxu0 0.0
    %2740 = vmatprep.subr.mxu0 0.0
    %2741 = vmatpush1.msra.mxu0 0.0
    %2742 = vmatprep.subr.mxu0 0.0
    %2743 = vmatpush1.msra.mxu0 0.0
    %2744 = vmatprep.mubr.f32.mxu0 0.0
    %2745 = vmatmul.mubr.f32.gmra.mrb[0].mxu0 %v462
    %v2746 = vpop.f32.mrb[0].mxu0
    %v2747 = vadd.f32 0.0, %v2746
    %v2748 = vpop.f32.mrb[0].mxu0
    %2749 = vdwg.mxu0
    %2750 = vmatprep.subr.mxu0 0.0
    %2751 = vmatpush1.msra.mxu0 %v2506
    %2752 = vmatprep.subr.mxu0 0.0
    %2753 = vmatpush1.msra.mxu0 %v2507
    %2754 = vmatprep.subr.mxu0 0.0
    %2755 = vmatpush1.msra.mxu0 0.0
    %2756 = vmatprep.subr.mxu0 0.0
    %2757 = vmatpush1.msra.mxu0 0.0
    %2758 = vmatprep.subr.mxu0 0.0
    %2759 = vmatpush1.msra.mxu0 0.0
    %2760 = vmatprep.subr.mxu0 0.0
    %2761 = vmatpush1.msra.mxu0 0.0
    %2762 = vmatprep.subr.mxu0 0.0
    %2763 = vmatpush1.msra.mxu0 0.0
    %2764 = vmatprep.subr.mxu0 0.0
    %2765 = vmatpush1.msra.mxu0 0.0
    %2766 = vmatprep.subr.mxu0 0.0
    %2767 = vmatpush1.msra.mxu0 0.0
    %2768 = vmatprep.subr.mxu0 0.0
    %2769 = vmatpush1.msra.mxu0 0.0
    %2770 = vmatprep.subr.mxu0 0.0
    %2771 = vmatpush1.msra.mxu0 0.0
    %2772 = vmatprep.subr.mxu0 0.0
    %2773 = vmatpush1.msra.mxu0 0.0
    %2774 = vmatprep.subr.mxu0 0.0
    %2775 = vmatpush1.msra.mxu0 0.0
    %2776 = vmatprep.subr.mxu0 0.0
    %2777 = vmatpush1.msra.mxu0 0.0
    %2778 = vmatprep.subr.mxu0 0.0
    %2779 = vmatpush1.msra.mxu0 0.0
    %2780 = vmatprep.subr.mxu0 0.0
    %2781 = vmatpush1.msra.mxu0 0.0
    %2782 = vmatprep.subr.mxu0 0.0
    %2783 = vmatpush1.msra.mxu0 0.0
    %2784 = vmatprep.subr.mxu0 0.0
    %2785 = vmatpush1.msra.mxu0 0.0
    %2786 = vmatprep.subr.mxu0 0.0
    %2787 = vmatpush1.msra.mxu0 0.0
    %2788 = vmatprep.subr.mxu0 0.0
    %2789 = vmatpush1.msra.mxu0 0.0
    %2790 = vmatprep.subr.mxu0 0.0
    %2791 = vmatpush1.msra.mxu0 0.0
    %2792 = vmatprep.subr.mxu0 0.0
    %2793 = vmatpush1.msra.mxu0 0.0
    %2794 = vmatprep.subr.mxu0 0.0
    %2795 = vmatpush1.msra.mxu0 0.0
    %2796 = vmatprep.subr.mxu0 0.0
    %2797 = vmatpush1.msra.mxu0 0.0
    %2798 = vmatprep.subr.mxu0 0.0
    %2799 = vmatpush1.msra.mxu0 0.0
    %2800 = vmatprep.subr.mxu0 0.0
    %2801 = vmatpush1.msra.mxu0 0.0
    %2802 = vmatprep.subr.mxu0 0.0
    %2803 = vmatpush1.msra.mxu0 0.0
    %2804 = vmatprep.subr.mxu0 0.0
    %2805 = vmatpush1.msra.mxu0 0.0
    %2806 = vmatprep.subr.mxu0 0.0
    %2807 = vmatpush1.msra.mxu0 0.0
    %2808 = vmatprep.subr.mxu0 0.0
    %2809 = vmatpush1.msra.mxu0 0.0
    %2810 = vmatprep.subr.mxu0 0.0
    %2811 = vmatpush1.msra.mxu0 0.0
    %2812 = vmatprep.subr.mxu0 0.0
    %2813 = vmatpush1.msra.mxu0 0.0
    %2814 = vmatprep.mubr.f32.mxu0 0.0
    %2815 = vmatmul.mubr.f32.gmra.mrb[0].mxu0 %v462
    %v2816 = vpop.f32.mrb[0].mxu0
    %v2817 = vadd.f32 0.0, %v2816
    %v2818 = vpop.f32.mrb[0].mxu0
    %2819 = vdwg.mxu0
    %v2820 = vadd.f32 %v2591, %v2747
    %v2821 = vxor.u32 %v2820, 2147483648
    %v2822 = vmul.f32 %v2821, 1.442695
    %v2823 = vpow.pop %v2822
    %v2824 = vadd.f32 %v2823, 1.0
    %v2825 = vrcp.pop %v2824
    %v2826 = vmul.f32 1.0, %v2825
    %v2828 = vlaneseq
    %v2829 = vshrl.u32 %v2828, 7
    %v2830 = vsub.s32 0, %v2829
    %v2831 = vrot.slane %v2501, %v2830
    %2832 = vrot.lane.b32.xlu0 %v2831, 32
    %v2833 = vpop.permute.xlu0 %2832
    %v2835 = vadd.f32 %v2747, %v2833
    %2837 = vrot.lane.b32.xlu0 %v2835, 96
    %v2838 = vpop.permute.xlu0 %2837
    %v2840 = vmul.f32 %v2826, %v2838
    %2842 = vrot.lane.b32.xlu0 %v2840, 32
    %v2843 = vpop.permute.xlu0 %2842
    %v2845 = vadd.f32 %v2591, %v2843
    %v2846 = vtanh.pop %v2845
    %v2847 = vsub.f32 0.0, %v2846
    %2849 = vrot.lane.b32.xlu0 %v2847, 112
    %v2850 = vpop.permute.xlu0 %2849
    %v2852 = vmul.f32 %v2826, %v2850
    %2854 = vrot.lane.b32.xlu0 %v2852, 16
    %v2855 = vpop.permute.xlu0 %2854
    %v2857 = vadd.f32 %v2846, %v2855
    %v2859 = vrot.slane %v2817, 2
    %v2861 = vadd.f32 %v2677, %v2859
    %v2862 = vxor.u32 %v2861, 2147483648
    %v2863 = vmul.f32 %v2862, 1.442695
    %v2864 = vpow.pop %v2863
    %v2865 = vadd.f32 %v2864, 1.0
    %v2866 = vrcp.pop %v2865
    %v2867 = vmul.f32 1.0, %v2866
    %v2869 = vlaneseq
    %v2870 = vshrl.u32 %v2869, 7
    %v2871 = vsub.s32 0, %v2870
    %v2872 = vrot.slane %v2509, %v2871
    %2873 = vrot.lane.b32.xlu0 %v2872, 32
    %v2874 = vpop.permute.xlu0 %2873
    %v2876 = vadd.f32 %v2817, %v2874
    %v2878 = vrot.slane %v2876, 2
    %2879 = vrot.lane.b32.xlu0 %v2878, 96
    %v2880 = vpop.permute.xlu0 %2879
    %v2882 = vmul.f32 %v2867, %v2880
    %2884 = vrot.lane.b32.xlu0 %v2882, 32
    %v2885 = vpop.permute.xlu0 %2884
    %v2887 = vadd.f32 %v2677, %v2885
    %v2888 = vtanh.pop %v2887
    %v2889 = vsub.f32 0.0, %v2888
    %2891 = vrot.lane.b32.xlu0 %v2889, 112
    %v2892 = vpop.permute.xlu0 %2891
    %v2894 = vmul.f32 %v2867, %v2892
    %2896 = vrot.lane.b32.xlu0 %v2894, 16
    %v2897 = vpop.permute.xlu0 %2896
    %v2899 = vadd.f32 %v2888, %v2897
    %2901 = vrot.lane.b32.xlu0 %v2857, 96
    %v2902 = vpop.permute.xlu0 %2901
    %2904 = vst.msk [vmem:[#allocation29] sm:$0x3] %vm688, %v2902
    %2906 = vrot.lane.b32.xlu0 %v2899, 112
    %v2907 = vpop.permute.xlu0 %2906
    %2909 = vst.msk [vmem:[#allocation29 + $0x8] sm:$0xc0] %vm694, %v2907
    %v2910 = vsel %vm460, %v2902, 0
    %2912 = vmatprep.subr.mxu0 0.0
    %2913 = vmatpush1.msra.mxu0 %v2498
    %2914 = vmatprep.subr.mxu0 0.0
    %2915 = vmatpush1.msra.mxu0 %v2499
    %2916 = vmatprep.subr.mxu0 0.0
    %2917 = vmatpush1.msra.mxu0 0.0
    %2918 = vmatprep.subr.mxu0 0.0
    %2919 = vmatpush1.msra.mxu0 0.0
    %2920 = vmatprep.subr.mxu0 0.0
    %2921 = vmatpush1.msra.mxu0 0.0
    %2922 = vmatprep.subr.mxu0 0.0
    %2923 = vmatpush1.msra.mxu0 0.0
    %2924 = vmatprep.subr.mxu0 0.0
    %2925 = vmatpush1.msra.mxu0 0.0
    %2926 = vmatprep.subr.mxu0 0.0
    %2927 = vmatpush1.msra.mxu0 0.0
    %2928 = vmatprep.subr.mxu0 0.0
    %2929 = vmatpush1.msra.mxu0 0.0
    %2930 = vmatprep.subr.mxu0 0.0
    %2931 = vmatpush1.msra.mxu0 0.0
    %2932 = vmatprep.subr.mxu0 0.0
    %2933 = vmatpush1.msra.mxu0 0.0
    %2934 = vmatprep.subr.mxu0 0.0
    %2935 = vmatpush1.msra.mxu0 0.0
    %2936 = vmatprep.subr.mxu0 0.0
    %2937 = vmatpush1.msra.mxu0 0.0
    %2938 = vmatprep.subr.mxu0 0.0
    %2939 = vmatpush1.msra.mxu0 0.0
    %2940 = vmatprep.subr.mxu0 0.0
    %2941 = vmatpush1.msra.mxu0 0.0
    %2942 = vmatprep.subr.mxu0 0.0
    %2943 = vmatpush1.msra.mxu0 0.0
    %2944 = vmatprep.subr.mxu0 0.0
    %2945 = vmatpush1.msra.mxu0 0.0
    %2946 = vmatprep.subr.mxu0 0.0
    %2947 = vmatpush1.msra.mxu0 0.0
    %2948 = vmatprep.subr.mxu0 0.0
    %2949 = vmatpush1.msra.mxu0 0.0
    %2950 = vmatprep.subr.mxu0 0.0
    %2951 = vmatpush1.msra.mxu0 0.0
    %2952 = vmatprep.subr.mxu0 0.0
    %2953 = vmatpush1.msra.mxu0 0.0
    %2954 = vmatprep.subr.mxu0 0.0
    %2955 = vmatpush1.msra.mxu0 0.0
    %2956 = vmatprep.subr.mxu0 0.0
    %2957 = vmatpush1.msra.mxu0 0.0
    %2958 = vmatprep.subr.mxu0 0.0
    %2959 = vmatpush1.msra.mxu0 0.0
    %2960 = vmatprep.subr.mxu0 0.0
    %2961 = vmatpush1.msra.mxu0 0.0
    %2962 = vmatprep.subr.mxu0 0.0
    %2963 = vmatpush1.msra.mxu0 0.0
    %2964 = vmatprep.subr.mxu0 0.0
    %2965 = vmatpush1.msra.mxu0 0.0
    %2966 = vmatprep.subr.mxu0 0.0
    %2967 = vmatpush1.msra.mxu0 0.0
    %2968 = vmatprep.subr.mxu0 0.0
    %2969 = vmatpush1.msra.mxu0 0.0
    %2970 = vmatprep.subr.mxu0 0.0
    %2971 = vmatpush1.msra.mxu0 0.0
    %2972 = vmatprep.subr.mxu0 0.0
    %2973 = vmatpush1.msra.mxu0 0.0
    %2974 = vmatprep.subr.mxu0 0.0
    %2975 = vmatpush1.msra.mxu0 0.0
    %2976 = vmatprep.mubr.f32.mxu0 0.0
    %2977 = vmatmul.mubr.f32.gmra.mrb[0].mxu0 %v2910
    %v2978 = vpop.f32.mrb[0].mxu0
    %v2979 = vadd.f32 0.0, %v2978
    %v2980 = vpop.f32.mrb[0].mxu0
    %2981 = vdwg.mxu0
    %v2982 = vrot.slane %v2899, 6
    %2983 = vrot.lane.b32.xlu0 %v2982, 96
    %v2984 = vpop.permute.xlu0 %2983
    %v2985 = vsel %vm460, %v2984, 0
    %2987 = vmatprep.subr.mxu0 0.0
    %2988 = vmatpush1.msra.mxu0 %v2506
    %2989 = vmatprep.subr.mxu0 0.0
    %2990 = vmatpush1.msra.mxu0 %v2507
    %2991 = vmatprep.subr.mxu0 0.0
    %2992 = vmatpush1.msra.mxu0 0.0
    %2993 = vmatprep.subr.mxu0 0.0
    %2994 = vmatpush1.msra.mxu0 0.0
    %2995 = vmatprep.subr.mxu0 0.0
    %2996 = vmatpush1.msra.mxu0 0.0
    %2997 = vmatprep.subr.mxu0 0.0
    %2998 = vmatpush1.msra.mxu0 0.0
    %2999 = vmatprep.subr.mxu0 0.0
    %3000 = vmatpush1.msra.mxu0 0.0
    %3001 = vmatprep.subr.mxu0 0.0
    %3002 = vmatpush1.msra.mxu0 0.0
    %3003 = vmatprep.subr.mxu0 0.0
    %3004 = vmatpush1.msra.mxu0 0.0
    %3005 = vmatprep.subr.mxu0 0.0
    %3006 = vmatpush1.msra.mxu0 0.0
    %3007 = vmatprep.subr.mxu0 0.0
    %3008 = vmatpush1.msra.mxu0 0.0
    %3009 = vmatprep.subr.mxu0 0.0
    %3010 = vmatpush1.msra.mxu0 0.0
    %3011 = vmatprep.subr.mxu0 0.0
    %3012 = vmatpush1.msra.mxu0 0.0
    %3013 = vmatprep.subr.mxu0 0.0
    %3014 = vmatpush1.msra.mxu0 0.0
    %3015 = vmatprep.subr.mxu0 0.0
    %3016 = vmatpush1.msra.mxu0 0.0
    %3017 = vmatprep.subr.mxu0 0.0
    %3018 = vmatpush1.msra.mxu0 0.0
    %3019 = vmatprep.subr.mxu0 0.0
    %3020 = vmatpush1.msra.mxu0 0.0
    %3021 = vmatprep.subr.mxu0 0.0
    %3022 = vmatpush1.msra.mxu0 0.0
    %3023 = vmatprep.subr.mxu0 0.0
    %3024 = vmatpush1.msra.mxu0 0.0
    %3025 = vmatprep.subr.mxu0 0.0
    %3026 = vmatpush1.msra.mxu0 0.0
    %3027 = vmatprep.subr.mxu0 0.0
    %3028 = vmatpush1.msra.mxu0 0.0
    %3029 = vmatprep.subr.mxu0 0.0
    %3030 = vmatpush1.msra.mxu0 0.0
    %3031 = vmatprep.subr.mxu0 0.0
    %3032 = vmatpush1.msra.mxu0 0.0
    %3033 = vmatprep.subr.mxu0 0.0
    %3034 = vmatpush1.msra.mxu0 0.0
    %3035 = vmatprep.subr.mxu0 0.0
    %3036 = vmatpush1.msra.mxu0 0.0
    %3037 = vmatprep.subr.mxu0 0.0
    %3038 = vmatpush1.msra.mxu0 0.0
    %3039 = vmatprep.subr.mxu0 0.0
    %3040 = vmatpush1.msra.mxu0 0.0
    %3041 = vmatprep.subr.mxu0 0.0
    %3042 = vmatpush1.msra.mxu0 0.0
    %3043 = vmatprep.subr.mxu0 0.0
    %3044 = vmatpush1.msra.mxu0 0.0
    %3045 = vmatprep.subr.mxu0 0.0
    %3046 = vmatpush1.msra.mxu0 0.0
    %3047 = vmatprep.subr.mxu0 0.0
    %3048 = vmatpush1.msra.mxu0 0.0
    %3049 = vmatprep.subr.mxu0 0.0
    %3050 = vmatpush1.msra.mxu0 0.0
    %3051 = vmatprep.mubr.f32.mxu0 0.0
    %3052 = vmatmul.mubr.f32.gmra.mrb[0].mxu0 %v2985
    %v3053 = vpop.f32.mrb[0].mxu0
    %v3054 = vadd.f32 0.0, %v3053
    %v3055 = vpop.f32.mrb[0].mxu0
    %3056 = vdwg.mxu0
    %v3058 = vrot.slane %v2979, 6
    %v3060 = vadd.f32 %v2591, %v3058
    %v3061 = vxor.u32 %v3060, 2147483648
    %v3062 = vmul.f32 %v3061, 1.442695
    %v3063 = vpow.pop %v3062
    %v3064 = vadd.f32 %v3063, 1.0
    %v3065 = vrcp.pop %v3064
    %v3066 = vmul.f32 1.0, %v3065
    %v3067 = vadd.f32 %v2979, %v2833
    %v3069 = vrot.slane %v3067, 6
    %3070 = vrot.lane.b32.xlu0 %v3069, 96
    %v3071 = vpop.permute.xlu0 %3070
    %v3073 = vmul.f32 %v3066, %v3071
    %3075 = vrot.lane.b32.xlu0 %v3073, 32
    %v3076 = vpop.permute.xlu0 %3075
    %v3078 = vadd.f32 %v2591, %v3076
    %v3079 = vtanh.pop %v3078
    %v3081 = vrot.slane %v3079, 2
    %v3083 = vsub.f32 %v2857, %v3081
    %v3085 = vrot.slane %v3083, 6
    %3086 = vrot.lane.b32.xlu0 %v3085, 112
    %v3087 = vpop.permute.xlu0 %3086
    %v3089 = vmul.f32 %v3066, %v3087
    %3091 = vrot.lane.b32.xlu0 %v3089, 16
    %v3092 = vpop.permute.xlu0 %3091
    %v3094 = vadd.f32 %v3079, %v3092
    %v3096 = vrot.slane %v3054, 4
    %v3098 = vadd.f32 %v2677, %v3096
    %v3099 = vxor.u32 %v3098, 2147483648
    %v3100 = vmul.f32 %v3099, 1.442695
    %v3101 = vpow.pop %v3100
    %v3102 = vadd.f32 %v3101, 1.0
    %v3103 = vrcp.pop %v3102
    %v3104 = vmul.f32 1.0, %v3103
    %v3105 = vadd.f32 %v3054, %v2874
    %v3107 = vrot.slane %v3105, 4
    %3108 = vrot.lane.b32.xlu0 %v3107, 96
    %v3109 = vpop.permute.xlu0 %3108
    %v3111 = vmul.f32 %v3104, %v3109
    %3113 = vrot.lane.b32.xlu0 %v3111, 32
    %v3114 = vpop.permute.xlu0 %3113
    %v3116 = vadd.f32 %v2677, %v3114
    %v3117 = vtanh.pop %v3116
    %v3119 = vrot.slane %v3117, 6
    %v3121 = vsub.f32 %v2899, %v3119
    %v3123 = vrot.slane %v3121, 2
    %3124 = vrot.lane.b32.xlu0 %v3123, 112
    %v3125 = vpop.permute.xlu0 %3124
    %v3127 = vmul.f32 %v3104, %v3125
    %3129 = vrot.lane.b32.xlu0 %v3127, 16
    %v3130 = vpop.permute.xlu0 %3129
    %v3132 = vadd.f32 %v3117, %v3130
    %3134 = vrot.lane.b32.xlu0 %v3094, 96
    %v3135 = vpop.permute.xlu0 %3134
    %3137 = vst.msk [vmem:[#allocation29] sm:$0xc] %vm923, %v3135
    %3139 = vrot.lane.b32.xlu0 %v3132, 112
    %v3140 = vpop.permute.xlu0 %3139
    %3142 = vst.msk [vmem:[#allocation29 + $0x8] sm:$0x30] %vm929, %v3140
    %v3143 = vrot.slane %v3094, 2
    %3144 = vrot.lane.b32.xlu0 %v3143, 96
    %v3145 = vpop.permute.xlu0 %3144
    %v3146 = vsel %vm460, %v3145, 0
    %3148 = vmatprep.subr.mxu0 0.0
    %3149 = vmatpush1.msra.mxu0 %v2498
    %3150 = vmatprep.subr.mxu0 0.0
    %3151 = vmatpush1.msra.mxu0 %v2499
    %3152 = vmatprep.subr.mxu0 0.0
    %3153 = vmatpush1.msra.mxu0 0.0
    %3154 = vmatprep.subr.mxu0 0.0
    %3155 = vmatpush1.msra.mxu0 0.0
    %3156 = vmatprep.subr.mxu0 0.0
    %3157 = vmatpush1.msra.mxu0 0.0
    %3158 = vmatprep.subr.mxu0 0.0
    %3159 = vmatpush1.msra.mxu0 0.0
    %3160 = vmatprep.subr.mxu0 0.0
    %3161 = vmatpush1.msra.mxu0 0.0
    %3162 = vmatprep.subr.mxu0 0.0
    %3163 = vmatpush1.msra.mxu0 0.0
    %3164 = vmatprep.subr.mxu0 0.0
    %3165 = vmatpush1.msra.mxu0 0.0
    %3166 = vmatprep.subr.mxu0 0.0
    %3167 = vmatpush1.msra.mxu0 0.0
    %3168 = vmatprep.subr.mxu0 0.0
    %3169 = vmatpush1.msra.mxu0 0.0
    %3170 = vmatprep.subr.mxu0 0.0
    %3171 = vmatpush1.msra.mxu0 0.0
    %3172 = vmatprep.subr.mxu0 0.0
    %3173 = vmatpush1.msra.mxu0 0.0
    %3174 = vmatprep.subr.mxu0 0.0
    %3175 = vmatpush1.msra.mxu0 0.0
    %3176 = vmatprep.subr.mxu0 0.0
    %3177 = vmatpush1.msra.mxu0 0.0
    %3178 = vmatprep.subr.mxu0 0.0
    %3179 = vmatpush1.msra.mxu0 0.0
    %3180 = vmatprep.subr.mxu0 0.0
    %3181 = vmatpush1.msra.mxu0 0.0
    %3182 = vmatprep.subr.mxu0 0.0
    %3183 = vmatpush1.msra.mxu0 0.0
    %3184 = vmatprep.subr.mxu0 0.0
    %3185 = vmatpush1.msra.mxu0 0.0
    %3186 = vmatprep.subr.mxu0 0.0
    %3187 = vmatpush1.msra.mxu0 0.0
    %3188 = vmatprep.subr.mxu0 0.0
    %3189 = vmatpush1.msra.mxu0 0.0
    %3190 = vmatprep.subr.mxu0 0.0
    %3191 = vmatpush1.msra.mxu0 0.0
    %3192 = vmatprep.subr.mxu0 0.0
    %3193 = vmatpush1.msra.mxu0 0.0
    %3194 = vmatprep.subr.mxu0 0.0
    %3195 = vmatpush1.msra.mxu0 0.0
    %3196 = vmatprep.subr.mxu0 0.0
    %3197 = vmatpush1.msra.mxu0 0.0
    %3198 = vmatprep.subr.mxu0 0.0
    %3199 = vmatpush1.msra.mxu0 0.0
    %3200 = vmatprep.subr.mxu0 0.0
    %3201 = vmatpush1.msra.mxu0 0.0
    %3202 = vmatprep.subr.mxu0 0.0
    %3203 = vmatpush1.msra.mxu0 0.0
    %3204 = vmatprep.subr.mxu0 0.0
    %3205 = vmatpush1.msra.mxu0 0.0
    %3206 = vmatprep.subr.mxu0 0.0
    %3207 = vmatpush1.msra.mxu0 0.0
    %3208 = vmatprep.subr.mxu0 0.0
    %3209 = vmatpush1.msra.mxu0 0.0
    %3210 = vmatprep.subr.mxu0 0.0
    %3211 = vmatpush1.msra.mxu0 0.0
    %3212 = vmatprep.mubr.f32.mxu0 0.0
    %3213 = vmatmul.mubr.f32.gmra.mrb[0].mxu0 %v3146
    %v3214 = vpop.f32.mrb[0].mxu0
    %v3215 = vadd.f32 0.0, %v3214
    %v3216 = vpop.f32.mrb[0].mxu0
    %3217 = vdwg.mxu0
    %v3218 = vrot.slane %v3132, 4
    %3219 = vrot.lane.b32.xlu0 %v3218, 96
    %v3220 = vpop.permute.xlu0 %3219
    %v3221 = vsel %vm460, %v3220, 0
    %3223 = vmatprep.subr.mxu0 0.0
    %3224 = vmatpush1.msra.mxu0 %v2506
    %3225 = vmatprep.subr.mxu0 0.0
    %3226 = vmatpush1.msra.mxu0 %v2507
    %3227 = vmatprep.subr.mxu0 0.0
    %3228 = vmatpush1.msra.mxu0 0.0
    %3229 = vmatprep.subr.mxu0 0.0
    %3230 = vmatpush1.msra.mxu0 0.0
    %3231 = vmatprep.subr.mxu0 0.0
    %3232 = vmatpush1.msra.mxu0 0.0
    %3233 = vmatprep.subr.mxu0 0.0
    %3234 = vmatpush1.msra.mxu0 0.0
    %3235 = vmatprep.subr.mxu0 0.0
    %3236 = vmatpush1.msra.mxu0 0.0
    %3237 = vmatprep.subr.mxu0 0.0
    %3238 = vmatpush1.msra.mxu0 0.0
    %3239 = vmatprep.subr.mxu0 0.0
    %3240 = vmatpush1.msra.mxu0 0.0
    %3241 = vmatprep.subr.mxu0 0.0
    %3242 = vmatpush1.msra.mxu0 0.0
    %3243 = vmatprep.subr.mxu0 0.0
    %3244 = vmatpush1.msra.mxu0 0.0
    %3245 = vmatprep.subr.mxu0 0.0
    %3246 = vmatpush1.msra.mxu0 0.0
    %3247 = vmatprep.subr.mxu0 0.0
    %3248 = vmatpush1.msra.mxu0 0.0
    %3249 = vmatprep.subr.mxu0 0.0
    %3250 = vmatpush1.msra.mxu0 0.0
    %3251 = vmatprep.subr.mxu0 0.0
    %3252 = vmatpush1.msra.mxu0 0.0
    %3253 = vmatprep.subr.mxu0 0.0
    %3254 = vmatpush1.msra.mxu0 0.0
    %3255 = vmatprep.subr.mxu0 0.0
    %3256 = vmatpush1.msra.mxu0 0.0
    %3257 = vmatprep.subr.mxu0 0.0
    %3258 = vmatpush1.msra.mxu0 0.0
    %3259 = vmatprep.subr.mxu0 0.0
    %3260 = vmatpush1.msra.mxu0 0.0
    %3261 = vmatprep.subr.mxu0 0.0
    %3262 = vmatpush1.msra.mxu0 0.0
    %3263 = vmatprep.subr.mxu0 0.0
    %3264 = vmatpush1.msra.mxu0 0.0
    %3265 = vmatprep.subr.mxu0 0.0
    %3266 = vmatpush1.msra.mxu0 0.0
    %3267 = vmatprep.subr.mxu0 0.0
    %3268 = vmatpush1.msra.mxu0 0.0
    %3269 = vmatprep.subr.mxu0 0.0
    %3270 = vmatpush1.msra.mxu0 0.0
    %3271 = vmatprep.subr.mxu0 0.0
    %3272 = vmatpush1.msra.mxu0 0.0
    %3273 = vmatprep.subr.mxu0 0.0
    %3274 = vmatpush1.msra.mxu0 0.0
    %3275 = vmatprep.subr.mxu0 0.0
    %3276 = vmatpush1.msra.mxu0 0.0
    %3277 = vmatprep.subr.mxu0 0.0
    %3278 = vmatpush1.msra.mxu0 0.0
    %3279 = vmatprep.subr.mxu0 0.0
    %3280 = vmatpush1.msra.mxu0 0.0
    %3281 = vmatprep.subr.mxu0 0.0
    %3282 = vmatpush1.msra.mxu0 0.0
    %3283 = vmatprep.subr.mxu0 0.0
    %3284 = vmatpush1.msra.mxu0 0.0
    %3285 = vmatprep.subr.mxu0 0.0
    %3286 = vmatpush1.msra.mxu0 0.0
    %3287 = vmatprep.mubr.f32.mxu0 0.0
    %3288 = vmatmul.mubr.f32.gmra.mrb[0].mxu0 %v3221
    %v3289 = vpop.f32.mrb[0].mxu0
    %v3290 = vadd.f32 0.0, %v3289
    %v3291 = vpop.f32.mrb[0].mxu0
    %3292 = vdwg.mxu0
    %v3294 = vrot.slane %v3215, 4
    %v3296 = vadd.f32 %v2591, %v3294
    %v3297 = vxor.u32 %v3296, 2147483648
    %v3298 = vmul.f32 %v3297, 1.442695
    %v3299 = vpow.pop %v3298
    %v3300 = vadd.f32 %v3299, 1.0
    %v3301 = vrcp.pop %v3300
    %v3302 = vmul.f32 1.0, %v3301
    %v3303 = vadd.f32 %v3215, %v2833
    %v3305 = vrot.slane %v3303, 4
    %3306 = vrot.lane.b32.xlu0 %v3305, 96
    %v3307 = vpop.permute.xlu0 %3306
    %v3309 = vmul.f32 %v3302, %v3307
    %3311 = vrot.lane.b32.xlu0 %v3309, 32
    %v3312 = vpop.permute.xlu0 %3311
    %v3314 = vadd.f32 %v2591, %v3312
    %v3315 = vtanh.pop %v3314
    %v3317 = vrot.slane %v3315, 2
    %v3319 = vsub.f32 %v3094, %v3317
    %v3321 = vrot.slane %v3319, 6
    %3322 = vrot.lane.b32.xlu0 %v3321, 112
    %v3323 = vpop.permute.xlu0 %3322
    %v3325 = vmul.f32 %v3302, %v3323
    %3327 = vrot.lane.b32.xlu0 %v3325, 16
    %v3328 = vpop.permute.xlu0 %3327
    %v3330 = vadd.f32 %v3315, %v3328
    %v3332 = vrot.slane %v3290, 6
    %v3334 = vadd.f32 %v2677, %v3332
    %v3335 = vxor.u32 %v3334, 2147483648
    %v3336 = vmul.f32 %v3335, 1.442695
    %v3337 = vpow.pop %v3336
    %v3338 = vadd.f32 %v3337, 1.0
    %v3339 = vrcp.pop %v3338
    %v3340 = vmul.f32 1.0, %v3339
    %v3341 = vadd.f32 %v3290, %v2874
    %v3343 = vrot.slane %v3341, 6
    %3344 = vrot.lane.b32.xlu0 %v3343, 96
    %v3345 = vpop.permute.xlu0 %3344
    %v3347 = vmul.f32 %v3340, %v3345
    %3349 = vrot.lane.b32.xlu0 %v3347, 32
    %v3350 = vpop.permute.xlu0 %3349
    %v3352 = vadd.f32 %v2677, %v3350
    %v3353 = vtanh.pop %v3352
    %v3355 = vrot.slane %v3353, 6
    %v3357 = vsub.f32 %v3132, %v3355
    %v3359 = vrot.slane %v3357, 2
    %3360 = vrot.lane.b32.xlu0 %v3359, 112
    %v3361 = vpop.permute.xlu0 %3360
    %v3363 = vmul.f32 %v3340, %v3361
    %3365 = vrot.lane.b32.xlu0 %v3363, 16
    %v3366 = vpop.permute.xlu0 %3365
    %v3368 = vadd.f32 %v3353, %v3366
    %3370 = vrot.lane.b32.xlu0 %v3330, 96
    %v3371 = vpop.permute.xlu0 %3370
    %3373 = vst.msk [vmem:[#allocation29] sm:$0x30] %vm1161, %v3371
    %3375 = vrot.lane.b32.xlu0 %v3368, 112
    %v3376 = vpop.permute.xlu0 %3375
    %3378 = vst.msk [vmem:[#allocation29 + $0x8] sm:$0xc] %vm1167, %v3376
    %v3379 = vrot.slane %v3330, 4
    %3380 = vrot.lane.b32.xlu0 %v3379, 96
    %v3381 = vpop.permute.xlu0 %3380
    %v3382 = vsel %vm460, %v3381, 0
    %3384 = vmatprep.subr.mxu0 0.0
    %3385 = vmatpush1.msra.mxu0 %v2498
    %3386 = vmatprep.subr.mxu0 0.0
    %3387 = vmatpush1.msra.mxu0 %v2499
    %3388 = vmatprep.subr.mxu0 0.0
    %3389 = vmatpush1.msra.mxu0 0.0
    %3390 = vmatprep.subr.mxu0 0.0
    %3391 = vmatpush1.msra.mxu0 0.0
    %3392 = vmatprep.subr.mxu0 0.0
    %3393 = vmatpush1.msra.mxu0 0.0
    %3394 = vmatprep.subr.mxu0 0.0
    %3395 = vmatpush1.msra.mxu0 0.0
    %3396 = vmatprep.subr.mxu0 0.0
    %3397 = vmatpush1.msra.mxu0 0.0
    %3398 = vmatprep.subr.mxu0 0.0
    %3399 = vmatpush1.msra.mxu0 0.0
    %3400 = vmatprep.subr.mxu0 0.0
    %3401 = vmatpush1.msra.mxu0 0.0
    %3402 = vmatprep.subr.mxu0 0.0
    %3403 = vmatpush1.msra.mxu0 0.0
    %3404 = vmatprep.subr.mxu0 0.0
    %3405 = vmatpush1.msra.mxu0 0.0
    %3406 = vmatprep.subr.mxu0 0.0
    %3407 = vmatpush1.msra.mxu0 0.0
    %3408 = vmatprep.subr.mxu0 0.0
    %3409 = vmatpush1.msra.mxu0 0.0
    %3410 = vmatprep.subr.mxu0 0.0
    %3411 = vmatpush1.msra.mxu0 0.0
    %3412 = vmatprep.subr.mxu0 0.0
    %3413 = vmatpush1.msra.mxu0 0.0
    %3414 = vmatprep.subr.mxu0 0.0
    %3415 = vmatpush1.msra.mxu0 0.0
    %3416 = vmatprep.subr.mxu0 0.0
    %3417 = vmatpush1.msra.mxu0 0.0
    %3418 = vmatprep.subr.mxu0 0.0
    %3419 = vmatpush1.msra.mxu0 0.0
    %3420 = vmatprep.subr.mxu0 0.0
    %3421 = vmatpush1.msra.mxu0 0.0
    %3422 = vmatprep.subr.mxu0 0.0
    %3423 = vmatpush1.msra.mxu0 0.0
    %3424 = vmatprep.subr.mxu0 0.0
    %3425 = vmatpush1.msra.mxu0 0.0
    %3426 = vmatprep.subr.mxu0 0.0
    %3427 = vmatpush1.msra.mxu0 0.0
    %3428 = vmatprep.subr.mxu0 0.0
    %3429 = vmatpush1.msra.mxu0 0.0
    %3430 = vmatprep.subr.mxu0 0.0
    %3431 = vmatpush1.msra.mxu0 0.0
    %3432 = vmatprep.subr.mxu0 0.0
    %3433 = vmatpush1.msra.mxu0 0.0
    %3434 = vmatprep.subr.mxu0 0.0
    %3435 = vmatpush1.msra.mxu0 0.0
    %3436 = vmatprep.subr.mxu0 0.0
    %3437 = vmatpush1.msra.mxu0 0.0
    %3438 = vmatprep.subr.mxu0 0.0
    %3439 = vmatpush1.msra.mxu0 0.0
    %3440 = vmatprep.subr.mxu0 0.0
    %3441 = vmatpush1.msra.mxu0 0.0
    %3442 = vmatprep.subr.mxu0 0.0
    %3443 = vmatpush1.msra.mxu0 0.0
    %3444 = vmatprep.subr.mxu0 0.0
    %3445 = vmatpush1.msra.mxu0 0.0
    %3446 = vmatprep.subr.mxu0 0.0
    %3447 = vmatpush1.msra.mxu0 0.0
    %3448 = vmatprep.mubr.f32.mxu0 0.0
    %3449 = vmatmul.mubr.f32.gmra.mrb[0].mxu0 %v3382
    %v3450 = vpop.f32.mrb[0].mxu0
    %v3451 = vadd.f32 0.0, %v3450
    %v3452 = vpop.f32.mrb[0].mxu0
    %3453 = vdwg.mxu0
    %v3454 = vrot.slane %v3368, 2
    %3455 = vrot.lane.b32.xlu0 %v3454, 96
    %v3456 = vpop.permute.xlu0 %3455
    %v3457 = vsel %vm460, %v3456, 0
    %3459 = vmatprep.subr.mxu0 0.0
    %3460 = vmatpush1.msra.mxu0 %v2506
    %3461 = vmatprep.subr.mxu0 0.0
    %3462 = vmatpush1.msra.mxu0 %v2507
    %3463 = vmatprep.subr.mxu0 0.0
    %3464 = vmatpush1.msra.mxu0 0.0
    %3465 = vmatprep.subr.mxu0 0.0
    %3466 = vmatpush1.msra.mxu0 0.0
    %3467 = vmatprep.subr.mxu0 0.0
    %3468 = vmatpush1.msra.mxu0 0.0
    %3469 = vmatprep.subr.mxu0 0.0
    %3470 = vmatpush1.msra.mxu0 0.0
    %3471 = vmatprep.subr.mxu0 0.0
    %3472 = vmatpush1.msra.mxu0 0.0
    %3473 = vmatprep.subr.mxu0 0.0
    %3474 = vmatpush1.msra.mxu0 0.0
    %3475 = vmatprep.subr.mxu0 0.0
    %3476 = vmatpush1.msra.mxu0 0.0
    %3477 = vmatprep.subr.mxu0 0.0
    %3478 = vmatpush1.msra.mxu0 0.0
    %3479 = vmatprep.subr.mxu0 0.0
    %3480 = vmatpush1.msra.mxu0 0.0
    %3481 = vmatprep.subr.mxu0 0.0
    %3482 = vmatpush1.msra.mxu0 0.0
    %3483 = vmatprep.subr.mxu0 0.0
    %3484 = vmatpush1.msra.mxu0 0.0
    %3485 = vmatprep.subr.mxu0 0.0
    %3486 = vmatpush1.msra.mxu0 0.0
    %3487 = vmatprep.subr.mxu0 0.0
    %3488 = vmatpush1.msra.mxu0 0.0
    %3489 = vmatprep.subr.mxu0 0.0
    %3490 = vmatpush1.msra.mxu0 0.0
    %3491 = vmatprep.subr.mxu0 0.0
    %3492 = vmatpush1.msra.mxu0 0.0
    %3493 = vmatprep.subr.mxu0 0.0
    %3494 = vmatpush1.msra.mxu0 0.0
    %3495 = vmatprep.subr.mxu0 0.0
    %3496 = vmatpush1.msra.mxu0 0.0
    %3497 = vmatprep.subr.mxu0 0.0
    %3498 = vmatpush1.msra.mxu0 0.0
    %3499 = vmatprep.subr.mxu0 0.0
    %3500 = vmatpush1.msra.mxu0 0.0
    %3501 = vmatprep.subr.mxu0 0.0
    %3502 = vmatpush1.msra.mxu0 0.0
    %3503 = vmatprep.subr.mxu0 0.0
    %3504 = vmatpush1.msra.mxu0 0.0
    %3505 = vmatprep.subr.mxu0 0.0
    %3506 = vmatpush1.msra.mxu0 0.0
    %3507 = vmatprep.subr.mxu0 0.0
    %3508 = vmatpush1.msra.mxu0 0.0
    %3509 = vmatprep.subr.mxu0 0.0
    %3510 = vmatpush1.msra.mxu0 0.0
    %3511 = vmatprep.subr.mxu0 0.0
    %3512 = vmatpush1.msra.mxu0 0.0
    %3513 = vmatprep.subr.mxu0 0.0
    %3514 = vmatpush1.msra.mxu0 0.0
    %3515 = vmatprep.subr.mxu0 0.0
    %3516 = vmatpush1.msra.mxu0 0.0
    %3517 = vmatprep.subr.mxu0 0.0
    %3518 = vmatpush1.msra.mxu0 0.0
    %3519 = vmatprep.subr.mxu0 0.0
    %3520 = vmatpush1.msra.mxu0 0.0
    %3521 = vmatprep.subr.mxu0 0.0
    %3522 = vmatpush1.msra.mxu0 0.0
    %3523 = vmatprep.mubr.f32.mxu0 0.0
    %3524 = vmatmul.mubr.f32.gmra.mrb[0].mxu0 %v3457
    %v3525 = vpop.f32.mrb[0].mxu0
    %v3526 = vadd.f32 0.0, %v3525
    %v3527 = vpop.f32.mrb[0].mxu0
    %3528 = vdwg.mxu0
    %v3530 = vrot.slane %v3451, 2
    %v3532 = vadd.f32 %v2591, %v3530
    %v3533 = vxor.u32 %v3532, 2147483648
    %v3534 = vmul.f32 %v3533, 1.442695
    %v3535 = vpow.pop %v3534
    %v3536 = vadd.f32 %v3535, 1.0
    %v3537 = vrcp.pop %v3536
    %v3538 = vmul.f32 1.0, %v3537
    %v3539 = vadd.f32 %v3451, %v2833
    %v3541 = vrot.slane %v3539, 2
    %3542 = vrot.lane.b32.xlu0 %v3541, 96
    %v3543 = vpop.permute.xlu0 %3542
    %v3545 = vmul.f32 %v3538, %v3543
    %3547 = vrot.lane.b32.xlu0 %v3545, 32
    %v3548 = vpop.permute.xlu0 %3547
    %v3550 = vadd.f32 %v2591, %v3548
    %v3551 = vtanh.pop %v3550
    %v3553 = vrot.slane %v3551, 2
    %v3555 = vsub.f32 %v3330, %v3553
    %v3557 = vrot.slane %v3555, 6
    %3558 = vrot.lane.b32.xlu0 %v3557, 112
    %v3559 = vpop.permute.xlu0 %3558
    %v3561 = vmul.f32 %v3538, %v3559
    %3563 = vrot.lane.b32.xlu0 %v3561, 16
    %v3564 = vpop.permute.xlu0 %3563
    %v3566 = vadd.f32 %v3551, %v3564
    %v3567 = vadd.f32 %v2677, %v3526
    %v3568 = vxor.u32 %v3567, 2147483648
    %v3569 = vmul.f32 %v3568, 1.442695
    %v3570 = vpow.pop %v3569
    %v3571 = vadd.f32 %v3570, 1.0
    %v3572 = vrcp.pop %v3571
    %v3573 = vmul.f32 1.0, %v3572
    %v3574 = vadd.f32 %v3526, %v2874
    %3576 = vrot.lane.b32.xlu0 %v3574, 96
    %v3577 = vpop.permute.xlu0 %3576
    %v3579 = vmul.f32 %v3573, %v3577
    %3581 = vrot.lane.b32.xlu0 %v3579, 32
    %v3582 = vpop.permute.xlu0 %3581
    %v3584 = vadd.f32 %v2677, %v3582
    %v3585 = vtanh.pop %v3584
    %v3587 = vrot.slane %v3585, 6
    %v3589 = vsub.f32 %v3368, %v3587
    %v3591 = vrot.slane %v3589, 2
    %3592 = vrot.lane.b32.xlu0 %v3591, 112
    %v3593 = vpop.permute.xlu0 %3592
    %v3595 = vmul.f32 %v3573, %v3593
    %3597 = vrot.lane.b32.xlu0 %v3595, 16
    %v3598 = vpop.permute.xlu0 %3597
    %v3600 = vadd.f32 %v3585, %v3598
    %3602 = vrot.lane.b32.xlu0 %v3566, 96
    %v3603 = vpop.permute.xlu0 %3602
    %3605 = vst.msk [vmem:[#allocation29] sm:$0xc0] %vm1395, %v3603
    %3607 = vrot.lane.b32.xlu0 %v3600, 112
    %v3608 = vpop.permute.xlu0 %3607
    %3610 = vst.msk [vmem:[#allocation29 + $0x8] sm:$0x3] %vm1401, %v3608
    %v3611 = vrot.slane %v3566, 6
    %3612 = vrot.lane.b32.xlu0 %v3611, 96
    %v3613 = vpop.permute.xlu0 %3612
    %v3614 = vsel %vm460, %v3613, 0
    %3616 = vmatprep.subr.mxu0 0.0
    %3617 = vmatpush1.msra.mxu0 %v2498
    %3618 = vmatprep.subr.mxu0 0.0
    %3619 = vmatpush1.msra.mxu0 %v2499
    %3620 = vmatprep.subr.mxu0 0.0
    %3621 = vmatpush1.msra.mxu0 0.0
    %3622 = vmatprep.subr.mxu0 0.0
    %3623 = vmatpush1.msra.mxu0 0.0
    %3624 = vmatprep.subr.mxu0 0.0
    %3625 = vmatpush1.msra.mxu0 0.0
    %3626 = vmatprep.subr.mxu0 0.0
    %3627 = vmatpush1.msra.mxu0 0.0
    %3628 = vmatprep.subr.mxu0 0.0
    %3629 = vmatpush1.msra.mxu0 0.0
    %3630 = vmatprep.subr.mxu0 0.0
    %3631 = vmatpush1.msra.mxu0 0.0
    %3632 = vmatprep.subr.mxu0 0.0
    %3633 = vmatpush1.msra.mxu0 0.0
    %3634 = vmatprep.subr.mxu0 0.0
    %3635 = vmatpush1.msra.mxu0 0.0
    %3636 = vmatprep.subr.mxu0 0.0
    %3637 = vmatpush1.msra.mxu0 0.0
    %3638 = vmatprep.subr.mxu0 0.0
    %3639 = vmatpush1.msra.mxu0 0.0
    %3640 = vmatprep.subr.mxu0 0.0
    %3641 = vmatpush1.msra.mxu0 0.0
    %3642 = vmatprep.subr.mxu0 0.0
    %3643 = vmatpush1.msra.mxu0 0.0
    %3644 = vmatprep.subr.mxu0 0.0
    %3645 = vmatpush1.msra.mxu0 0.0
    %3646 = vmatprep.subr.mxu0 0.0
    %3647 = vmatpush1.msra.mxu0 0.0
    %3648 = vmatprep.subr.mxu0 0.0
    %3649 = vmatpush1.msra.mxu0 0.0
    %3650 = vmatprep.subr.mxu0 0.0
    %3651 = vmatpush1.msra.mxu0 0.0
    %3652 = vmatprep.subr.mxu0 0.0
    %3653 = vmatpush1.msra.mxu0 0.0
    %3654 = vmatprep.subr.mxu0 0.0
    %3655 = vmatpush1.msra.mxu0 0.0
    %3656 = vmatprep.subr.mxu0 0.0
    %3657 = vmatpush1.msra.mxu0 0.0
    %3658 = vmatprep.subr.mxu0 0.0
    %3659 = vmatpush1.msra.mxu0 0.0
    %3660 = vmatprep.subr.mxu0 0.0
    %3661 = vmatpush1.msra.mxu0 0.0
    %3662 = vmatprep.subr.mxu0 0.0
    %3663 = vmatpush1.msra.mxu0 0.0
    %3664 = vmatprep.subr.mxu0 0.0
    %3665 = vmatpush1.msra.mxu0 0.0
    %3666 = vmatprep.subr.mxu0 0.0
    %3667 = vmatpush1.msra.mxu0 0.0
    %3668 = vmatprep.subr.mxu0 0.0
    %3669 = vmatpush1.msra.mxu0 0.0
    %3670 = vmatprep.subr.mxu0 0.0
    %3671 = vmatpush1.msra.mxu0 0.0
    %3672 = vmatprep.subr.mxu0 0.0
    %3673 = vmatpush1.msra.mxu0 0.0
    %3674 = vmatprep.subr.mxu0 0.0
    %3675 = vmatpush1.msra.mxu0 0.0
    %3676 = vmatprep.subr.mxu0 0.0
    %3677 = vmatpush1.msra.mxu0 0.0
    %3678 = vmatprep.subr.mxu0 0.0
    %3679 = vmatpush1.msra.mxu0 0.0
    %3680 = vmatprep.mubr.f32.mxu0 0.0
    %3681 = vmatmul.mubr.f32.gmra.mrb[0].mxu0 %v3614
    %v3682 = vpop.f32.mrb[0].mxu0
    %v3683 = vadd.f32 0.0, %v3682
    %v3684 = vpop.f32.mrb[0].mxu0
    %3685 = vdwg.mxu0
    %3686 = vrot.lane.b32.xlu0 %v3600, 96
    %v3687 = vpop.permute.xlu0 %3686
    %v3688 = vsel %vm460, %v3687, 0
    %3690 = vmatprep.subr.mxu0 0.0
    %3691 = vmatpush1.msra.mxu0 %v2506
    %3692 = vmatprep.subr.mxu0 0.0
    %3693 = vmatpush1.msra.mxu0 %v2507
    %3694 = vmatprep.subr.mxu0 0.0
    %3695 = vmatpush1.msra.mxu0 0.0
    %3696 = vmatprep.subr.mxu0 0.0
    %3697 = vmatpush1.msra.mxu0 0.0
    %3698 = vmatprep.subr.mxu0 0.0
    %3699 = vmatpush1.msra.mxu0 0.0
    %3700 = vmatprep.subr.mxu0 0.0
    %3701 = vmatpush1.msra.mxu0 0.0
    %3702 = vmatprep.subr.mxu0 0.0
    %3703 = vmatpush1.msra.mxu0 0.0
    %3704 = vmatprep.subr.mxu0 0.0
    %3705 = vmatpush1.msra.mxu0 0.0
    %3706 = vmatprep.subr.mxu0 0.0
    %3707 = vmatpush1.msra.mxu0 0.0
    %3708 = vmatprep.subr.mxu0 0.0
    %3709 = vmatpush1.msra.mxu0 0.0
    %3710 = vmatprep.subr.mxu0 0.0
    %3711 = vmatpush1.msra.mxu0 0.0
    %3712 = vmatprep.subr.mxu0 0.0
    %3713 = vmatpush1.msra.mxu0 0.0
    %3714 = vmatprep.subr.mxu0 0.0
    %3715 = vmatpush1.msra.mxu0 0.0
    %3716 = vmatprep.subr.mxu0 0.0
    %3717 = vmatpush1.msra.mxu0 0.0
    %3718 = vmatprep.subr.mxu0 0.0
    %3719 = vmatpush1.msra.mxu0 0.0
    %3720 = vmatprep.subr.mxu0 0.0
    %3721 = vmatpush1.msra.mxu0 0.0
    %3722 = vmatprep.subr.mxu0 0.0
    %3723 = vmatpush1.msra.mxu0 0.0
    %3724 = vmatprep.subr.mxu0 0.0
    %3725 = vmatpush1.msra.mxu0 0.0
    %3726 = vmatprep.subr.mxu0 0.0
    %3727 = vmatpush1.msra.mxu0 0.0
    %3728 = vmatprep.subr.mxu0 0.0
    %3729 = vmatpush1.msra.mxu0 0.0
    %3730 = vmatprep.subr.mxu0 0.0
    %3731 = vmatpush1.msra.mxu0 0.0
    %3732 = vmatprep.subr.mxu0 0.0
    %3733 = vmatpush1.msra.mxu0 0.0
    %3734 = vmatprep.subr.mxu0 0.0
    %3735 = vmatpush1.msra.mxu0 0.0
    %3736 = vmatprep.subr.mxu0 0.0
    %3737 = vmatpush1.msra.mxu0 0.0
    %3738 = vmatprep.subr.mxu0 0.0
    %3739 = vmatpush1.msra.mxu0 0.0
    %3740 = vmatprep.subr.mxu0 0.0
    %3741 = vmatpush1.msra.mxu0 0.0
    %3742 = vmatprep.subr.mxu0 0.0
    %3743 = vmatpush1.msra.mxu0 0.0
    %3744 = vmatprep.subr.mxu0 0.0
    %3745 = vmatpush1.msra.mxu0 0.0
    %3746 = vmatprep.subr.mxu0 0.0
    %3747 = vmatpush1.msra.mxu0 0.0
    %3748 = vmatprep.subr.mxu0 0.0
    %3749 = vmatpush1.msra.mxu0 0.0
    %3750 = vmatprep.subr.mxu0 0.0
    %3751 = vmatpush1.msra.mxu0 0.0
    %3752 = vmatprep.subr.mxu0 0.0
    %3753 = vmatpush1.msra.mxu0 0.0
    %3754 = vmatprep.mubr.f32.mxu0 0.0
    %3755 = vmatmul.mubr.f32.gmra.mrb[0].mxu0 %v3688
    %v3756 = vpop.f32.mrb[0].mxu0
    %v3757 = vadd.f32 0.0, %v3756
    %v3758 = vpop.f32.mrb[0].mxu0
    %3759 = vdwg.mxu0
    %v3760 = vadd.f32 %v2596, %v3683
    %v3761 = vxor.u32 %v3760, 2147483648
    %v3762 = vmul.f32 %v3761, 1.442695
    %v3763 = vpow.pop %v3762
    %v3764 = vadd.f32 %v3763, 1.0
    %v3765 = vrcp.pop %v3764
    %v3766 = vmul.f32 1.0, %v3765
    %v3767 = vadd.f32 %v3683, %v2833
    %3769 = vrot.lane.b32.xlu0 %v3767, 96
    %v3770 = vpop.permute.xlu0 %3769
    %v3772 = vmul.f32 %v3766, %v3770
    %3774 = vrot.lane.b32.xlu0 %v3772, 32
    %v3775 = vpop.permute.xlu0 %3774
    %v3777 = vadd.f32 %v2596, %v3775
    %v3778 = vtanh.pop %v3777
    %v3780 = vrot.slane %v3778, 2
    %v3782 = vsub.f32 %v3566, %v3780
    %v3784 = vrot.slane %v3782, 6
    %3785 = vrot.lane.b32.xlu0 %v3784, 112
    %v3786 = vpop.permute.xlu0 %3785
    %v3788 = vmul.f32 %v3766, %v3786
    %3790 = vrot.lane.b32.xlu0 %v3788, 16
    %v3791 = vpop.permute.xlu0 %3790
    %v3793 = vadd.f32 %v3778, %v3791
    %v3795 = vrot.slane %v3757, 2
    %v3797 = vadd.f32 %v2672, %v3795
    %v3798 = vxor.u32 %v3797, 2147483648
    %v3799 = vmul.f32 %v3798, 1.442695
    %v3800 = vpow.pop %v3799
    %v3801 = vadd.f32 %v3800, 1.0
    %v3802 = vrcp.pop %v3801
    %v3803 = vmul.f32 1.0, %v3802
    %v3804 = vadd.f32 %v3757, %v2874
    %v3806 = vrot.slane %v3804, 2
    %3807 = vrot.lane.b32.xlu0 %v3806, 96
    %v3808 = vpop.permute.xlu0 %3807
    %v3810 = vmul.f32 %v3803, %v3808
    %3812 = vrot.lane.b32.xlu0 %v3810, 32
    %v3813 = vpop.permute.xlu0 %3812
    %v3815 = vadd.f32 %v2672, %v3813
    %v3816 = vtanh.pop %v3815
    %v3818 = vrot.slane %v3816, 6
    %v3820 = vsub.f32 %v3600, %v3818
    %v3822 = vrot.slane %v3820, 2
    %3823 = vrot.lane.b32.xlu0 %v3822, 112
    %v3824 = vpop.permute.xlu0 %3823
    %v3826 = vmul.f32 %v3803, %v3824
    %3828 = vrot.lane.b32.xlu0 %v3826, 16
    %v3829 = vpop.permute.xlu0 %3828
    %v3831 = vadd.f32 %v3816, %v3829
    %3833 = vrot.lane.b32.xlu0 %v3793, 96
    %v3834 = vpop.permute.xlu0 %3833
    %3836 = vst.msk [vmem:[#allocation29 + $0x8] sm:$0x3] %vm688, %v3834
    %3838 = vrot.lane.b32.xlu0 %v3831, 112
    %v3839 = vpop.permute.xlu0 %3838
    %3841 = vst.msk [vmem:[#allocation29] sm:$0xc0] %vm694, %v3839
    %v3842 = vsel %vm460, %v3834, 0
    %3844 = vmatprep.subr.mxu0 0.0
    %3845 = vmatpush1.msra.mxu0 %v2498
    %3846 = vmatprep.subr.mxu0 0.0
    %3847 = vmatpush1.msra.mxu0 %v2499
    %3848 = vmatprep.subr.mxu0 0.0
    %3849 = vmatpush1.msra.mxu0 0.0
    %3850 = vmatprep.subr.mxu0 0.0
    %3851 = vmatpush1.msra.mxu0 0.0
    %3852 = vmatprep.subr.mxu0 0.0
    %3853 = vmatpush1.msra.mxu0 0.0
    %3854 = vmatprep.subr.mxu0 0.0
    %3855 = vmatpush1.msra.mxu0 0.0
    %3856 = vmatprep.subr.mxu0 0.0
    %3857 = vmatpush1.msra.mxu0 0.0
    %3858 = vmatprep.subr.mxu0 0.0
    %3859 = vmatpush1.msra.mxu0 0.0
    %3860 = vmatprep.subr.mxu0 0.0
    %3861 = vmatpush1.msra.mxu0 0.0
    %3862 = vmatprep.subr.mxu0 0.0
    %3863 = vmatpush1.msra.mxu0 0.0
    %3864 = vmatprep.subr.mxu0 0.0
    %3865 = vmatpush1.msra.mxu0 0.0
    %3866 = vmatprep.subr.mxu0 0.0
    %3867 = vmatpush1.msra.mxu0 0.0
    %3868 = vmatprep.subr.mxu0 0.0
    %3869 = vmatpush1.msra.mxu0 0.0
    %3870 = vmatprep.subr.mxu0 0.0
    %3871 = vmatpush1.msra.mxu0 0.0
    %3872 = vmatprep.subr.mxu0 0.0
    %3873 = vmatpush1.msra.mxu0 0.0
    %3874 = vmatprep.subr.mxu0 0.0
    %3875 = vmatpush1.msra.mxu0 0.0
    %3876 = vmatprep.subr.mxu0 0.0
    %3877 = vmatpush1.msra.mxu0 0.0
    %3878 = vmatprep.subr.mxu0 0.0
    %3879 = vmatpush1.msra.mxu0 0.0
    %3880 = vmatprep.subr.mxu0 0.0
    %3881 = vmatpush1.msra.mxu0 0.0
    %3882 = vmatprep.subr.mxu0 0.0
    %3883 = vmatpush1.msra.mxu0 0.0
    %3884 = vmatprep.subr.mxu0 0.0
    %3885 = vmatpush1.msra.mxu0 0.0
    %3886 = vmatprep.subr.mxu0 0.0
    %3887 = vmatpush1.msra.mxu0 0.0
    %3888 = vmatprep.subr.mxu0 0.0
    %3889 = vmatpush1.msra.mxu0 0.0
    %3890 = vmatprep.subr.mxu0 0.0
    %3891 = vmatpush1.msra.mxu0 0.0
    %3892 = vmatprep.subr.mxu0 0.0
    %3893 = vmatpush1.msra.mxu0 0.0
    %3894 = vmatprep.subr.mxu0 0.0
    %3895 = vmatpush1.msra.mxu0 0.0
    %3896 = vmatprep.subr.mxu0 0.0
    %3897 = vmatpush1.msra.mxu0 0.0
    %3898 = vmatprep.subr.mxu0 0.0
    %3899 = vmatpush1.msra.mxu0 0.0
    %3900 = vmatprep.subr.mxu0 0.0
    %3901 = vmatpush1.msra.mxu0 0.0
    %3902 = vmatprep.subr.mxu0 0.0
    %3903 = vmatpush1.msra.mxu0 0.0
    %3904 = vmatprep.subr.mxu0 0.0
    %3905 = vmatpush1.msra.mxu0 0.0
    %3906 = vmatprep.subr.mxu0 0.0
    %3907 = vmatpush1.msra.mxu0 0.0
    %3908 = vmatprep.mubr.f32.mxu0 0.0
    %3909 = vmatmul.mubr.f32.gmra.mrb[0].mxu0 %v3842
    %v3910 = vpop.f32.mrb[0].mxu0
    %v3911 = vadd.f32 0.0, %v3910
    %v3912 = vpop.f32.mrb[0].mxu0
    %3913 = vdwg.mxu0
    %v3914 = vrot.slane %v3831, 6
    %3915 = vrot.lane.b32.xlu0 %v3914, 96
    %v3916 = vpop.permute.xlu0 %3915
    %v3917 = vsel %vm460, %v3916, 0
    %3919 = vmatprep.subr.mxu0 0.0
    %3920 = vmatpush1.msra.mxu0 %v2506
    %3921 = vmatprep.subr.mxu0 0.0
    %3922 = vmatpush1.msra.mxu0 %v2507
    %3923 = vmatprep.subr.mxu0 0.0
    %3924 = vmatpush1.msra.mxu0 0.0
    %3925 = vmatprep.subr.mxu0 0.0
    %3926 = vmatpush1.msra.mxu0 0.0
    %3927 = vmatprep.subr.mxu0 0.0
    %3928 = vmatpush1.msra.mxu0 0.0
    %3929 = vmatprep.subr.mxu0 0.0
    %3930 = vmatpush1.msra.mxu0 0.0
    %3931 = vmatprep.subr.mxu0 0.0
    %3932 = vmatpush1.msra.mxu0 0.0
    %3933 = vmatprep.subr.mxu0 0.0
    %3934 = vmatpush1.msra.mxu0 0.0
    %3935 = vmatprep.subr.mxu0 0.0
    %3936 = vmatpush1.msra.mxu0 0.0
    %3937 = vmatprep.subr.mxu0 0.0
    %3938 = vmatpush1.msra.mxu0 0.0
    %3939 = vmatprep.subr.mxu0 0.0
    %3940 = vmatpush1.msra.mxu0 0.0
    %3941 = vmatprep.subr.mxu0 0.0
    %3942 = vmatpush1.msra.mxu0 0.0
    %3943 = vmatprep.subr.mxu0 0.0
    %3944 = vmatpush1.msra.mxu0 0.0
    %3945 = vmatprep.subr.mxu0 0.0
    %3946 = vmatpush1.msra.mxu0 0.0
    %3947 = vmatprep.subr.mxu0 0.0
    %3948 = vmatpush1.msra.mxu0 0.0
    %3949 = vmatprep.subr.mxu0 0.0
    %3950 = vmatpush1.msra.mxu0 0.0
    %3951 = vmatprep.subr.mxu0 0.0
    %3952 = vmatpush1.msra.mxu0 0.0
    %3953 = vmatprep.subr.mxu0 0.0
    %3954 = vmatpush1.msra.mxu0 0.0
    %3955 = vmatprep.subr.mxu0 0.0
    %3956 = vmatpush1.msra.mxu0 0.0
    %3957 = vmatprep.subr.mxu0 0.0
    %3958 = vmatpush1.msra.mxu0 0.0
    %3959 = vmatprep.subr.mxu0 0.0
    %3960 = vmatpush1.msra.mxu0 0.0
    %3961 = vmatprep.subr.mxu0 0.0
    %3962 = vmatpush1.msra.mxu0 0.0
    %3963 = vmatprep.subr.mxu0 0.0
    %3964 = vmatpush1.msra.mxu0 0.0
    %3965 = vmatprep.subr.mxu0 0.0
    %3966 = vmatpush1.msra.mxu0 0.0
    %3967 = vmatprep.subr.mxu0 0.0
    %3968 = vmatpush1.msra.mxu0 0.0
    %3969 = vmatprep.subr.mxu0 0.0
    %3970 = vmatpush1.msra.mxu0 0.0
    %3971 = vmatprep.subr.mxu0 0.0
    %3972 = vmatpush1.msra.mxu0 0.0
    %3973 = vmatprep.subr.mxu0 0.0
    %3974 = vmatpush1.msra.mxu0 0.0
    %3975 = vmatprep.subr.mxu0 0.0
    %3976 = vmatpush1.msra.mxu0 0.0
    %3977 = vmatprep.subr.mxu0 0.0
    %3978 = vmatpush1.msra.mxu0 0.0
    %3979 = vmatprep.subr.mxu0 0.0
    %3980 = vmatpush1.msra.mxu0 0.0
    %3981 = vmatprep.subr.mxu0 0.0
    %3982 = vmatpush1.msra.mxu0 0.0
    %3983 = vmatprep.mubr.f32.mxu0 0.0
    %3984 = vmatmul.mubr.f32.gmra.mrb[0].mxu0 %v3917
    %v3985 = vpop.f32.mrb[0].mxu0
    %v3986 = vadd.f32 0.0, %v3985
    %v3987 = vpop.f32.mrb[0].mxu0
    %3988 = vdwg.mxu0
    %v3990 = vrot.slane %v3911, 6
    %v3992 = vadd.f32 %v2596, %v3990
    %v3993 = vxor.u32 %v3992, 2147483648
    %v3994 = vmul.f32 %v3993, 1.442695
    %v3995 = vpow.pop %v3994
    %v3996 = vadd.f32 %v3995, 1.0
    %v3997 = vrcp.pop %v3996
    %v3998 = vmul.f32 1.0, %v3997
    %v3999 = vadd.f32 %v3911, %v2833
    %v4001 = vrot.slane %v3999, 6
    %4002 = vrot.lane.b32.xlu0 %v4001, 96
    %v4003 = vpop.permute.xlu0 %4002
    %v4005 = vmul.f32 %v3998, %v4003
    %4007 = vrot.lane.b32.xlu0 %v4005, 32
    %v4008 = vpop.permute.xlu0 %4007
    %v4010 = vadd.f32 %v2596, %v4008
    %v4011 = vtanh.pop %v4010
    %v4013 = vrot.slane %v4011, 2
    %v4015 = vsub.f32 %v3793, %v4013
    %v4017 = vrot.slane %v4015, 6
    %4018 = vrot.lane.b32.xlu0 %v4017, 112
    %v4019 = vpop.permute.xlu0 %4018
    %v4021 = vmul.f32 %v3998, %v4019
    %4023 = vrot.lane.b32.xlu0 %v4021, 16
    %v4024 = vpop.permute.xlu0 %4023
    %v4026 = vadd.f32 %v4011, %v4024
    %v4028 = vrot.slane %v3986, 4
    %v4030 = vadd.f32 %v2672, %v4028
    %v4031 = vxor.u32 %v4030, 2147483648
    %v4032 = vmul.f32 %v4031, 1.442695
    %v4033 = vpow.pop %v4032
    %v4034 = vadd.f32 %v4033, 1.0
    %v4035 = vrcp.pop %v4034
    %v4036 = vmul.f32 1.0, %v4035
    %v4037 = vadd.f32 %v3986, %v2874
    %v4039 = vrot.slane %v4037, 4
    %4040 = vrot.lane.b32.xlu0 %v4039, 96
    %v4041 = vpop.permute.xlu0 %4040
    %v4043 = vmul.f32 %v4036, %v4041
    %4045 = vrot.lane.b32.xlu0 %v4043, 32
    %v4046 = vpop.permute.xlu0 %4045
    %v4048 = vadd.f32 %v2672, %v4046
    %v4049 = vtanh.pop %v4048
    %v4051 = vrot.slane %v4049, 6
    %v4053 = vsub.f32 %v3831, %v4051
    %v4055 = vrot.slane %v4053, 2
    %4056 = vrot.lane.b32.xlu0 %v4055, 112
    %v4057 = vpop.permute.xlu0 %4056
    %v4059 = vmul.f32 %v4036, %v4057
    %4061 = vrot.lane.b32.xlu0 %v4059, 16
    %v4062 = vpop.permute.xlu0 %4061
    %v4064 = vadd.f32 %v4049, %v4062
    %4066 = vrot.lane.b32.xlu0 %v4026, 96
    %v4067 = vpop.permute.xlu0 %4066
    %4069 = vst.msk [vmem:[#allocation29 + $0x8] sm:$0xc] %vm923, %v4067
    %4071 = vrot.lane.b32.xlu0 %v4064, 112
    %v4072 = vpop.permute.xlu0 %4071
    %4074 = vst.msk [vmem:[#allocation29] sm:$0x30] %vm929, %v4072
    %v4075 = vrot.slane %v4026, 2
    %4076 = vrot.lane.b32.xlu0 %v4075, 96
    %v4077 = vpop.permute.xlu0 %4076
    %v4078 = vsel %vm460, %v4077, 0
    %4080 = vmatprep.subr.mxu0 0.0
    %4081 = vmatpush1.msra.mxu0 %v2498
    %4082 = vmatprep.subr.mxu0 0.0
    %4083 = vmatpush1.msra.mxu0 %v2499
    %4084 = vmatprep.subr.mxu0 0.0
    %4085 = vmatpush1.msra.mxu0 0.0
    %4086 = vmatprep.subr.mxu0 0.0
    %4087 = vmatpush1.msra.mxu0 0.0
    %4088 = vmatprep.subr.mxu0 0.0
    %4089 = vmatpush1.msra.mxu0 0.0
    %4090 = vmatprep.subr.mxu0 0.0
    %4091 = vmatpush1.msra.mxu0 0.0
    %4092 = vmatprep.subr.mxu0 0.0
    %4093 = vmatpush1.msra.mxu0 0.0
    %4094 = vmatprep.subr.mxu0 0.0
    %4095 = vmatpush1.msra.mxu0 0.0
    %4096 = vmatprep.subr.mxu0 0.0
    %4097 = vmatpush1.msra.mxu0 0.0
    %4098 = vmatprep.subr.mxu0 0.0
    %4099 = vmatpush1.msra.mxu0 0.0
    %4100 = vmatprep.subr.mxu0 0.0
    %4101 = vmatpush1.msra.mxu0 0.0
    %4102 = vmatprep.subr.mxu0 0.0
    %4103 = vmatpush1.msra.mxu0 0.0
    %4104 = vmatprep.subr.mxu0 0.0
    %4105 = vmatpush1.msra.mxu0 0.0
    %4106 = vmatprep.subr.mxu0 0.0
    %4107 = vmatpush1.msra.mxu0 0.0
    %4108 = vmatprep.subr.mxu0 0.0
    %4109 = vmatpush1.msra.mxu0 0.0
    %4110 = vmatprep.subr.mxu0 0.0
    %4111 = vmatpush1.msra.mxu0 0.0
    %4112 = vmatprep.subr.mxu0 0.0
    %4113 = vmatpush1.msra.mxu0 0.0
    %4114 = vmatprep.subr.mxu0 0.0
    %4115 = vmatpush1.msra.mxu0 0.0
    %4116 = vmatprep.subr.mxu0 0.0
    %4117 = vmatpush1.msra.mxu0 0.0
    %4118 = vmatprep.subr.mxu0 0.0
    %4119 = vmatpush1.msra.mxu0 0.0
    %4120 = vmatprep.subr.mxu0 0.0
    %4121 = vmatpush1.msra.mxu0 0.0
    %4122 = vmatprep.subr.mxu0 0.0
    %4123 = vmatpush1.msra.mxu0 0.0
    %4124 = vmatprep.subr.mxu0 0.0
    %4125 = vmatpush1.msra.mxu0 0.0
    %4126 = vmatprep.subr.mxu0 0.0
    %4127 = vmatpush1.msra.mxu0 0.0
    %4128 = vmatprep.subr.mxu0 0.0
    %4129 = vmatpush1.msra.mxu0 0.0
    %4130 = vmatprep.subr.mxu0 0.0
    %4131 = vmatpush1.msra.mxu0 0.0
    %4132 = vmatprep.subr.mxu0 0.0
    %4133 = vmatpush1.msra.mxu0 0.0
    %4134 = vmatprep.subr.mxu0 0.0
    %4135 = vmatpush1.msra.mxu0 0.0
    %4136 = vmatprep.subr.mxu0 0.0
    %4137 = vmatpush1.msra.mxu0 0.0
    %4138 = vmatprep.subr.mxu0 0.0
    %4139 = vmatpush1.msra.mxu0 0.0
    %4140 = vmatprep.subr.mxu0 0.0
    %4141 = vmatpush1.msra.mxu0 0.0
    %4142 = vmatprep.subr.mxu0 0.0
    %4143 = vmatpush1.msra.mxu0 0.0
    %4144 = vmatprep.mubr.f32.mxu0 0.0
    %4145 = vmatmul.mubr.f32.gmra.mrb[0].mxu0 %v4078
    %v4146 = vpop.f32.mrb[0].mxu0
    %v4147 = vadd.f32 0.0, %v4146
    %v4148 = vpop.f32.mrb[0].mxu0
    %4149 = vdwg.mxu0
    %v4150 = vrot.slane %v4064, 4
    %4151 = vrot.lane.b32.xlu0 %v4150, 96
    %v4152 = vpop.permute.xlu0 %4151
    %v4153 = vsel %vm460, %v4152, 0
    %4155 = vmatprep.subr.mxu0 0.0
    %4156 = vmatpush1.msra.mxu0 %v2506
    %4157 = vmatprep.subr.mxu0 0.0
    %4158 = vmatpush1.msra.mxu0 %v2507
    %4159 = vmatprep.subr.mxu0 0.0
    %4160 = vmatpush1.msra.mxu0 0.0
    %4161 = vmatprep.subr.mxu0 0.0
    %4162 = vmatpush1.msra.mxu0 0.0
    %4163 = vmatprep.subr.mxu0 0.0
    %4164 = vmatpush1.msra.mxu0 0.0
    %4165 = vmatprep.subr.mxu0 0.0
    %4166 = vmatpush1.msra.mxu0 0.0
    %4167 = vmatprep.subr.mxu0 0.0
    %4168 = vmatpush1.msra.mxu0 0.0
    %4169 = vmatprep.subr.mxu0 0.0
    %4170 = vmatpush1.msra.mxu0 0.0
    %4171 = vmatprep.subr.mxu0 0.0
    %4172 = vmatpush1.msra.mxu0 0.0
    %4173 = vmatprep.subr.mxu0 0.0
    %4174 = vmatpush1.msra.mxu0 0.0
    %4175 = vmatprep.subr.mxu0 0.0
    %4176 = vmatpush1.msra.mxu0 0.0
    %4177 = vmatprep.subr.mxu0 0.0
    %4178 = vmatpush1.msra.mxu0 0.0
    %4179 = vmatprep.subr.mxu0 0.0
    %4180 = vmatpush1.msra.mxu0 0.0
    %4181 = vmatprep.subr.mxu0 0.0
    %4182 = vmatpush1.msra.mxu0 0.0
    %4183 = vmatprep.subr.mxu0 0.0
    %4184 = vmatpush1.msra.mxu0 0.0
    %4185 = vmatprep.subr.mxu0 0.0
    %4186 = vmatpush1.msra.mxu0 0.0
    %4187 = vmatprep.subr.mxu0 0.0
    %4188 = vmatpush1.msra.mxu0 0.0
    %4189 = vmatprep.subr.mxu0 0.0
    %4190 = vmatpush1.msra.mxu0 0.0
    %4191 = vmatprep.subr.mxu0 0.0
    %4192 = vmatpush1.msra.mxu0 0.0
    %4193 = vmatprep.subr.mxu0 0.0
    %4194 = vmatpush1.msra.mxu0 0.0
    %4195 = vmatprep.subr.mxu0 0.0
    %4196 = vmatpush1.msra.mxu0 0.0
    %4197 = vmatprep.subr.mxu0 0.0
    %4198 = vmatpush1.msra.mxu0 0.0
    %4199 = vmatprep.subr.mxu0 0.0
    %4200 = vmatpush1.msra.mxu0 0.0
    %4201 = vmatprep.subr.mxu0 0.0
    %4202 = vmatpush1.msra.mxu0 0.0
    %4203 = vmatprep.subr.mxu0 0.0
    %4204 = vmatpush1.msra.mxu0 0.0
    %4205 = vmatprep.subr.mxu0 0.0
    %4206 = vmatpush1.msra.mxu0 0.0
    %4207 = vmatprep.subr.mxu0 0.0
    %4208 = vmatpush1.msra.mxu0 0.0
    %4209 = vmatprep.subr.mxu0 0.0
    %4210 = vmatpush1.msra.mxu0 0.0
    %4211 = vmatprep.subr.mxu0 0.0
    %4212 = vmatpush1.msra.mxu0 0.0
    %4213 = vmatprep.subr.mxu0 0.0
    %4214 = vmatpush1.msra.mxu0 0.0
    %4215 = vmatprep.subr.mxu0 0.0
    %4216 = vmatpush1.msra.mxu0 0.0
    %4217 = vmatprep.subr.mxu0 0.0
    %4218 = vmatpush1.msra.mxu0 0.0
    %4219 = vmatprep.mubr.f32.mxu0 0.0
    %4220 = vmatmul.mubr.f32.gmra.mrb[0].mxu0 %v4153
    %v4221 = vpop.f32.mrb[0].mxu0
    %v4222 = vadd.f32 0.0, %v4221
    %v4223 = vpop.f32.mrb[0].mxu0
    %4224 = vdwg.mxu0
    %v4226 = vrot.slane %v4147, 4
    %v4228 = vadd.f32 %v2596, %v4226
    %v4229 = vxor.u32 %v4228, 2147483648
    %v4230 = vmul.f32 %v4229, 1.442695
    %v4231 = vpow.pop %v4230
    %v4232 = vadd.f32 %v4231, 1.0
    %v4233 = vrcp.pop %v4232
    %v4234 = vmul.f32 1.0, %v4233
    %v4235 = vadd.f32 %v4147, %v2833
    %v4237 = vrot.slane %v4235, 4
    %4238 = vrot.lane.b32.xlu0 %v4237, 96
    %v4239 = vpop.permute.xlu0 %4238
    %v4241 = vmul.f32 %v4234, %v4239
    %4243 = vrot.lane.b32.xlu0 %v4241, 32
    %v4244 = vpop.permute.xlu0 %4243
    %v4246 = vadd.f32 %v2596, %v4244
    %v4247 = vtanh.pop %v4246
    %v4249 = vrot.slane %v4247, 2
    %v4251 = vsub.f32 %v4026, %v4249
    %v4253 = vrot.slane %v4251, 6
    %4254 = vrot.lane.b32.xlu0 %v4253, 112
    %v4255 = vpop.permute.xlu0 %4254
    %v4257 = vmul.f32 %v4234, %v4255
    %4259 = vrot.lane.b32.xlu0 %v4257, 16
    %v4260 = vpop.permute.xlu0 %4259
    %v4262 = vadd.f32 %v4247, %v4260
    %v4264 = vrot.slane %v4222, 6
    %v4266 = vadd.f32 %v2672, %v4264
    %v4267 = vxor.u32 %v4266, 2147483648
    %v4268 = vmul.f32 %v4267, 1.442695
    %v4269 = vpow.pop %v4268
    %v4270 = vadd.f32 %v4269, 1.0
    %v4271 = vrcp.pop %v4270
    %v4272 = vmul.f32 1.0, %v4271
    %v4273 = vadd.f32 %v4222, %v2874
    %v4275 = vrot.slane %v4273, 6
    %4276 = vrot.lane.b32.xlu0 %v4275, 96
    %v4277 = vpop.permute.xlu0 %4276
    %v4279 = vmul.f32 %v4272, %v4277
    %4281 = vrot.lane.b32.xlu0 %v4279, 32
    %v4282 = vpop.permute.xlu0 %4281
    %v4284 = vadd.f32 %v2672, %v4282
    %v4285 = vtanh.pop %v4284
    %v4287 = vrot.slane %v4285, 6
    %v4289 = vsub.f32 %v4064, %v4287
    %v4291 = vrot.slane %v4289, 2
    %4292 = vrot.lane.b32.xlu0 %v4291, 112
    %v4293 = vpop.permute.xlu0 %4292
    %v4295 = vmul.f32 %v4272, %v4293
    %4297 = vrot.lane.b32.xlu0 %v4295, 16
    %v4298 = vpop.permute.xlu0 %4297
    %v4300 = vadd.f32 %v4285, %v4298
    %4302 = vrot.lane.b32.xlu0 %v4262, 96
    %v4303 = vpop.permute.xlu0 %4302
    %4305 = vst.msk [vmem:[#allocation29 + $0x8] sm:$0x30] %vm1161, %v4303
    %4307 = vrot.lane.b32.xlu0 %v4300, 112
    %v4308 = vpop.permute.xlu0 %4307
    %4310 = vst.msk [vmem:[#allocation29] sm:$0xc] %vm1167, %v4308
    %v4311 = vrot.slane %v4262, 4
    %4312 = vrot.lane.b32.xlu0 %v4311, 96
    %v4313 = vpop.permute.xlu0 %4312
    %v4314 = vsel %vm460, %v4313, 0
    %4316 = vmatprep.subr.mxu0 0.0
    %4317 = vmatpush1.msra.mxu0 %v2498
    %4318 = vmatprep.subr.mxu0 0.0
    %4319 = vmatpush1.msra.mxu0 %v2499
    %4320 = vmatprep.subr.mxu0 0.0
    %4321 = vmatpush1.msra.mxu0 0.0
    %4322 = vmatprep.subr.mxu0 0.0
    %4323 = vmatpush1.msra.mxu0 0.0
    %4324 = vmatprep.subr.mxu0 0.0
    %4325 = vmatpush1.msra.mxu0 0.0
    %4326 = vmatprep.subr.mxu0 0.0
    %4327 = vmatpush1.msra.mxu0 0.0
    %4328 = vmatprep.subr.mxu0 0.0
    %4329 = vmatpush1.msra.mxu0 0.0
    %4330 = vmatprep.subr.mxu0 0.0
    %4331 = vmatpush1.msra.mxu0 0.0
    %4332 = vmatprep.subr.mxu0 0.0
    %4333 = vmatpush1.msra.mxu0 0.0
    %4334 = vmatprep.subr.mxu0 0.0
    %4335 = vmatpush1.msra.mxu0 0.0
    %4336 = vmatprep.subr.mxu0 0.0
    %4337 = vmatpush1.msra.mxu0 0.0
    %4338 = vmatprep.subr.mxu0 0.0
    %4339 = vmatpush1.msra.mxu0 0.0
    %4340 = vmatprep.subr.mxu0 0.0
    %4341 = vmatpush1.msra.mxu0 0.0
    %4342 = vmatprep.subr.mxu0 0.0
    %4343 = vmatpush1.msra.mxu0 0.0
    %4344 = vmatprep.subr.mxu0 0.0
    %4345 = vmatpush1.msra.mxu0 0.0
    %4346 = vmatprep.subr.mxu0 0.0
    %4347 = vmatpush1.msra.mxu0 0.0
    %4348 = vmatprep.subr.mxu0 0.0
    %4349 = vmatpush1.msra.mxu0 0.0
    %4350 = vmatprep.subr.mxu0 0.0
    %4351 = vmatpush1.msra.mxu0 0.0
    %4352 = vmatprep.subr.mxu0 0.0
    %4353 = vmatpush1.msra.mxu0 0.0
    %4354 = vmatprep.subr.mxu0 0.0
    %4355 = vmatpush1.msra.mxu0 0.0
    %4356 = vmatprep.subr.mxu0 0.0
    %4357 = vmatpush1.msra.mxu0 0.0
    %4358 = vmatprep.subr.mxu0 0.0
    %4359 = vmatpush1.msra.mxu0 0.0
    %4360 = vmatprep.subr.mxu0 0.0
    %4361 = vmatpush1.msra.mxu0 0.0
    %4362 = vmatprep.subr.mxu0 0.0
    %4363 = vmatpush1.msra.mxu0 0.0
    %4364 = vmatprep.subr.mxu0 0.0
    %4365 = vmatpush1.msra.mxu0 0.0
    %4366 = vmatprep.subr.mxu0 0.0
    %4367 = vmatpush1.msra.mxu0 0.0
    %4368 = vmatprep.subr.mxu0 0.0
    %4369 = vmatpush1.msra.mxu0 0.0
    %4370 = vmatprep.subr.mxu0 0.0
    %4371 = vmatpush1.msra.mxu0 0.0
    %4372 = vmatprep.subr.mxu0 0.0
    %4373 = vmatpush1.msra.mxu0 0.0
    %4374 = vmatprep.subr.mxu0 0.0
    %4375 = vmatpush1.msra.mxu0 0.0
    %4376 = vmatprep.subr.mxu0 0.0
    %4377 = vmatpush1.msra.mxu0 0.0
    %4378 = vmatprep.subr.mxu0 0.0
    %4379 = vmatpush1.msra.mxu0 0.0
    %4380 = vmatprep.mubr.f32.mxu0 0.0
    %4381 = vmatmul.mubr.f32.gmra.mrb[0].mxu0 %v4314
    %v4382 = vpop.f32.mrb[0].mxu0
    %v4383 = vadd.f32 0.0, %v4382
    %v4384 = vpop.f32.mrb[0].mxu0
    %4385 = vdwg.mxu0
    %v4386 = vrot.slane %v4300, 2
    %4387 = vrot.lane.b32.xlu0 %v4386, 96
    %v4388 = vpop.permute.xlu0 %4387
    %v4389 = vsel %vm460, %v4388, 0
    %4391 = vmatprep.subr.mxu0 0.0
    %4392 = vmatpush1.msra.mxu0 %v2506
    %4393 = vmatprep.subr.mxu0 0.0
    %4394 = vmatpush1.msra.mxu0 %v2507
    %4395 = vmatprep.subr.mxu0 0.0
    %4396 = vmatpush1.msra.mxu0 0.0
    %4397 = vmatprep.subr.mxu0 0.0
    %4398 = vmatpush1.msra.mxu0 0.0
    %4399 = vmatprep.subr.mxu0 0.0
    %4400 = vmatpush1.msra.mxu0 0.0
    %4401 = vmatprep.subr.mxu0 0.0
    %4402 = vmatpush1.msra.mxu0 0.0
    %4403 = vmatprep.subr.mxu0 0.0
    %4404 = vmatpush1.msra.mxu0 0.0
    %4405 = vmatprep.subr.mxu0 0.0
    %4406 = vmatpush1.msra.mxu0 0.0
    %4407 = vmatprep.subr.mxu0 0.0
    %4408 = vmatpush1.msra.mxu0 0.0
    %4409 = vmatprep.subr.mxu0 0.0
    %4410 = vmatpush1.msra.mxu0 0.0
    %4411 = vmatprep.subr.mxu0 0.0
    %4412 = vmatpush1.msra.mxu0 0.0
    %4413 = vmatprep.subr.mxu0 0.0
    %4414 = vmatpush1.msra.mxu0 0.0
    %4415 = vmatprep.subr.mxu0 0.0
    %4416 = vmatpush1.msra.mxu0 0.0
    %4417 = vmatprep.subr.mxu0 0.0
    %4418 = vmatpush1.msra.mxu0 0.0
    %4419 = vmatprep.subr.mxu0 0.0
    %4420 = vmatpush1.msra.mxu0 0.0
    %4421 = vmatprep.subr.mxu0 0.0
    %4422 = vmatpush1.msra.mxu0 0.0
    %4423 = vmatprep.subr.mxu0 0.0
    %4424 = vmatpush1.msra.mxu0 0.0
    %4425 = vmatprep.subr.mxu0 0.0
    %4426 = vmatpush1.msra.mxu0 0.0
    %4427 = vmatprep.subr.mxu0 0.0
    %4428 = vmatpush1.msra.mxu0 0.0
    %4429 = vmatprep.subr.mxu0 0.0
    %4430 = vmatpush1.msra.mxu0 0.0
    %4431 = vmatprep.subr.mxu0 0.0
    %4432 = vmatpush1.msra.mxu0 0.0
    %4433 = vmatprep.subr.mxu0 0.0
    %4434 = vmatpush1.msra.mxu0 0.0
    %4435 = vmatprep.subr.mxu0 0.0
    %4436 = vmatpush1.msra.mxu0 0.0
    %4437 = vmatprep.subr.mxu0 0.0
    %4438 = vmatpush1.msra.mxu0 0.0
    %4439 = vmatprep.subr.mxu0 0.0
    %4440 = vmatpush1.msra.mxu0 0.0
    %4441 = vmatprep.subr.mxu0 0.0
    %4442 = vmatpush1.msra.mxu0 0.0
    %4443 = vmatprep.subr.mxu0 0.0
    %4444 = vmatpush1.msra.mxu0 0.0
    %4445 = vmatprep.subr.mxu0 0.0
    %4446 = vmatpush1.msra.mxu0 0.0
    %4447 = vmatprep.subr.mxu0 0.0
    %4448 = vmatpush1.msra.mxu0 0.0
    %4449 = vmatprep.subr.mxu0 0.0
    %4450 = vmatpush1.msra.mxu0 0.0
    %4451 = vmatprep.subr.mxu0 0.0
    %4452 = vmatpush1.msra.mxu0 0.0
    %4453 = vmatprep.subr.mxu0 0.0
    %4454 = vmatpush1.msra.mxu0 0.0
    %4455 = vmatprep.mubr.f32.mxu0 0.0
    %4456 = vmatmul.mubr.f32.gmra.mrb[0].mxu0 %v4389
    %v4457 = vpop.f32.mrb[0].mxu0
    %v4458 = vadd.f32 0.0, %v4457
    %v4459 = vpop.f32.mrb[0].mxu0
    %4460 = vdwg.mxu0
    %v4462 = vrot.slane %v4383, 2
    %v4464 = vadd.f32 %v2596, %v4462
    %v4465 = vxor.u32 %v4464, 2147483648
    %v4466 = vmul.f32 %v4465, 1.442695
    %v4467 = vpow.pop %v4466
    %v4468 = vadd.f32 %v4467, 1.0
    %v4469 = vrcp.pop %v4468
    %v4470 = vmul.f32 1.0, %v4469
    %v4471 = vadd.f32 %v4383, %v2833
    %v4473 = vrot.slane %v4471, 2
    %4474 = vrot.lane.b32.xlu0 %v4473, 96
    %v4475 = vpop.permute.xlu0 %4474
    %v4477 = vmul.f32 %v4470, %v4475
    %4479 = vrot.lane.b32.xlu0 %v4477, 32
    %v4480 = vpop.permute.xlu0 %4479
    %v4482 = vadd.f32 %v2596, %v4480
    %v4483 = vtanh.pop %v4482
    %v4485 = vrot.slane %v4483, 2
    %v4487 = vsub.f32 %v4262, %v4485
    %v4489 = vrot.slane %v4487, 6
    %4490 = vrot.lane.b32.xlu0 %v4489, 112
    %v4491 = vpop.permute.xlu0 %4490
    %v4493 = vmul.f32 %v4470, %v4491
    %4495 = vrot.lane.b32.xlu0 %v4493, 16
    %v4496 = vpop.permute.xlu0 %4495
    %v4498 = vadd.f32 %v4483, %v4496
    %v4499 = vadd.f32 %v2672, %v4458
    %v4500 = vxor.u32 %v4499, 2147483648
    %v4501 = vmul.f32 %v4500, 1.442695
    %v4502 = vpow.pop %v4501
    %v4503 = vadd.f32 %v4502, 1.0
    %v4504 = vrcp.pop %v4503
    %v4505 = vmul.f32 1.0, %v4504
    %v4506 = vadd.f32 %v4458, %v2874
    %4508 = vrot.lane.b32.xlu0 %v4506, 96
    %v4509 = vpop.permute.xlu0 %4508
    %v4511 = vmul.f32 %v4505, %v4509
    %4513 = vrot.lane.b32.xlu0 %v4511, 32
    %v4514 = vpop.permute.xlu0 %4513
    %v4516 = vadd.f32 %v2672, %v4514
    %v4517 = vtanh.pop %v4516
    %v4519 = vrot.slane %v4517, 6
    %v4521 = vsub.f32 %v4300, %v4519
    %v4523 = vrot.slane %v4521, 2
    %4524 = vrot.lane.b32.xlu0 %v4523, 112
    %v4525 = vpop.permute.xlu0 %4524
    %v4527 = vmul.f32 %v4505, %v4525
    %4529 = vrot.lane.b32.xlu0 %v4527, 16
    %v4530 = vpop.permute.xlu0 %4529
    %v4532 = vadd.f32 %v4517, %v4530
    %4534 = vrot.lane.b32.xlu0 %v4498, 96
    %v4535 = vpop.permute.xlu0 %4534
    %4537 = vst.msk [vmem:[#allocation29 + $0x8] sm:$0xc0] %vm1395, %v4535
    %4539 = vrot.lane.b32.xlu0 %v4532, 112
    %v4540 = vpop.permute.xlu0 %4539
    %4542 = vst.msk [vmem:[#allocation29] sm:$0x3] %vm1401, %v4540
    %4543 = vrot.lane.b32.xlu0 %v4532, 96
    %v4544 = vpop.permute.xlu0 %4543
    %v4545 = vsel %vm460, %v4544, 0
    %4547 = vmatprep.subr.mxu0 0.0
    %4548 = vmatpush1.msra.mxu0 %v270
    %4549 = vmatprep.subr.mxu0 0.0
    %4550 = vmatpush1.msra.mxu0 %v271
    %4551 = vmatprep.subr.mxu0 0.0
    %4552 = vmatpush1.msra.mxu0 0.0
    %4553 = vmatprep.subr.mxu0 0.0
    %4554 = vmatpush1.msra.mxu0 0.0
    %4555 = vmatprep.subr.mxu0 0.0
    %4556 = vmatpush1.msra.mxu0 0.0
    %4557 = vmatprep.subr.mxu0 0.0
    %4558 = vmatpush1.msra.mxu0 0.0
    %4559 = vmatprep.subr.mxu0 0.0
    %4560 = vmatpush1.msra.mxu0 0.0
    %4561 = vmatprep.subr.mxu0 0.0
    %4562 = vmatpush1.msra.mxu0 0.0
    %4563 = vmatprep.subr.mxu0 0.0
    %4564 = vmatpush1.msra.mxu0 0.0
    %4565 = vmatprep.subr.mxu0 0.0
    %4566 = vmatpush1.msra.mxu0 0.0
    %4567 = vmatprep.subr.mxu0 0.0
    %4568 = vmatpush1.msra.mxu0 0.0
    %4569 = vmatprep.subr.mxu0 0.0
    %4570 = vmatpush1.msra.mxu0 0.0
    %4571 = vmatprep.subr.mxu0 0.0
    %4572 = vmatpush1.msra.mxu0 0.0
    %4573 = vmatprep.subr.mxu0 0.0
    %4574 = vmatpush1.msra.mxu0 0.0
    %4575 = vmatprep.subr.mxu0 0.0
    %4576 = vmatpush1.msra.mxu0 0.0
    %4577 = vmatprep.subr.mxu0 0.0
    %4578 = vmatpush1.msra.mxu0 0.0
    %4579 = vmatprep.subr.mxu0 0.0
    %4580 = vmatpush1.msra.mxu0 0.0
    %4581 = vmatprep.subr.mxu0 0.0
    %4582 = vmatpush1.msra.mxu0 0.0
    %4583 = vmatprep.subr.mxu0 0.0
    %4584 = vmatpush1.msra.mxu0 0.0
    %4585 = vmatprep.subr.mxu0 0.0
    %4586 = vmatpush1.msra.mxu0 0.0
    %4587 = vmatprep.subr.mxu0 0.0
    %4588 = vmatpush1.msra.mxu0 0.0
    %4589 = vmatprep.subr.mxu0 0.0
    %4590 = vmatpush1.msra.mxu0 0.0
    %4591 = vmatprep.subr.mxu0 0.0
    %4592 = vmatpush1.msra.mxu0 0.0
    %4593 = vmatprep.subr.mxu0 0.0
    %4594 = vmatpush1.msra.mxu0 0.0
    %4595 = vmatprep.subr.mxu0 0.0
    %4596 = vmatpush1.msra.mxu0 0.0
    %4597 = vmatprep.subr.mxu0 0.0
    %4598 = vmatpush1.msra.mxu0 0.0
    %4599 = vmatprep.subr.mxu0 0.0
    %4600 = vmatpush1.msra.mxu0 0.0
    %4601 = vmatprep.subr.mxu0 0.0
    %4602 = vmatpush1.msra.mxu0 0.0
    %4603 = vmatprep.subr.mxu0 0.0
    %4604 = vmatpush1.msra.mxu0 0.0
    %4605 = vmatprep.subr.mxu0 0.0
    %4606 = vmatpush1.msra.mxu0 0.0
    %4607 = vmatprep.subr.mxu0 0.0
    %4608 = vmatpush1.msra.mxu0 0.0
    %4609 = vmatprep.subr.mxu0 0.0
    %4610 = vmatpush1.msra.mxu0 0.0
    %4611 = vmatprep.mubr.f32.mxu0 0.0
    %4612 = vmatmul.mubr.f32.gmra.mrb[0].mxu0 %v4545
    %v4613 = vpop.f32.mrb[0].mxu0
    %v4614 = vadd.f32 0.0, %v4613
    %v4615 = vpop.f32.mrb[0].mxu0
    %4616 = vdwg.mxu0
    %v4617 = vrot.slane %v4498, 6
    %4618 = vrot.lane.b32.xlu0 %v4617, 96
    %v4619 = vpop.permute.xlu0 %4618
    %v4620 = vsel %vm460, %v4619, 0
    %4622 = vmatprep.subr.mxu0 0.0
    %4623 = vmatpush1.msra.mxu0 %v267
    %4624 = vmatprep.subr.mxu0 0.0
    %4625 = vmatpush1.msra.mxu0 %v268
    %4626 = vmatprep.subr.mxu0 0.0
    %4627 = vmatpush1.msra.mxu0 0.0
    %4628 = vmatprep.subr.mxu0 0.0
    %4629 = vmatpush1.msra.mxu0 0.0
    %4630 = vmatprep.subr.mxu0 0.0
    %4631 = vmatpush1.msra.mxu0 0.0
    %4632 = vmatprep.subr.mxu0 0.0
    %4633 = vmatpush1.msra.mxu0 0.0
    %4634 = vmatprep.subr.mxu0 0.0
    %4635 = vmatpush1.msra.mxu0 0.0
    %4636 = vmatprep.subr.mxu0 0.0
    %4637 = vmatpush1.msra.mxu0 0.0
    %4638 = vmatprep.subr.mxu0 0.0
    %4639 = vmatpush1.msra.mxu0 0.0
    %4640 = vmatprep.subr.mxu0 0.0
    %4641 = vmatpush1.msra.mxu0 0.0
    %4642 = vmatprep.subr.mxu0 0.0
    %4643 = vmatpush1.msra.mxu0 0.0
    %4644 = vmatprep.subr.mxu0 0.0
    %4645 = vmatpush1.msra.mxu0 0.0
    %4646 = vmatprep.subr.mxu0 0.0
    %4647 = vmatpush1.msra.mxu0 0.0
    %4648 = vmatprep.subr.mxu0 0.0
    %4649 = vmatpush1.msra.mxu0 0.0
    %4650 = vmatprep.subr.mxu0 0.0
    %4651 = vmatpush1.msra.mxu0 0.0
    %4652 = vmatprep.subr.mxu0 0.0
    %4653 = vmatpush1.msra.mxu0 0.0
    %4654 = vmatprep.subr.mxu0 0.0
    %4655 = vmatpush1.msra.mxu0 0.0
    %4656 = vmatprep.subr.mxu0 0.0
    %4657 = vmatpush1.msra.mxu0 0.0
    %4658 = vmatprep.subr.mxu0 0.0
    %4659 = vmatpush1.msra.mxu0 0.0
    %4660 = vmatprep.subr.mxu0 0.0
    %4661 = vmatpush1.msra.mxu0 0.0
    %4662 = vmatprep.subr.mxu0 0.0
    %4663 = vmatpush1.msra.mxu0 0.0
    %4664 = vmatprep.subr.mxu0 0.0
    %4665 = vmatpush1.msra.mxu0 0.0
    %4666 = vmatprep.subr.mxu0 0.0
    %4667 = vmatpush1.msra.mxu0 0.0
    %4668 = vmatprep.subr.mxu0 0.0
    %4669 = vmatpush1.msra.mxu0 0.0
    %4670 = vmatprep.subr.mxu0 0.0
    %4671 = vmatpush1.msra.mxu0 0.0
    %4672 = vmatprep.subr.mxu0 0.0
    %4673 = vmatpush1.msra.mxu0 0.0
    %4674 = vmatprep.subr.mxu0 0.0
    %4675 = vmatpush1.msra.mxu0 0.0
    %4676 = vmatprep.subr.mxu0 0.0
    %4677 = vmatpush1.msra.mxu0 0.0
    %4678 = vmatprep.subr.mxu0 0.0
    %4679 = vmatpush1.msra.mxu0 0.0
    %4680 = vmatprep.subr.mxu0 0.0
    %4681 = vmatpush1.msra.mxu0 0.0
    %4682 = vmatprep.subr.mxu0 0.0
    %4683 = vmatpush1.msra.mxu0 0.0
    %4684 = vmatprep.subr.mxu0 0.0
    %4685 = vmatpush1.msra.mxu0 0.0
    %4686 = vmatprep.mubr.f32.mxu0 0.0
    %4687 = vmatmul.mubr.f32.gmra.mrb[0].mxu0 %v4620
    %v4688 = vpop.f32.mrb[0].mxu0
    %v4689 = vadd.f32 %v4614, %v4688
    %v4690 = vpop.f32.mrb[0].mxu0
    %4691 = vdwg.mxu0
    %v4692 = vadd.f32 %v4689, %v2488
    %v4693 = vtanh.pop %v4692
    %s4694 = scalar_lea.vmem [#allocation30], 2
    %4695 = vst.msk [vmem:[%s4694] sm:$0x3] %vm2492, %v4693
    // Predicated region
    $region142: #{tpu_custom_call.1} parent=1 // pred_check
      _
    $region143: #{tpu_custom_call.1} parent=1 // pred_check_branch
      %4697 = sbr.rel (0) target = $region145
    $region144: #{tpu_custom_call.1} parent=1 // pred_region
      %s4699 = ssub.s32 256, 256
      %4700 = vsyncadd [#allocation5], %s4699
      %s4701 = sshll.u32 [#allocation29], 4
      %s4702 = int_to_ptr.vmem [resolvable:$true] %s4701
      %4707 = dma.vmem_to_hbm [thread:$0]  %s4702, 256, %s19, [#allocation5], 128, 128, 8
    $region145: #{tpu_custom_call.1} parent=1 // pred_fallthru
      _
    // Predicated region
    $region146: #{tpu_custom_call.1} parent=1 // pred_check
      _
    $region147: #{tpu_custom_call.1} parent=1 // pred_check_branch
      %4709 = sbr.rel (0) target = $region149
    $region148: #{tpu_custom_call.1} parent=1 // pred_region
      %s4711 = ssub.s32 64, 64
      %4712 = vsyncadd [#allocation31], %s4711
      %s4713 = sshll.u32 [#allocation30], 4
      %s4714 = int_to_ptr.vmem [resolvable:$true] %s4713
      %4719 = dma.vmem_to_hbm [thread:$0]  %s4714, 64, %s20, [#allocation31], 32, 32, 2
    $region149: #{tpu_custom_call.1} parent=1 // pred_fallthru
      _
    // Predicated region
    $region150: #{tpu_custom_call.1} parent=1 // pred_check
      _
    $region151: #{tpu_custom_call.1} parent=1 // pred_check_branch
      %4721 = sbr.rel (0) target = $region153
    $region152: #{tpu_custom_call.1} parent=1 // pred_region
      %4722 = dma.done [#allocation5], 256
    $region153: #{tpu_custom_call.1} parent=1 // pred_fallthru
      _
    // Predicated region
    $region154: #{tpu_custom_call.1} parent=1 // pred_check
      _
    $region155: #{tpu_custom_call.1} parent=1 // pred_check_branch
      %4724 = sbr.rel (0) target = $region157
    $region156: #{tpu_custom_call.1} parent=1 // pred_region
      %4725 = dma.done [#allocation31], 64
    $region157: #{tpu_custom_call.1} parent=1 // pred_fallthru
      _
    %4726 = vsyncpa [#allocation4], 1
    %4727 = vsyncpa [#allocation7], 1
    %4728 = vsyncpa [#allocation10], 1
    %4729 = vsyncpa [#allocation13], 1
    %4730 = vsyncpa [#allocation16], 1
    %4731 = vsyncpa [#allocation19], 1
    %4732 = vsyncpa [#allocation22], 1
    %4733 = vsyncpa [#allocation25], 1
    %4734 = vsyncpa [#allocation28], 1
    %4735 = vsyncpa [#allocation5], 1
    %4736 = vsyncpa [#allocation31], 1

</llo_original>
